<compile_context>
chip_gen: v7x
topology: tpu7x:2x2x1
jax: 0.10.0
libtpu: 0.0.40
codegen_flags: <defaults>
</compile_context>

<pallas_src>
import functools

import jax
import jax.numpy as jnp
from jax import lax
from jax.experimental import pallas as pl
from jax.experimental.pallas import tpu as pltpu


def _resblock_kernel(H, W, xpad_ref, w1_ref, b1_ref, w2_ref, b2_ref,
                     wa1_ref, ba1_ref, wa2_ref, ba2_ref, o_ref, h1pad_ref):
    HW = H * W
    C = o_ref.shape[-1]

    def conv3x3(src_ref, w_ref, b_ref):
        # src_ref: (H+2, W+2, C) zero-padded activation (NHWC, C on lanes).
        # w_ref:   (3, 3*C, C) -- one (3*C, C) weight slab per kernel row dy,
        #          rows ordered (dx, cin) to match the lane concat below.
        acc = None
        for dy in range(3):
            patch = jnp.concatenate(
                [src_ref[dy:dy + H, dx:dx + W, :].reshape(HW, C)
                 for dx in range(3)],
                axis=-1)                                     # (HW, 3C)
            part = jnp.dot(patch, w_ref[dy],
                           preferred_element_type=jnp.float32)
            acc = part if acc is None else acc + part
        return acc + b_ref[...]                              # (HW, C) f32

    # ---- conv1 (3x3, pad=1) + bias + ReLU ---------------------------------
    h1 = jnp.maximum(conv3x3(xpad_ref, w1_ref, b1_ref), 0.0)

    # Re-pad the intermediate activation into VMEM scratch for conv2.
    # (Reshape only splits the leading flattened dim -> layout preserving.)
    h1pad_ref[...] = jnp.zeros_like(h1pad_ref)
    h1pad_ref[1:H + 1, 1:W + 1, :] = h1.reshape(H, W, C)

    # ---- conv2 (3x3, pad=1) + bias ----------------------------------------
    out2 = conv3x3(h1pad_ref, w2_ref, b2_ref)                # (HW, C)

    # ---- CALayer: global avg pool + tiny 1x1 convs on the VPU + sigmoid ---
    m = jnp.mean(out2, axis=0, keepdims=True)                          # (1, C)
    h = jnp.sum(wa1_ref[...] * m, axis=1, keepdims=True) + ba1_ref[...]
    h = jnp.maximum(h, 0.0)                                            # (Cr, 1)
    z = jnp.sum(wa2_ref[...] * h, axis=0, keepdims=True) + ba2_ref[...]
    att = 1.0 / (1.0 + jnp.exp(-z))                                    # (1, C)

    # ---- channel scale + residual add --------------------------------------
    x_in = xpad_ref[1:H + 1, 1:W + 1, :].reshape(HW, C)
    o_ref[...] = (x_in + out2 * att).astype(o_ref.dtype)


def residual_block_pallas(x_nchw, params):
    (cw1, cb1, cw2, cb2, aw1, ab1, aw2, ab2) = params
    N, C, H, W = x_nchw.shape
    HW = H * W
    C_red = aw1.shape[0]

    # NCHW -> NHWC (spatial on sublanes, channels on lanes), pad spatially.
    x_nhwc = jnp.transpose(x_nchw, (0, 2, 3, 1))
    xpad = jnp.pad(x_nhwc, ((0, 0), (1, 1), (1, 1), (0, 0)))

    # Conv weights (Cout, Cin, 3, 3) -> (ky, kx, Cin, Cout) -> (3, 3*Cin, Cout):
    # for each kernel row ky, rows ordered (kx, cin) so a single matmul per ky
    # consumes the lane-concatenated [dx=0 | dx=1 | dx=2] patch.
    w1t = jnp.transpose(cw1, (2, 3, 1, 0)).reshape(3, 3 * C, C)
    w2t = jnp.transpose(cw2, (2, 3, 1, 0)).reshape(3, 3 * C, C)
    b1r = cb1.reshape(1, C)
    b2r = cb2.reshape(1, C)

    # Channel-attention params pre-shaped so the kernel never transposes.
    wa1 = aw1                      # (C_red, C)
    ba1 = ab1.reshape(C_red, 1)    # (C_red, 1)
    wa2 = aw2.T                    # (C_red, C)
    ba2 = ab2.reshape(1, C)        # (1, C)

    kernel = functools.partial(_resblock_kernel, H, W)

    out = pl.pallas_call(
        kernel,
        out_shape=jax.ShapeDtypeStruct((N, HW, C), x_nchw.dtype),
        grid_spec=pltpu.PrefetchScalarGridSpec(
            num_scalar_prefetch=0,
            grid=(N,),
            in_specs=[
                pl.BlockSpec((None, H + 2, W + 2, C), lambda n: (n, 0, 0, 0)),
                pl.BlockSpec((3, 3 * C, C), lambda n: (0, 0, 0)),
                pl.BlockSpec((1, C), lambda n: (0, 0)),
                pl.BlockSpec((3, 3 * C, C), lambda n: (0, 0, 0)),
                pl.BlockSpec((1, C), lambda n: (0, 0)),
                pl.BlockSpec((C_red, C), lambda n: (0, 0)),
                pl.BlockSpec((C_red, 1), lambda n: (0, 0)),
                pl.BlockSpec((C_red, C), lambda n: (0, 0)),
                pl.BlockSpec((1, C), lambda n: (0, 0)),
            ],
            out_specs=pl.BlockSpec((None, HW, C), lambda n: (n, 0, 0)),
            scratch_shapes=[pltpu.VMEM((H + 2, W + 2, C), jnp.float32)],
        ),
        compiler_params=pltpu.CompilerParams(
            dimension_semantics=("parallel",)),
    )(xpad, w1t, b1r, w2t, b2r, wa1, ba1, wa2, ba2)

    return jnp.transpose(out.reshape(N, H, W, C), (0, 3, 1, 2))


def make_params(key, n_feat):
    # Matches ResidualBlock(n_feat, kernel_size=3, stride=1, dilation=1,
    # padding=1) with CALayer(n_feat, reduction=n_feat // 4).
    reduction = n_feat // 4
    c_red = n_feat // reduction
    ks = jax.random.split(key, 8)
    s = 0.1
    cw1 = jax.random.normal(ks[0], (n_feat, n_feat, 3, 3), jnp.float32) * s
    cb1 = jax.random.normal(ks[1], (n_feat,), jnp.float32) * s
    cw2 = jax.random.normal(ks[2], (n_feat, n_feat, 3, 3), jnp.float32) * s
    cb2 = jax.random.normal(ks[3], (n_feat,), jnp.float32) * s
    aw1 = jax.random.normal(ks[4], (c_red, n_feat), jnp.float32) * s
    ab1 = jax.random.normal(ks[5], (c_red,), jnp.float32) * s
    aw2 = jax.random.normal(ks[6], (n_feat, c_red), jnp.float32) * s
    ab2 = jax.random.normal(ks[7], (n_feat,), jnp.float32) * s
    return (cw1, cb1, cw2, cb2, aw1, ab1, aw2, ab2)


def residual_block_ref(x, params):
    # Pure-JAX reference of the PyTorch ResidualBlock forward.
    (cw1, cb1, cw2, cb2, aw1, ab1, aw2, ab2) = params
    dn = ('NCHW', 'OIHW', 'NCHW')
    hi = lax.Precision.HIGHEST
    out = lax.conv_general_dilated(x, cw1, (1, 1), ((1, 1), (1, 1)),
                                   dimension_numbers=dn, precision=hi)
    out = jnp.maximum(out + cb1[None, :, None, None], 0.0)
    out = lax.conv_general_dilated(out, cw2, (1, 1), ((1, 1), (1, 1)),
                                   dimension_numbers=dn, precision=hi)
    out = out + cb2[None, :, None, None]
    y = jnp.mean(out, axis=(2, 3), keepdims=True)
    y = jnp.einsum('rc,ncij->nrij', aw1, y, precision=hi) \
        + ab1[None, :, None, None]
    y = jnp.maximum(y, 0.0)
    y = jnp.einsum('cr,nrij->ncij', aw2, y, precision=hi) \
        + ab2[None, :, None, None]
    y = jax.nn.sigmoid(y)
    return x + out * y


if __name__ == "__main__":
    key = jax.random.PRNGKey(0)
    kx, kp = jax.random.split(key)

    N, C, H, W = 2, 32, 16, 16      # n_feat=32 -> reduction=8 -> C_red=4
    x = jax.random.normal(kx, (N, C, H, W), jnp.float32)
    params = make_params(kp, C)

    run = jax.jit(residual_block_pallas)
    out = jax.block_until_ready(run(x, params))

    ref = residual_block_ref(x, params)
    assert out.shape == (N, C, H, W)
    err = float(jnp.max(jnp.abs(out - ref)))
    assert err < 1e-3, f"mismatch vs reference: max abs err = {err}"

    print("KERNEL_OK")
</pallas_src>

<mosaic_0001>
module attributes {stable_mosaic.version = 11 : i64} {
  func.func @_resblock_kernel(%arg0: i32, %arg1: memref<1x18x18x32xf32, #tpu.memory_space<vmem>>, %arg2: memref<3x96x32xf32, #tpu.memory_space<vmem>>, %arg3: memref<1x32xf32, #tpu.memory_space<vmem>>, %arg4: memref<3x96x32xf32, #tpu.memory_space<vmem>>, %arg5: memref<1x32xf32, #tpu.memory_space<vmem>>, %arg6: memref<4x32xf32, #tpu.memory_space<vmem>>, %arg7: memref<4x1xf32, #tpu.memory_space<vmem>>, %arg8: memref<4x32xf32, #tpu.memory_space<vmem>>, %arg9: memref<1x32xf32, #tpu.memory_space<vmem>>, %arg10: memref<1x256x32xf32, #tpu.memory_space<vmem>>, %arg11: memref<18x18x32xf32, #tpu.memory_space<vmem>>) attributes {dimension_semantics = [#tpu.dimension_semantics<parallel>], iteration_bounds = array<i64: 2>, scalar_prefetch = 0 : i64, scratch_operands = 1 : i64, tpu.core_type = #tpu.core_type<tc>, window_params = [{transform_indices = @transform_0, window_bounds = array<i64: 1, 18, 18, 32>}, {pipeline_mode = #tpu.pipeline_mode<synchronous>, transform_indices = @transform_1, window_bounds = array<i64: 3, 96, 32>}, {pipeline_mode = #tpu.pipeline_mode<synchronous>, transform_indices = @transform_2, window_bounds = array<i64: 1, 32>}, {pipeline_mode = #tpu.pipeline_mode<synchronous>, transform_indices = @transform_3, window_bounds = array<i64: 3, 96, 32>}, {pipeline_mode = #tpu.pipeline_mode<synchronous>, transform_indices = @transform_4, window_bounds = array<i64: 1, 32>}, {pipeline_mode = #tpu.pipeline_mode<synchronous>, transform_indices = @transform_5, window_bounds = array<i64: 4, 32>}, {pipeline_mode = #tpu.pipeline_mode<synchronous>, transform_indices = @transform_6, window_bounds = array<i64: 4, 1>}, {pipeline_mode = #tpu.pipeline_mode<synchronous>, transform_indices = @transform_7, window_bounds = array<i64: 4, 32>}, {pipeline_mode = #tpu.pipeline_mode<synchronous>, transform_indices = @transform_8, window_bounds = array<i64: 1, 32>}, {transform_indices = @transform_9, window_bounds = array<i64: 1, 256, 32>}]} {
    %c0 = arith.constant 0 : index
    %c0_0 = arith.constant 0 : index
    %c0_1 = arith.constant 0 : index
    %c0_2 = arith.constant 0 : index
    %0 = vector.load %arg1[%c0, %c0_0, %c0_1, %c0_2] : memref<1x18x18x32xf32, #tpu.memory_space<vmem>>, vector<1x16x16x32xf32>
    %1 = vector.shape_cast %0 : vector<1x16x16x32xf32> to vector<16x16x32xf32>
    %2 = vector.shape_cast %1 : vector<16x16x32xf32> to vector<256x32xf32>
    %c0_3 = arith.constant 0 : index
    %c0_4 = arith.constant 0 : index
    %c1 = arith.constant 1 : index
    %c0_5 = arith.constant 0 : index
    %3 = vector.load %arg1[%c0_3, %c0_4, %c1, %c0_5] : memref<1x18x18x32xf32, #tpu.memory_space<vmem>>, vector<1x16x16x32xf32>
    %4 = vector.shape_cast %3 : vector<1x16x16x32xf32> to vector<16x16x32xf32>
    %5 = vector.shape_cast %4 : vector<16x16x32xf32> to vector<256x32xf32>
    %c0_6 = arith.constant 0 : index
    %c0_7 = arith.constant 0 : index
    %c2 = arith.constant 2 : index
    %c0_8 = arith.constant 0 : index
    %6 = vector.load %arg1[%c0_6, %c0_7, %c2, %c0_8] : memref<1x18x18x32xf32, #tpu.memory_space<vmem>>, vector<1x16x16x32xf32>
    %7 = vector.shape_cast %6 : vector<1x16x16x32xf32> to vector<16x16x32xf32>
    %8 = vector.shape_cast %7 : vector<16x16x32xf32> to vector<256x32xf32>
    %9 = tpu.concatenate %2, %5, %8 in 1 : vector<256x32xf32>, vector<256x32xf32>, vector<256x32xf32> -> vector<256x96xf32>
    %c0_9 = arith.constant 0 : index
    %c0_10 = arith.constant 0 : index
    %c0_11 = arith.constant 0 : index
    %10 = vector.load %arg2[%c0_9, %c0_10, %c0_11] : memref<3x96x32xf32, #tpu.memory_space<vmem>>, vector<1x96x32xf32>
    %11 = vector.shape_cast %10 : vector<1x96x32xf32> to vector<96x32xf32>
    %cst = arith.constant dense<0.000000e+00> : vector<256x32xf32>
    %12 = tpu.matmul %9, %11, %cst {dimension_numbers = #tpu.dot_dimension_numbers<[1], [0], [0], [1], [0, 0, 1, 1], [], []>} : vector<256x96xf32>, vector<96x32xf32>, vector<256x32xf32> -> vector<256x32xf32>
    %c0_12 = arith.constant 0 : index
    %c1_13 = arith.constant 1 : index
    %c0_14 = arith.constant 0 : index
    %c0_15 = arith.constant 0 : index
    %13 = vector.load %arg1[%c0_12, %c1_13, %c0_14, %c0_15] : memref<1x18x18x32xf32, #tpu.memory_space<vmem>>, vector<1x16x16x32xf32>
    %14 = vector.shape_cast %13 : vector<1x16x16x32xf32> to vector<16x16x32xf32>
    %15 = vector.shape_cast %14 : vector<16x16x32xf32> to vector<256x32xf32>
    %c0_16 = arith.constant 0 : index
    %c1_17 = arith.constant 1 : index
    %c1_18 = arith.constant 1 : index
    %c0_19 = arith.constant 0 : index
    %16 = vector.load %arg1[%c0_16, %c1_17, %c1_18, %c0_19] : memref<1x18x18x32xf32, #tpu.memory_space<vmem>>, vector<1x16x16x32xf32>
    %17 = vector.shape_cast %16 : vector<1x16x16x32xf32> to vector<16x16x32xf32>
    %18 = vector.shape_cast %17 : vector<16x16x32xf32> to vector<256x32xf32>
    %c0_20 = arith.constant 0 : index
    %c1_21 = arith.constant 1 : index
    %c2_22 = arith.constant 2 : index
    %c0_23 = arith.constant 0 : index
    %19 = vector.load %arg1[%c0_20, %c1_21, %c2_22, %c0_23] : memref<1x18x18x32xf32, #tpu.memory_space<vmem>>, vector<1x16x16x32xf32>
    %20 = vector.shape_cast %19 : vector<1x16x16x32xf32> to vector<16x16x32xf32>
    %21 = vector.shape_cast %20 : vector<16x16x32xf32> to vector<256x32xf32>
    %22 = tpu.concatenate %15, %18, %21 in 1 : vector<256x32xf32>, vector<256x32xf32>, vector<256x32xf32> -> vector<256x96xf32>
    %c1_24 = arith.constant 1 : index
    %c0_25 = arith.constant 0 : index
    %c0_26 = arith.constant 0 : index
    %23 = vector.load %arg2[%c1_24, %c0_25, %c0_26] : memref<3x96x32xf32, #tpu.memory_space<vmem>>, vector<1x96x32xf32>
    %24 = vector.shape_cast %23 : vector<1x96x32xf32> to vector<96x32xf32>
    %cst_27 = arith.constant dense<0.000000e+00> : vector<256x32xf32>
    %25 = tpu.matmul %22, %24, %cst_27 {dimension_numbers = #tpu.dot_dimension_numbers<[1], [0], [0], [1], [0, 0, 1, 1], [], []>} : vector<256x96xf32>, vector<96x32xf32>, vector<256x32xf32> -> vector<256x32xf32>
    %26 = arith.addf %12, %25 : vector<256x32xf32>
    %c0_28 = arith.constant 0 : index
    %c2_29 = arith.constant 2 : index
    %c0_30 = arith.constant 0 : index
    %c0_31 = arith.constant 0 : index
    %27 = vector.load %arg1[%c0_28, %c2_29, %c0_30, %c0_31] : memref<1x18x18x32xf32, #tpu.memory_space<vmem>>, vector<1x16x16x32xf32>
    %28 = vector.shape_cast %27 : vector<1x16x16x32xf32> to vector<16x16x32xf32>
    %29 = vector.shape_cast %28 : vector<16x16x32xf32> to vector<256x32xf32>
    %c0_32 = arith.constant 0 : index
    %c2_33 = arith.constant 2 : index
    %c1_34 = arith.constant 1 : index
    %c0_35 = arith.constant 0 : index
    %30 = vector.load %arg1[%c0_32, %c2_33, %c1_34, %c0_35] : memref<1x18x18x32xf32, #tpu.memory_space<vmem>>, vector<1x16x16x32xf32>
    %31 = vector.shape_cast %30 : vector<1x16x16x32xf32> to vector<16x16x32xf32>
    %32 = vector.shape_cast %31 : vector<16x16x32xf32> to vector<256x32xf32>
    %c0_36 = arith.constant 0 : index
    %c2_37 = arith.constant 2 : index
    %c2_38 = arith.constant 2 : index
    %c0_39 = arith.constant 0 : index
    %33 = vector.load %arg1[%c0_36, %c2_37, %c2_38, %c0_39] : memref<1x18x18x32xf32, #tpu.memory_space<vmem>>, vector<1x16x16x32xf32>
    %34 = vector.shape_cast %33 : vector<1x16x16x32xf32> to vector<16x16x32xf32>
    %35 = vector.shape_cast %34 : vector<16x16x32xf32> to vector<256x32xf32>
    %36 = tpu.concatenate %29, %32, %35 in 1 : vector<256x32xf32>, vector<256x32xf32>, vector<256x32xf32> -> vector<256x96xf32>
    %c2_40 = arith.constant 2 : index
    %c0_41 = arith.constant 0 : index
    %c0_42 = arith.constant 0 : index
    %37 = vector.load %arg2[%c2_40, %c0_41, %c0_42] : memref<3x96x32xf32, #tpu.memory_space<vmem>>, vector<1x96x32xf32>
    %38 = vector.shape_cast %37 : vector<1x96x32xf32> to vector<96x32xf32>
    %cst_43 = arith.constant dense<0.000000e+00> : vector<256x32xf32>
    %39 = tpu.matmul %36, %38, %cst_43 {dimension_numbers = #tpu.dot_dimension_numbers<[1], [0], [0], [1], [0, 0, 1, 1], [], []>} : vector<256x96xf32>, vector<96x32xf32>, vector<256x32xf32> -> vector<256x32xf32>
    %40 = arith.addf %26, %39 : vector<256x32xf32>
    %c0_44 = arith.constant 0 : index
    %c0_45 = arith.constant 0 : index
    %41 = vector.load %arg3[%c0_44, %c0_45] : memref<1x32xf32, #tpu.memory_space<vmem>>, vector<1x32xf32>
    %42 = vector.broadcast %41 : vector<1x32xf32> to vector<256x32xf32>
    %43 = arith.addf %40, %42 : vector<256x32xf32>
    %cst_46 = arith.constant 0.000000e+00 : f32
    %44 = vector.broadcast %cst_46 : f32 to vector<256x32xf32>
    %45 = arith.maximumf %43, %44 : vector<256x32xf32>
    %cst_47 = arith.constant 0.000000e+00 : f32
    %46 = vector.broadcast %cst_47 : f32 to vector<18x18x32xf32>
    %c0_48 = arith.constant 0 : index
    %c0_49 = arith.constant 0 : index
    %c0_50 = arith.constant 0 : index
    %47 = vector.load %arg11[%c0_48, %c0_49, %c0_50] : memref<18x18x32xf32, #tpu.memory_space<vmem>>, vector<18x18x32xf32>
    tpu.vector_store %arg11[%c0_48, %c0_49, %c0_50], %46 {strides = array<i32>} : memref<18x18x32xf32, #tpu.memory_space<vmem>>, vector<18x18x32xf32>,
    %48 = vector.shape_cast %45 : vector<256x32xf32> to vector<16x16x32xf32>
    %c1_51 = arith.constant 1 : index
    %c1_52 = arith.constant 1 : index
    %c0_53 = arith.constant 0 : index
    %49 = vector.load %arg11[%c1_51, %c1_52, %c0_53] : memref<18x18x32xf32, #tpu.memory_space<vmem>>, vector<16x16x32xf32>
    tpu.vector_store %arg11[%c1_51, %c1_52, %c0_53], %48 {strides = array<i32>} : memref<18x18x32xf32, #tpu.memory_space<vmem>>, vector<16x16x32xf32>,
    %c0_54 = arith.constant 0 : index
    %c0_55 = arith.constant 0 : index
    %c0_56 = arith.constant 0 : index
    %50 = vector.load %arg11[%c0_54, %c0_55, %c0_56] : memref<18x18x32xf32, #tpu.memory_space<vmem>>, vector<16x16x32xf32>
    %51 = vector.shape_cast %50 : vector<16x16x32xf32> to vector<256x32xf32>
    %c0_57 = arith.constant 0 : index
    %c1_58 = arith.constant 1 : index
    %c0_59 = arith.constant 0 : index
    %52 = vector.load %arg11[%c0_57, %c1_58, %c0_59] : memref<18x18x32xf32, #tpu.memory_space<vmem>>, vector<16x16x32xf32>
    %53 = vector.shape_cast %52 : vector<16x16x32xf32> to vector<256x32xf32>
    %c0_60 = arith.constant 0 : index
    %c2_61 = arith.constant 2 : index
    %c0_62 = arith.constant 0 : index
    %54 = vector.load %arg11[%c0_60, %c2_61, %c0_62] : memref<18x18x32xf32, #tpu.memory_space<vmem>>, vector<16x16x32xf32>
    %55 = vector.shape_cast %54 : vector<16x16x32xf32> to vector<256x32xf32>
    %56 = tpu.concatenate %51, %53, %55 in 1 : vector<256x32xf32>, vector<256x32xf32>, vector<256x32xf32> -> vector<256x96xf32>
    %c0_63 = arith.constant 0 : index
    %c0_64 = arith.constant 0 : index
    %c0_65 = arith.constant 0 : index
    %57 = vector.load %arg4[%c0_63, %c0_64, %c0_65] : memref<3x96x32xf32, #tpu.memory_space<vmem>>, vector<1x96x32xf32>
    %58 = vector.shape_cast %57 : vector<1x96x32xf32> to vector<96x32xf32>
    %cst_66 = arith.constant dense<0.000000e+00> : vector<256x32xf32>
    %59 = tpu.matmul %56, %58, %cst_66 {dimension_numbers = #tpu.dot_dimension_numbers<[1], [0], [0], [1], [0, 0, 1, 1], [], []>} : vector<256x96xf32>, vector<96x32xf32>, vector<256x32xf32> -> vector<256x32xf32>
    %c1_67 = arith.constant 1 : index
    %c0_68 = arith.constant 0 : index
    %c0_69 = arith.constant 0 : index
    %60 = vector.load %arg11[%c1_67, %c0_68, %c0_69] : memref<18x18x32xf32, #tpu.memory_space<vmem>>, vector<16x16x32xf32>
    %61 = vector.shape_cast %60 : vector<16x16x32xf32> to vector<256x32xf32>
    %c1_70 = arith.constant 1 : index
    %c1_71 = arith.constant 1 : index
    %c0_72 = arith.constant 0 : index
    %62 = vector.load %arg11[%c1_70, %c1_71, %c0_72] : memref<18x18x32xf32, #tpu.memory_space<vmem>>, vector<16x16x32xf32>
    %63 = vector.shape_cast %62 : vector<16x16x32xf32> to vector<256x32xf32>
    %c1_73 = arith.constant 1 : index
    %c2_74 = arith.constant 2 : index
    %c0_75 = arith.constant 0 : index
    %64 = vector.load %arg11[%c1_73, %c2_74, %c0_75] : memref<18x18x32xf32, #tpu.memory_space<vmem>>, vector<16x16x32xf32>
    %65 = vector.shape_cast %64 : vector<16x16x32xf32> to vector<256x32xf32>
    %66 = tpu.concatenate %61, %63, %65 in 1 : vector<256x32xf32>, vector<256x32xf32>, vector<256x32xf32> -> vector<256x96xf32>
    %c1_76 = arith.constant 1 : index
    %c0_77 = arith.constant 0 : index
    %c0_78 = arith.constant 0 : index
    %67 = vector.load %arg4[%c1_76, %c0_77, %c0_78] : memref<3x96x32xf32, #tpu.memory_space<vmem>>, vector<1x96x32xf32>
    %68 = vector.shape_cast %67 : vector<1x96x32xf32> to vector<96x32xf32>
    %cst_79 = arith.constant dense<0.000000e+00> : vector<256x32xf32>
    %69 = tpu.matmul %66, %68, %cst_79 {dimension_numbers = #tpu.dot_dimension_numbers<[1], [0], [0], [1], [0, 0, 1, 1], [], []>} : vector<256x96xf32>, vector<96x32xf32>, vector<256x32xf32> -> vector<256x32xf32>
    %70 = arith.addf %59, %69 : vector<256x32xf32>
    %c2_80 = arith.constant 2 : index
    %c0_81 = arith.constant 0 : index
    %c0_82 = arith.constant 0 : index
    %71 = vector.load %arg11[%c2_80, %c0_81, %c0_82] : memref<18x18x32xf32, #tpu.memory_space<vmem>>, vector<16x16x32xf32>
    %72 = vector.shape_cast %71 : vector<16x16x32xf32> to vector<256x32xf32>
    %c2_83 = arith.constant 2 : index
    %c1_84 = arith.constant 1 : index
    %c0_85 = arith.constant 0 : index
    %73 = vector.load %arg11[%c2_83, %c1_84, %c0_85] : memref<18x18x32xf32, #tpu.memory_space<vmem>>, vector<16x16x32xf32>
    %74 = vector.shape_cast %73 : vector<16x16x32xf32> to vector<256x32xf32>
    %c2_86 = arith.constant 2 : index
    %c2_87 = arith.constant 2 : index
    %c0_88 = arith.constant 0 : index
    %75 = vector.load %arg11[%c2_86, %c2_87, %c0_88] : memref<18x18x32xf32, #tpu.memory_space<vmem>>, vector<16x16x32xf32>
    %76 = vector.shape_cast %75 : vector<16x16x32xf32> to vector<256x32xf32>
    %77 = tpu.concatenate %72, %74, %76 in 1 : vector<256x32xf32>, vector<256x32xf32>, vector<256x32xf32> -> vector<256x96xf32>
    %c2_89 = arith.constant 2 : index
    %c0_90 = arith.constant 0 : index
    %c0_91 = arith.constant 0 : index
    %78 = vector.load %arg4[%c2_89, %c0_90, %c0_91] : memref<3x96x32xf32, #tpu.memory_space<vmem>>, vector<1x96x32xf32>
    %79 = vector.shape_cast %78 : vector<1x96x32xf32> to vector<96x32xf32>
    %cst_92 = arith.constant dense<0.000000e+00> : vector<256x32xf32>
    %80 = tpu.matmul %77, %79, %cst_92 {dimension_numbers = #tpu.dot_dimension_numbers<[1], [0], [0], [1], [0, 0, 1, 1], [], []>} : vector<256x96xf32>, vector<96x32xf32>, vector<256x32xf32> -> vector<256x32xf32>
    %81 = arith.addf %70, %80 : vector<256x32xf32>
    %c0_93 = arith.constant 0 : index
    %c0_94 = arith.constant 0 : index
    %82 = vector.load %arg5[%c0_93, %c0_94] : memref<1x32xf32, #tpu.memory_space<vmem>>, vector<1x32xf32>
    %83 = vector.broadcast %82 : vector<1x32xf32> to vector<256x32xf32>
    %84 = arith.addf %81, %83 : vector<256x32xf32>
    %cst_95 = arith.constant dense<0.000000e+00> : vector<32xf32>
    %85 = vector.multi_reduction <add>, %84, %cst_95 [0] : vector<256x32xf32> to vector<32xf32>
    %86 = vector.shape_cast %85 : vector<32xf32> to vector<1x32xf32>
    %cst_96 = arith.constant 2.560000e+02 : f32
    %87 = vector.broadcast %cst_96 : f32 to vector<1x32xf32>
    %88 = arith.divf %86, %87 : vector<1x32xf32>
    %c0_97 = arith.constant 0 : index
    %c0_98 = arith.constant 0 : index
    %89 = vector.load %arg6[%c0_97, %c0_98] : memref<4x32xf32, #tpu.memory_space<vmem>>, vector<4x32xf32>
    %90 = vector.broadcast %88 : vector<1x32xf32> to vector<4x32xf32>
    %91 = arith.mulf %89, %90 : vector<4x32xf32>
    %cst_99 = arith.constant dense<0.000000e+00> : vector<4xf32>
    %92 = vector.multi_reduction <add>, %91, %cst_99 [1] : vector<4x32xf32> to vector<4xf32>
    %93 = vector.shape_cast %92 : vector<4xf32> to vector<4x1xf32>
    %c0_100 = arith.constant 0 : index
    %c0_101 = arith.constant 0 : index
    %94 = vector.load %arg7[%c0_100, %c0_101] : memref<4x1xf32, #tpu.memory_space<vmem>>, vector<4x1xf32>
    %95 = arith.addf %93, %94 : vector<4x1xf32>
    %cst_102 = arith.constant 0.000000e+00 : f32
    %96 = vector.broadcast %cst_102 : f32 to vector<4x1xf32>
    %97 = arith.maximumf %95, %96 : vector<4x1xf32>
    %c0_103 = arith.constant 0 : index
    %c0_104 = arith.constant 0 : index
    %98 = vector.load %arg8[%c0_103, %c0_104] : memref<4x32xf32, #tpu.memory_space<vmem>>, vector<4x32xf32>
    %99 = vector.broadcast %97 : vector<4x1xf32> to vector<4x32xf32>
    %100 = arith.mulf %98, %99 : vector<4x32xf32>
    %cst_105 = arith.constant dense<0.000000e+00> : vector<32xf32>
    %101 = vector.multi_reduction <add>, %100, %cst_105 [0] : vector<4x32xf32> to vector<32xf32>
    %102 = vector.shape_cast %101 : vector<32xf32> to vector<1x32xf32>
    %c0_106 = arith.constant 0 : index
    %c0_107 = arith.constant 0 : index
    %103 = vector.load %arg9[%c0_106, %c0_107] : memref<1x32xf32, #tpu.memory_space<vmem>>, vector<1x32xf32>
    %104 = arith.addf %102, %103 : vector<1x32xf32>
    %cst_108 = arith.constant 0.000000e+00 : f32
    %105 = vector.broadcast %cst_108 : f32 to vector<1x32xf32>
    %106 = arith.subf %105, %104 : vector<1x32xf32>
    %107 = math.exp %106 : vector<1x32xf32>
    %cst_109 = arith.constant 1.000000e+00 : f32
    %108 = vector.broadcast %cst_109 : f32 to vector<1x32xf32>
    %109 = arith.addf %108, %107 : vector<1x32xf32>
    %cst_110 = arith.constant 1.000000e+00 : f32
    %110 = vector.broadcast %cst_110 : f32 to vector<1x32xf32>
    %111 = arith.divf %110, %109 : vector<1x32xf32>
    %c0_111 = arith.constant 0 : index
    %c1_112 = arith.constant 1 : index
    %c1_113 = arith.constant 1 : index
    %c0_114 = arith.constant 0 : index
    %112 = vector.load %arg1[%c0_111, %c1_112, %c1_113, %c0_114] : memref<1x18x18x32xf32, #tpu.memory_space<vmem>>, vector<1x16x16x32xf32>
    %113 = vector.shape_cast %112 : vector<1x16x16x32xf32> to vector<16x16x32xf32>
    %114 = vector.shape_cast %113 : vector<16x16x32xf32> to vector<256x32xf32>
    %115 = vector.broadcast %111 : vector<1x32xf32> to vector<256x32xf32>
    %116 = arith.mulf %84, %115 : vector<256x32xf32>
    %117 = arith.addf %114, %116 : vector<256x32xf32>
    %c0_115 = arith.constant 0 : index
    %c0_116 = arith.constant 0 : index
    %c0_117 = arith.constant 0 : index
    %118 = vector.load %arg10[%c0_115, %c0_116, %c0_117] : memref<1x256x32xf32, #tpu.memory_space<vmem>>, vector<1x256x32xf32>
    %119 = vector.shape_cast %118 : vector<1x256x32xf32> to vector<256x32xf32>
    %120 = vector.shape_cast %117 : vector<256x32xf32> to vector<1x256x32xf32>
    tpu.vector_store %arg10[%c0_115, %c0_116, %c0_117], %120 {strides = array<i32>} : memref<1x256x32xf32, #tpu.memory_space<vmem>>, vector<1x256x32xf32>,
    return
  }
  func.func @transform_0(%arg0: i32) -> (i32, i32, i32, i32) {
    %c0_i32 = arith.constant 0 : i32
    %c0_i32_0 = arith.constant 0 : i32
    %c0_i32_1 = arith.constant 0 : i32
    %c0_i32_2 = arith.constant 0 : i32
    return %arg0, %c0_i32, %c0_i32_0, %c0_i32_1 : i32, i32, i32, i32
  }
  func.func @transform_1(%arg0: i32) -> (i32, i32, i32) {
    %c0_i32 = arith.constant 0 : i32
    %c0_i32_0 = arith.constant 0 : i32
    %c0_i32_1 = arith.constant 0 : i32
    %c0_i32_2 = arith.constant 0 : i32
    return %c0_i32, %c0_i32_0, %c0_i32_1 : i32, i32, i32
  }
  func.func @transform_2(%arg0: i32) -> (i32, i32) {
    %c0_i32 = arith.constant 0 : i32
    %c0_i32_0 = arith.constant 0 : i32
    %c0_i32_1 = arith.constant 0 : i32
    return %c0_i32, %c0_i32_0 : i32, i32
  }
  func.func @transform_3(%arg0: i32) -> (i32, i32, i32) {
    %c0_i32 = arith.constant 0 : i32
    %c0_i32_0 = arith.constant 0 : i32
    %c0_i32_1 = arith.constant 0 : i32
    %c0_i32_2 = arith.constant 0 : i32
    return %c0_i32, %c0_i32_0, %c0_i32_1 : i32, i32, i32
  }
  func.func @transform_4(%arg0: i32) -> (i32, i32) {
    %c0_i32 = arith.constant 0 : i32
    %c0_i32_0 = arith.constant 0 : i32
    %c0_i32_1 = arith.constant 0 : i32
    return %c0_i32, %c0_i32_0 : i32, i32
  }
  func.func @transform_5(%arg0: i32) -> (i32, i32) {
    %c0_i32 = arith.constant 0 : i32
    %c0_i32_0 = arith.constant 0 : i32
    %c0_i32_1 = arith.constant 0 : i32
    return %c0_i32, %c0_i32_0 : i32, i32
  }
  func.func @transform_6(%arg0: i32) -> (i32, i32) {
    %c0_i32 = arith.constant 0 : i32
    %c0_i32_0 = arith.constant 0 : i32
    %c0_i32_1 = arith.constant 0 : i32
    return %c0_i32, %c0_i32_0 : i32, i32
  }
  func.func @transform_7(%arg0: i32) -> (i32, i32) {
    %c0_i32 = arith.constant 0 : i32
    %c0_i32_0 = arith.constant 0 : i32
    %c0_i32_1 = arith.constant 0 : i32
    return %c0_i32, %c0_i32_0 : i32, i32
  }
  func.func @transform_8(%arg0: i32) -> (i32, i32) {
    %c0_i32 = arith.constant 0 : i32
    %c0_i32_0 = arith.constant 0 : i32
    %c0_i32_1 = arith.constant 0 : i32
    return %c0_i32, %c0_i32_0 : i32, i32
  }
  func.func @transform_9(%arg0: i32) -> (i32, i32, i32) {
    %c0_i32 = arith.constant 0 : i32
    %c0_i32_0 = arith.constant 0 : i32
    %c0_i32_1 = arith.constant 0 : i32
    return %arg0, %c0_i32, %c0_i32_0 : i32, i32, i32
  }
}

</mosaic_0001>

<llo_original>
// kernel: residual_block_pallas.1
$region0: #{residual_block_pallas.1}
  #allocation0 [shape = 'u32[]', space=smem, size = 0x4, offset = 0x4, fixed_abs, tag = 'smem constant byte address 0x4 - core index']
  #allocation1 [shape = 'u32[144,128]{1,0:T(1,128)}', space=vmem, size = 0x12000, scoped, tag = 'internal scratch']
  #allocation2 [shape = 'f32[18,18,32]{2,1,0:T(8,128)}', space=vmem, size = 0x36000, scoped, tag = 'scratch operand']
  %s0 = inlined_call_operand.vmem [shape: f32[2,18,18,32], index: 0, kind: input, shape index: {}]
  %s1 = inlined_call_operand.vmem [shape: f32[3,96,32], index: 1, kind: input, shape index: {}]
  %s2 = inlined_call_operand.vmem [shape: f32[1,32], index: 2, kind: input, shape index: {}]
  %s3 = inlined_call_operand.vmem [shape: f32[3,96,32], index: 3, kind: input, shape index: {}]
  %s4 = inlined_call_operand.vmem [shape: f32[1,32], index: 4, kind: input, shape index: {}]
  %s5 = inlined_call_operand.vmem [shape: f32[4,32], index: 5, kind: input, shape index: {}]
  %s6 = inlined_call_operand.vmem [shape: f32[4,1], index: 6, kind: input, shape index: {}]
  %s7 = inlined_call_operand.vmem [shape: f32[4,32], index: 7, kind: input, shape index: {}]
  %s8 = inlined_call_operand.vmem [shape: f32[1,32], index: 8, kind: input, shape index: {}]
  %s9 = inlined_call_operand.hbm [shape: f32[2,256,32], index: 9, kind: output, shape index: {}]
  %s10 = sld [smem:[#allocation0]]
  $region69: #{residual_block_pallas.1} parent=0
    _
  %s12 = ssub.s32 1, %s10
  %s13 = scalar_select 0, %s12, %s10
  $region1: #{residual_block_pallas.1} parent=0
    #allocation3 [shape = 'u8[262144]{0}', space=vmem, size = 0x40000, scoped, tag = 'output window, operand 0']
    #allocation4 [shape = 's32[2]{0}', space=sflag, size = 0x8, scoped, tag = 'scoped memory for residual_block_pallas.1']
    %14 = vsyncpa [#allocation4], 0
    %s15 = scalar_lea.sflag [#allocation4], 1
    %16 = vsyncpa %s15, 0
    loop: start=0, step=1, limit=4
    $region2: #{residual_block_pallas.1} parent=1 // loop_pre_header
      _
    $region3: #{residual_block_pallas.1} parent=1 // loop_header
      %s18 = sphi 0, %s22
      %p19 = scmp.ge.s32.totalorder %s18, 4
      %s28 = sphi 0, %s30
      %s31 = sphi 0, %s28
      %s32 = sphi 0, %s31
      %s48 = sphi 0, %s32
      %s52 = sphi 0, %s52
      %s54 = sphi 0, %s52
      %s55 = sphi 0, %s54
      %s69 = sphi 0, %s55
      %s73 = sphi 0, %s73
      %s75 = sphi 0, %s73
      %s76 = sphi 0, %s75
      %s90 = sphi 0, %s76
      %s94 = sphi 0, %s94
      %s96 = sphi 0, %s94
      %s97 = sphi 0, %s96
      %s111 = sphi 0, %s97
      %s115 = sphi 0, %s115
      %s117 = sphi 0, %s115
      %s118 = sphi 0, %s117
      %s132 = sphi 0, %s118
      %s136 = sphi 0, %s136
      %s138 = sphi 0, %s136
      %s139 = sphi 0, %s138
      %s153 = sphi 0, %s139
      %s157 = sphi 0, %s157
      %s159 = sphi 0, %s157
      %s160 = sphi 0, %s159
      %s174 = sphi 0, %s160
      %s178 = sphi 0, %s178
      %s180 = sphi 0, %s178
      %s181 = sphi 0, %s180
      %s195 = sphi 0, %s181
      %s199 = sphi 0, %s199
      %s201 = sphi 0, %s199
      %s202 = sphi 0, %s201
      %s216 = sphi 0, %s202
      %s222 = sphi 0, %s224
      %s225 = sphi 0, %s222
      %s226 = sphi 0, %s225
      %s242 = sphi 0, %s226
    $region4: #{residual_block_pallas.1} parent=1 // loop_header_branch
      %21 = sbr.rel (%p19) target = $region8
    $region5: #{residual_block_pallas.1} parent=1 // loop_body
      %s23 = ssub.s32 %s18, 1
      %s24 = ssub.s32 %s18, 2
      %s25 = sadd.s32 %s18, 1
      %s26 = ssub.s32 %s18, %s25
      %p27 = scmp.eq.s32.totalorder %s26, 0
      %s29 = sadd.s32 %s28, 1
      %s30 = scalar_select %p27, %s28, %s29
      %p33 = pneg %p27
      %p34 = scmp.eq.s32.totalorder %s18, 1
      %p35 = por %p33, %p34
      %p36 = scmp.ne.s32.totalorder %s28, %s31
      %p37 = scmp.eq.s32.totalorder %s18, 0
      %p38 = por %p36, %p37
      %p39 = scmp.ne.s32.totalorder %s28, %s31
      %p40 = scmp.eq.s32.totalorder %s23, 1
      %p41 = por %p39, %p40
      %p42 = scmp.ne.s32.totalorder %s31, %s32
      %p43 = scmp.eq.s32.totalorder %s23, 0
      %p44 = por %p42, %p43
      %p45 = scmp.ne.s32.totalorder %s31, %s32
      %p46 = scmp.eq.s32.totalorder %s24, 1
      %p47 = por %p45, %p46
      %p49 = scmp.ne.s32.totalorder %s32, %s48
      %p50 = scmp.eq.s32.totalorder %s24, 0
      %p51 = por %p49, %p50
      %s53 = sadd.s32 %s52, 1
      %p56 = scmp.eq.s32.totalorder %s18, 1
      %p57 = scmp.ne.s32.totalorder %s52, %s54
      %p58 = scmp.eq.s32.totalorder %s18, 0
      %p59 = por %p57, %p58
      %p60 = scmp.ne.s32.totalorder %s52, %s54
      %p61 = scmp.eq.s32.totalorder %s23, 1
      %p62 = por %p60, %p61
      %p63 = scmp.ne.s32.totalorder %s54, %s55
      %p64 = scmp.eq.s32.totalorder %s23, 0
      %p65 = por %p63, %p64
      %p66 = scmp.ne.s32.totalorder %s54, %s55
      %p67 = scmp.eq.s32.totalorder %s24, 1
      %p68 = por %p66, %p67
      %p70 = scmp.ne.s32.totalorder %s55, %s69
      %p71 = scmp.eq.s32.totalorder %s24, 0
      %p72 = por %p70, %p71
      %s74 = sadd.s32 %s73, 1
      %p77 = scmp.eq.s32.totalorder %s18, 1
      %p78 = scmp.ne.s32.totalorder %s73, %s75
      %p79 = scmp.eq.s32.totalorder %s18, 0
      %p80 = por %p78, %p79
      %p81 = scmp.ne.s32.totalorder %s73, %s75
      %p82 = scmp.eq.s32.totalorder %s23, 1
      %p83 = por %p81, %p82
      %p84 = scmp.ne.s32.totalorder %s75, %s76
      %p85 = scmp.eq.s32.totalorder %s23, 0
      %p86 = por %p84, %p85
      %p87 = scmp.ne.s32.totalorder %s75, %s76
      %p88 = scmp.eq.s32.totalorder %s24, 1
      %p89 = por %p87, %p88
      %p91 = scmp.ne.s32.totalorder %s76, %s90
      %p92 = scmp.eq.s32.totalorder %s24, 0
      %p93 = por %p91, %p92
      %s95 = sadd.s32 %s94, 1
      %p98 = scmp.eq.s32.totalorder %s18, 1
      %p99 = scmp.ne.s32.totalorder %s94, %s96
      %p100 = scmp.eq.s32.totalorder %s18, 0
      %p101 = por %p99, %p100
      %p102 = scmp.ne.s32.totalorder %s94, %s96
      %p103 = scmp.eq.s32.totalorder %s23, 1
      %p104 = por %p102, %p103
      %p105 = scmp.ne.s32.totalorder %s96, %s97
      %p106 = scmp.eq.s32.totalorder %s23, 0
      %p107 = por %p105, %p106
      %p108 = scmp.ne.s32.totalorder %s96, %s97
      %p109 = scmp.eq.s32.totalorder %s24, 1
      %p110 = por %p108, %p109
      %p112 = scmp.ne.s32.totalorder %s97, %s111
      %p113 = scmp.eq.s32.totalorder %s24, 0
      %p114 = por %p112, %p113
      %s116 = sadd.s32 %s115, 1
      %p119 = scmp.eq.s32.totalorder %s18, 1
      %p120 = scmp.ne.s32.totalorder %s115, %s117
      %p121 = scmp.eq.s32.totalorder %s18, 0
      %p122 = por %p120, %p121
      %p123 = scmp.ne.s32.totalorder %s115, %s117
      %p124 = scmp.eq.s32.totalorder %s23, 1
      %p125 = por %p123, %p124
      %p126 = scmp.ne.s32.totalorder %s117, %s118
      %p127 = scmp.eq.s32.totalorder %s23, 0
      %p128 = por %p126, %p127
      %p129 = scmp.ne.s32.totalorder %s117, %s118
      %p130 = scmp.eq.s32.totalorder %s24, 1
      %p131 = por %p129, %p130
      %p133 = scmp.ne.s32.totalorder %s118, %s132
      %p134 = scmp.eq.s32.totalorder %s24, 0
      %p135 = por %p133, %p134
      %s137 = sadd.s32 %s136, 1
      %p140 = scmp.eq.s32.totalorder %s18, 1
      %p141 = scmp.ne.s32.totalorder %s136, %s138
      %p142 = scmp.eq.s32.totalorder %s18, 0
      %p143 = por %p141, %p142
      %p144 = scmp.ne.s32.totalorder %s136, %s138
      %p145 = scmp.eq.s32.totalorder %s23, 1
      %p146 = por %p144, %p145
      %p147 = scmp.ne.s32.totalorder %s138, %s139
      %p148 = scmp.eq.s32.totalorder %s23, 0
      %p149 = por %p147, %p148
      %p150 = scmp.ne.s32.totalorder %s138, %s139
      %p151 = scmp.eq.s32.totalorder %s24, 1
      %p152 = por %p150, %p151
      %p154 = scmp.ne.s32.totalorder %s139, %s153
      %p155 = scmp.eq.s32.totalorder %s24, 0
      %p156 = por %p154, %p155
      %s158 = sadd.s32 %s157, 1
      %p161 = scmp.eq.s32.totalorder %s18, 1
      %p162 = scmp.ne.s32.totalorder %s157, %s159
      %p163 = scmp.eq.s32.totalorder %s18, 0
      %p164 = por %p162, %p163
      %p165 = scmp.ne.s32.totalorder %s157, %s159
      %p166 = scmp.eq.s32.totalorder %s23, 1
      %p167 = por %p165, %p166
      %p168 = scmp.ne.s32.totalorder %s159, %s160
      %p169 = scmp.eq.s32.totalorder %s23, 0
      %p170 = por %p168, %p169
      %p171 = scmp.ne.s32.totalorder %s159, %s160
      %p172 = scmp.eq.s32.totalorder %s24, 1
      %p173 = por %p171, %p172
      %p175 = scmp.ne.s32.totalorder %s160, %s174
      %p176 = scmp.eq.s32.totalorder %s24, 0
      %p177 = por %p175, %p176
      %s179 = sadd.s32 %s178, 1
      %p182 = scmp.eq.s32.totalorder %s18, 1
      %p183 = scmp.ne.s32.totalorder %s178, %s180
      %p184 = scmp.eq.s32.totalorder %s18, 0
      %p185 = por %p183, %p184
      %p186 = scmp.ne.s32.totalorder %s178, %s180
      %p187 = scmp.eq.s32.totalorder %s23, 1
      %p188 = por %p186, %p187
      %p189 = scmp.ne.s32.totalorder %s180, %s181
      %p190 = scmp.eq.s32.totalorder %s23, 0
      %p191 = por %p189, %p190
      %p192 = scmp.ne.s32.totalorder %s180, %s181
      %p193 = scmp.eq.s32.totalorder %s24, 1
      %p194 = por %p192, %p193
      %p196 = scmp.ne.s32.totalorder %s181, %s195
      %p197 = scmp.eq.s32.totalorder %s24, 0
      %p198 = por %p196, %p197
      %s200 = sadd.s32 %s199, 1
      %p203 = scmp.eq.s32.totalorder %s18, 1
      %p204 = scmp.ne.s32.totalorder %s199, %s201
      %p205 = scmp.eq.s32.totalorder %s18, 0
      %p206 = por %p204, %p205
      %p207 = scmp.ne.s32.totalorder %s199, %s201
      %p208 = scmp.eq.s32.totalorder %s23, 1
      %p209 = por %p207, %p208
      %p210 = scmp.ne.s32.totalorder %s201, %s202
      %p211 = scmp.eq.s32.totalorder %s23, 0
      %p212 = por %p210, %p211
      %p213 = scmp.ne.s32.totalorder %s201, %s202
      %p214 = scmp.eq.s32.totalorder %s24, 1
      %p215 = por %p213, %p214
      %p217 = scmp.ne.s32.totalorder %s202, %s216
      %p218 = scmp.eq.s32.totalorder %s24, 0
      %p219 = por %p217, %p218
      %s220 = ssub.s32 %s18, %s25
      %p221 = scmp.eq.s32.totalorder %s220, 0
      %s223 = sadd.s32 %s222, 1
      %s224 = scalar_select %p221, %s222, %s223
      %p227 = pneg %p221
      %p228 = scmp.eq.s32.totalorder %s18, 1
      %p229 = por %p227, %p228
      %p230 = scmp.ne.s32.totalorder %s222, %s225
      %p231 = scmp.eq.s32.totalorder %s18, 0
      %p232 = por %p230, %p231
      %p233 = scmp.ne.s32.totalorder %s222, %s225
      %p234 = scmp.eq.s32.totalorder %s23, 1
      %p235 = por %p233, %p234
      %p236 = scmp.ne.s32.totalorder %s225, %s226
      %p237 = scmp.eq.s32.totalorder %s23, 0
      %p238 = por %p236, %p237
      %p239 = scmp.ne.s32.totalorder %s225, %s226
      %p240 = scmp.eq.s32.totalorder %s24, 1
      %p241 = por %p239, %p240
      %p243 = scmp.ne.s32.totalorder %s226, %s242
      %p244 = scmp.eq.s32.totalorder %s24, 0
      %p245 = por %p243, %p244
      %p246 = scmp.le.s32.totalorder 1, %s18
      %p247 = scmp.lt.s32.totalorder %s18, 3
      %p248 = pnand %p246, %p247
      %p249 = pneg %p248
      // Predicated region
      $region9: #{residual_block_pallas.1} parent=5 // pred_check
        _
      $region10: #{residual_block_pallas.1} parent=5 // pred_check_branch
        %251 = sbr.rel (%p248) target = $region12
      $region11: #{residual_block_pallas.1} parent=5 // pred_region
        %s252 = ssub.s32 %s18, 1
        // Predicated region
        $region13: #{residual_block_pallas.1} parent=11 // pred_check
          %p253 = pneg %p65
        $region14: #{residual_block_pallas.1} parent=11 // pred_check_branch
          %255 = sbr.rel (%p253) target = $region16
        $region15: #{residual_block_pallas.1} parent=11 // pred_region
          _
        $region16: #{residual_block_pallas.1} parent=11 // pred_fallthru
          _
        // Predicated region
        $region17: #{residual_block_pallas.1} parent=11 // pred_check
          %p256 = pneg %p86
        $region18: #{residual_block_pallas.1} parent=11 // pred_check_branch
          %258 = sbr.rel (%p256) target = $region20
        $region19: #{residual_block_pallas.1} parent=11 // pred_region
          _
        $region20: #{residual_block_pallas.1} parent=11 // pred_fallthru
          _
        // Predicated region
        $region21: #{residual_block_pallas.1} parent=11 // pred_check
          %p259 = pneg %p107
        $region22: #{residual_block_pallas.1} parent=11 // pred_check_branch
          %261 = sbr.rel (%p259) target = $region24
        $region23: #{residual_block_pallas.1} parent=11 // pred_region
          _
        $region24: #{residual_block_pallas.1} parent=11 // pred_fallthru
          _
        // Predicated region
        $region25: #{residual_block_pallas.1} parent=11 // pred_check
          %p262 = pneg %p128
        $region26: #{residual_block_pallas.1} parent=11 // pred_check_branch
          %264 = sbr.rel (%p262) target = $region28
        $region27: #{residual_block_pallas.1} parent=11 // pred_region
          _
        $region28: #{residual_block_pallas.1} parent=11 // pred_fallthru
          _
        // Predicated region
        $region29: #{residual_block_pallas.1} parent=11 // pred_check
          %p265 = pneg %p149
        $region30: #{residual_block_pallas.1} parent=11 // pred_check_branch
          %267 = sbr.rel (%p265) target = $region32
        $region31: #{residual_block_pallas.1} parent=11 // pred_region
          _
        $region32: #{residual_block_pallas.1} parent=11 // pred_fallthru
          _
        // Predicated region
        $region33: #{residual_block_pallas.1} parent=11 // pred_check
          %p268 = pneg %p170
        $region34: #{residual_block_pallas.1} parent=11 // pred_check_branch
          %270 = sbr.rel (%p268) target = $region36
        $region35: #{residual_block_pallas.1} parent=11 // pred_region
          _
        $region36: #{residual_block_pallas.1} parent=11 // pred_fallthru
          _
        // Predicated region
        $region37: #{residual_block_pallas.1} parent=11 // pred_check
          %p271 = pneg %p191
        $region38: #{residual_block_pallas.1} parent=11 // pred_check_branch
          %273 = sbr.rel (%p271) target = $region40
        $region39: #{residual_block_pallas.1} parent=11 // pred_region
          _
        $region40: #{residual_block_pallas.1} parent=11 // pred_fallthru
          _
        // Predicated region
        $region41: #{residual_block_pallas.1} parent=11 // pred_check
          %p274 = pneg %p212
        $region42: #{residual_block_pallas.1} parent=11 // pred_check_branch
          %276 = sbr.rel (%p274) target = $region44
        $region43: #{residual_block_pallas.1} parent=11 // pred_region
          _
        $region44: #{residual_block_pallas.1} parent=11 // pred_fallthru
          _
      $region12: #{residual_block_pallas.1} parent=5 // pred_fallthru
        _
      %p277 = scmp.lt.s32.totalorder %s18, 2
      // Predicated region
      $region45: #{residual_block_pallas.1} parent=5 // pred_check
        %p278 = pneg %p277
      $region46: #{residual_block_pallas.1} parent=5 // pred_check_branch
        %280 = sbr.rel (%p278) target = $region48
      $region47: #{residual_block_pallas.1} parent=5 // pred_region
        // Predicated region
        $region49: #{residual_block_pallas.1} parent=47 // pred_check
          %p281 = pneg %p38
        $region50: #{residual_block_pallas.1} parent=47 // pred_check_branch
          %283 = sbr.rel (%p281) target = $region52
        $region51: #{residual_block_pallas.1} parent=47 // pred_region
          %p284 = scmp.lt.s32.totalorder %s18, 1
          %s285 = scalar_select %p284, %s18, 1
          %s286 = smul.addr %s285, 54
          %s287 = smul.addr %s286, 8
          %s288 = scalar_lea.vmem %s0, %s287
        $region52: #{residual_block_pallas.1} parent=47 // pred_fallthru
          _
      $region48: #{residual_block_pallas.1} parent=5 // pred_fallthru
        _
      %p289 = scmp.le.s32.totalorder 1, %s18
      %p290 = scmp.lt.s32.totalorder %s18, 3
      %p291 = pnand %p289, %p290
      %p292 = pneg %p291
      // Predicated region
      $region53: #{residual_block_pallas.1} parent=5 // pred_check
        _
      $region54: #{residual_block_pallas.1} parent=5 // pred_check_branch
        %294 = sbr.rel (%p291) target = $region56
      $region55: #{residual_block_pallas.1} parent=5 // pred_region
        %s295 = ssub.s32 %s18, 1
        %p296 = scmp.lt.s32.totalorder %s23, 1
        %s297 = scalar_select %p296, %s23, 1
        %s298 = smul.addr %s297, 54
        %s299 = smul.addr %s298, 8
        %s300 = scalar_lea.vmem %s0, %s299
        %p301 = pneg %p44
        %p302 = pneg %p41
        %p303 = pneg %p65
        %p304 = pneg %p62
        %p305 = pneg %p86
        %p306 = pneg %p83
        %p307 = pneg %p107
        %p308 = pneg %p104
        %p309 = pneg %p128
        %p310 = pneg %p125
        %p311 = pneg %p149
        %p312 = pneg %p146
        %p313 = pneg %p170
        %p314 = pneg %p167
        %p315 = pneg %p191
        %p316 = pneg %p188
        %p317 = pneg %p212
        %p318 = pneg %p209
        %p319 = pneg %p238
        %p320 = pneg %p235
        %s321 = sand.u32 %s225, 1
        %s322 = scalar_lea.sflag [#allocation4], %s321
        %s323 = sand.u32 %s225, 1
        %s324 = smul.addr %s323, 256
        %s325 = scalar_lea.vmem [#allocation3], %s324
        %p326 = scmp.lt.s32.totalorder %s23, 1
        %s327 = scalar_select %p326, %s23, 1
        %s328 = smul.addr %s327, 54
        %s329 = smul.addr %s328, 8
        %s330 = scalar_lea.vmem %s0, %s329
        %v331 = vld [vmem:[%s330] sm:$0xff]
        %v332 = vld [vmem:[%s330 + $0x8] sm:$0xff]
        %v333 = vld [vmem:[%s330 + $0x18] sm:$0xff]
        %v334 = vld [vmem:[%s330 + $0x20] sm:$0xff]
        %v335 = vld [vmem:[%s330 + $0x30] sm:$0xff]
        %v336 = vld [vmem:[%s330 + $0x38] sm:$0xff]
        %v337 = vld [vmem:[%s330 + $0x48] sm:$0xff]
        %v338 = vld [vmem:[%s330 + $0x50] sm:$0xff]
        %v339 = vld [vmem:[%s330 + $0x60] sm:$0xff]
        %v340 = vld [vmem:[%s330 + $0x68] sm:$0xff]
        %v341 = vld [vmem:[%s330 + $0x78] sm:$0xff]
        %v342 = vld [vmem:[%s330 + $0x80] sm:$0xff]
        %v343 = vld [vmem:[%s330 + $0x90] sm:$0xff]
        %v344 = vld [vmem:[%s330 + $0x98] sm:$0xff]
        %v345 = vld [vmem:[%s330 + $0xa8] sm:$0xff]
        %v346 = vld [vmem:[%s330 + $0xb0] sm:$0xff]
        %v347 = vld [vmem:[%s330 + $0xc0] sm:$0xff]
        %v348 = vld [vmem:[%s330 + $0xc8] sm:$0xff]
        %v349 = vld [vmem:[%s330 + $0xd8] sm:$0xff]
        %v350 = vld [vmem:[%s330 + $0xe0] sm:$0xff]
        %v351 = vld [vmem:[%s330 + $0xf0] sm:$0xff]
        %v352 = vld [vmem:[%s330 + $0xf8] sm:$0xff]
        %v353 = vld [vmem:[%s330 + $0x108] sm:$0xff]
        %v354 = vld [vmem:[%s330 + $0x110] sm:$0xff]
        %v355 = vld [vmem:[%s330 + $0x120] sm:$0xff]
        %v356 = vld [vmem:[%s330 + $0x128] sm:$0xff]
        %v357 = vld [vmem:[%s330 + $0x138] sm:$0xff]
        %v358 = vld [vmem:[%s330 + $0x140] sm:$0xff]
        %v359 = vld [vmem:[%s330 + $0x150] sm:$0xff]
        %v360 = vld [vmem:[%s330 + $0x158] sm:$0xff]
        %v361 = vld [vmem:[%s330 + $0x168] sm:$0xff]
        %v362 = vld [vmem:[%s330 + $0x170] sm:$0xff]
        %v363 = vld [vmem:[%s330 + $0x1] sm:$0xff]
        %v364 = vld [vmem:[%s330 + $0x9] sm:$0xff]
        %v365 = vld [vmem:[%s330 + $0x19] sm:$0xff]
        %v366 = vld [vmem:[%s330 + $0x21] sm:$0xff]
        %v367 = vld [vmem:[%s330 + $0x31] sm:$0xff]
        %v368 = vld [vmem:[%s330 + $0x39] sm:$0xff]
        %v369 = vld [vmem:[%s330 + $0x49] sm:$0xff]
        %v370 = vld [vmem:[%s330 + $0x51] sm:$0xff]
        %v371 = vld [vmem:[%s330 + $0x61] sm:$0xff]
        %v372 = vld [vmem:[%s330 + $0x69] sm:$0xff]
        %v373 = vld [vmem:[%s330 + $0x79] sm:$0xff]
        %v374 = vld [vmem:[%s330 + $0x81] sm:$0xff]
        %v375 = vld [vmem:[%s330 + $0x91] sm:$0xff]
        %v376 = vld [vmem:[%s330 + $0x99] sm:$0xff]
        %v377 = vld [vmem:[%s330 + $0xa9] sm:$0xff]
        %v378 = vld [vmem:[%s330 + $0xb1] sm:$0xff]
        %v379 = vld [vmem:[%s330 + $0xc1] sm:$0xff]
        %v380 = vld [vmem:[%s330 + $0xc9] sm:$0xff]
        %v381 = vld [vmem:[%s330 + $0xd9] sm:$0xff]
        %v382 = vld [vmem:[%s330 + $0xe1] sm:$0xff]
        %v383 = vld [vmem:[%s330 + $0xf1] sm:$0xff]
        %v384 = vld [vmem:[%s330 + $0xf9] sm:$0xff]
        %v385 = vld [vmem:[%s330 + $0x109] sm:$0xff]
        %v386 = vld [vmem:[%s330 + $0x111] sm:$0xff]
        %v387 = vld [vmem:[%s330 + $0x121] sm:$0xff]
        %v388 = vld [vmem:[%s330 + $0x129] sm:$0xff]
        %v389 = vld [vmem:[%s330 + $0x139] sm:$0xff]
        %v390 = vld [vmem:[%s330 + $0x141] sm:$0xff]
        %v391 = vld [vmem:[%s330 + $0x151] sm:$0xff]
        %v392 = vld [vmem:[%s330 + $0x159] sm:$0xff]
        %v393 = vld [vmem:[%s330 + $0x169] sm:$0xff]
        %v394 = vld [vmem:[%s330 + $0x171] sm:$0xff]
        %v395 = vld [vmem:[%s330 + $0x2] sm:$0xff]
        %v396 = vld [vmem:[%s330 + $0xa] sm:$0xff]
        %v397 = vld [vmem:[%s330 + $0x1a] sm:$0xff]
        %v398 = vld [vmem:[%s330 + $0x22] sm:$0xff]
        %v399 = vld [vmem:[%s330 + $0x32] sm:$0xff]
        %v400 = vld [vmem:[%s330 + $0x3a] sm:$0xff]
        %v401 = vld [vmem:[%s330 + $0x4a] sm:$0xff]
        %v402 = vld [vmem:[%s330 + $0x52] sm:$0xff]
        %v403 = vld [vmem:[%s330 + $0x62] sm:$0xff]
        %v404 = vld [vmem:[%s330 + $0x6a] sm:$0xff]
        %v405 = vld [vmem:[%s330 + $0x7a] sm:$0xff]
        %v406 = vld [vmem:[%s330 + $0x82] sm:$0xff]
        %v407 = vld [vmem:[%s330 + $0x92] sm:$0xff]
        %v408 = vld [vmem:[%s330 + $0x9a] sm:$0xff]
        %v409 = vld [vmem:[%s330 + $0xaa] sm:$0xff]
        %v410 = vld [vmem:[%s330 + $0xb2] sm:$0xff]
        %v411 = vld [vmem:[%s330 + $0xc2] sm:$0xff]
        %v412 = vld [vmem:[%s330 + $0xca] sm:$0xff]
        %v413 = vld [vmem:[%s330 + $0xda] sm:$0xff]
        %v414 = vld [vmem:[%s330 + $0xe2] sm:$0xff]
        %v415 = vld [vmem:[%s330 + $0xf2] sm:$0xff]
        %v416 = vld [vmem:[%s330 + $0xfa] sm:$0xff]
        %v417 = vld [vmem:[%s330 + $0x10a] sm:$0xff]
        %v418 = vld [vmem:[%s330 + $0x112] sm:$0xff]
        %v419 = vld [vmem:[%s330 + $0x122] sm:$0xff]
        %v420 = vld [vmem:[%s330 + $0x12a] sm:$0xff]
        %v421 = vld [vmem:[%s330 + $0x13a] sm:$0xff]
        %v422 = vld [vmem:[%s330 + $0x142] sm:$0xff]
        %v423 = vld [vmem:[%s330 + $0x152] sm:$0xff]
        %v424 = vld [vmem:[%s330 + $0x15a] sm:$0xff]
        %v425 = vld [vmem:[%s330 + $0x16a] sm:$0xff]
        %v426 = vld [vmem:[%s330 + $0x172] sm:$0xff]
        %459 = vrot.lane.b32.xlu0 %v363, 32
        %v460 = vpop.permute.xlu0 %459
        %461 = vrot.lane.b32.xlu0 %v364, 32
        %v462 = vpop.permute.xlu0 %461
        %463 = vrot.lane.b32.xlu0 %v365, 32
        %v464 = vpop.permute.xlu0 %463
        %465 = vrot.lane.b32.xlu0 %v366, 32
        %v466 = vpop.permute.xlu0 %465
        %467 = vrot.lane.b32.xlu0 %v367, 32
        %v468 = vpop.permute.xlu0 %467
        %469 = vrot.lane.b32.xlu0 %v368, 32
        %v470 = vpop.permute.xlu0 %469
        %471 = vrot.lane.b32.xlu0 %v369, 32
        %v472 = vpop.permute.xlu0 %471
        %473 = vrot.lane.b32.xlu0 %v370, 32
        %v474 = vpop.permute.xlu0 %473
        %475 = vrot.lane.b32.xlu0 %v371, 32
        %v476 = vpop.permute.xlu0 %475
        %477 = vrot.lane.b32.xlu0 %v372, 32
        %v478 = vpop.permute.xlu0 %477
        %479 = vrot.lane.b32.xlu0 %v373, 32
        %v480 = vpop.permute.xlu0 %479
        %481 = vrot.lane.b32.xlu0 %v374, 32
        %v482 = vpop.permute.xlu0 %481
        %483 = vrot.lane.b32.xlu0 %v375, 32
        %v484 = vpop.permute.xlu0 %483
        %485 = vrot.lane.b32.xlu0 %v376, 32
        %v486 = vpop.permute.xlu0 %485
        %487 = vrot.lane.b32.xlu0 %v377, 32
        %v488 = vpop.permute.xlu0 %487
        %489 = vrot.lane.b32.xlu0 %v378, 32
        %v490 = vpop.permute.xlu0 %489
        %491 = vrot.lane.b32.xlu0 %v379, 32
        %v492 = vpop.permute.xlu0 %491
        %493 = vrot.lane.b32.xlu0 %v380, 32
        %v494 = vpop.permute.xlu0 %493
        %495 = vrot.lane.b32.xlu0 %v381, 32
        %v496 = vpop.permute.xlu0 %495
        %497 = vrot.lane.b32.xlu0 %v382, 32
        %v498 = vpop.permute.xlu0 %497
        %499 = vrot.lane.b32.xlu0 %v383, 32
        %v500 = vpop.permute.xlu0 %499
        %501 = vrot.lane.b32.xlu0 %v384, 32
        %v502 = vpop.permute.xlu0 %501
        %503 = vrot.lane.b32.xlu0 %v385, 32
        %v504 = vpop.permute.xlu0 %503
        %505 = vrot.lane.b32.xlu0 %v386, 32
        %v506 = vpop.permute.xlu0 %505
        %507 = vrot.lane.b32.xlu0 %v387, 32
        %v508 = vpop.permute.xlu0 %507
        %509 = vrot.lane.b32.xlu0 %v388, 32
        %v510 = vpop.permute.xlu0 %509
        %511 = vrot.lane.b32.xlu0 %v389, 32
        %v512 = vpop.permute.xlu0 %511
        %513 = vrot.lane.b32.xlu0 %v390, 32
        %v514 = vpop.permute.xlu0 %513
        %515 = vrot.lane.b32.xlu0 %v391, 32
        %v516 = vpop.permute.xlu0 %515
        %517 = vrot.lane.b32.xlu0 %v392, 32
        %v518 = vpop.permute.xlu0 %517
        %519 = vrot.lane.b32.xlu0 %v393, 32
        %v520 = vpop.permute.xlu0 %519
        %521 = vrot.lane.b32.xlu0 %v394, 32
        %v522 = vpop.permute.xlu0 %521
        %587 = vrot.lane.b32.xlu0 %v395, 64
        %v588 = vpop.permute.xlu0 %587
        %589 = vrot.lane.b32.xlu0 %v396, 64
        %v590 = vpop.permute.xlu0 %589
        %591 = vrot.lane.b32.xlu0 %v397, 64
        %v592 = vpop.permute.xlu0 %591
        %593 = vrot.lane.b32.xlu0 %v398, 64
        %v594 = vpop.permute.xlu0 %593
        %595 = vrot.lane.b32.xlu0 %v399, 64
        %v596 = vpop.permute.xlu0 %595
        %597 = vrot.lane.b32.xlu0 %v400, 64
        %v598 = vpop.permute.xlu0 %597
        %599 = vrot.lane.b32.xlu0 %v401, 64
        %v600 = vpop.permute.xlu0 %599
        %601 = vrot.lane.b32.xlu0 %v402, 64
        %v602 = vpop.permute.xlu0 %601
        %603 = vrot.lane.b32.xlu0 %v403, 64
        %v604 = vpop.permute.xlu0 %603
        %605 = vrot.lane.b32.xlu0 %v404, 64
        %v606 = vpop.permute.xlu0 %605
        %607 = vrot.lane.b32.xlu0 %v405, 64
        %v608 = vpop.permute.xlu0 %607
        %609 = vrot.lane.b32.xlu0 %v406, 64
        %v610 = vpop.permute.xlu0 %609
        %611 = vrot.lane.b32.xlu0 %v407, 64
        %v612 = vpop.permute.xlu0 %611
        %613 = vrot.lane.b32.xlu0 %v408, 64
        %v614 = vpop.permute.xlu0 %613
        %615 = vrot.lane.b32.xlu0 %v409, 64
        %v616 = vpop.permute.xlu0 %615
        %617 = vrot.lane.b32.xlu0 %v410, 64
        %v618 = vpop.permute.xlu0 %617
        %619 = vrot.lane.b32.xlu0 %v411, 64
        %v620 = vpop.permute.xlu0 %619
        %621 = vrot.lane.b32.xlu0 %v412, 64
        %v622 = vpop.permute.xlu0 %621
        %623 = vrot.lane.b32.xlu0 %v413, 64
        %v624 = vpop.permute.xlu0 %623
        %625 = vrot.lane.b32.xlu0 %v414, 64
        %v626 = vpop.permute.xlu0 %625
        %627 = vrot.lane.b32.xlu0 %v415, 64
        %v628 = vpop.permute.xlu0 %627
        %629 = vrot.lane.b32.xlu0 %v416, 64
        %v630 = vpop.permute.xlu0 %629
        %631 = vrot.lane.b32.xlu0 %v417, 64
        %v632 = vpop.permute.xlu0 %631
        %633 = vrot.lane.b32.xlu0 %v418, 64
        %v634 = vpop.permute.xlu0 %633
        %635 = vrot.lane.b32.xlu0 %v419, 64
        %v636 = vpop.permute.xlu0 %635
        %637 = vrot.lane.b32.xlu0 %v420, 64
        %v638 = vpop.permute.xlu0 %637
        %639 = vrot.lane.b32.xlu0 %v421, 64
        %v640 = vpop.permute.xlu0 %639
        %641 = vrot.lane.b32.xlu0 %v422, 64
        %v642 = vpop.permute.xlu0 %641
        %643 = vrot.lane.b32.xlu0 %v423, 64
        %v644 = vpop.permute.xlu0 %643
        %645 = vrot.lane.b32.xlu0 %v424, 64
        %v646 = vpop.permute.xlu0 %645
        %647 = vrot.lane.b32.xlu0 %v425, 64
        %v648 = vpop.permute.xlu0 %647
        %649 = vrot.lane.b32.xlu0 %v426, 64
        %v650 = vpop.permute.xlu0 %649
        %vm683 = vcmask 261120
        %v684 = vsel %vm683, %v331, %v460
        %v685 = vsel %vm683, %v332, %v462
        %v686 = vsel %vm683, %v333, %v464
        %v687 = vsel %vm683, %v334, %v466
        %v688 = vsel %vm683, %v335, %v468
        %v689 = vsel %vm683, %v336, %v470
        %v690 = vsel %vm683, %v337, %v472
        %v691 = vsel %vm683, %v338, %v474
        %v692 = vsel %vm683, %v339, %v476
        %v693 = vsel %vm683, %v340, %v478
        %v694 = vsel %vm683, %v341, %v480
        %v695 = vsel %vm683, %v342, %v482
        %v696 = vsel %vm683, %v343, %v484
        %v697 = vsel %vm683, %v344, %v486
        %v698 = vsel %vm683, %v345, %v488
        %v699 = vsel %vm683, %v346, %v490
        %v700 = vsel %vm683, %v347, %v492
        %v701 = vsel %vm683, %v348, %v494
        %v702 = vsel %vm683, %v349, %v496
        %v703 = vsel %vm683, %v350, %v498
        %v704 = vsel %vm683, %v351, %v500
        %v705 = vsel %vm683, %v352, %v502
        %v706 = vsel %vm683, %v353, %v504
        %v707 = vsel %vm683, %v354, %v506
        %v708 = vsel %vm683, %v355, %v508
        %v709 = vsel %vm683, %v356, %v510
        %v710 = vsel %vm683, %v357, %v512
        %v711 = vsel %vm683, %v358, %v514
        %v712 = vsel %vm683, %v359, %v516
        %v713 = vsel %vm683, %v360, %v518
        %v714 = vsel %vm683, %v361, %v520
        %v715 = vsel %vm683, %v362, %v522
        %vm716 = vcmask 523264
        %v717 = vsel %vm716, %v684, %v588
        %v718 = vsel %vm716, %v685, %v590
        %v719 = vsel %vm716, %v686, %v592
        %v720 = vsel %vm716, %v687, %v594
        %v721 = vsel %vm716, %v688, %v596
        %v722 = vsel %vm716, %v689, %v598
        %v723 = vsel %vm716, %v690, %v600
        %v724 = vsel %vm716, %v691, %v602
        %v725 = vsel %vm716, %v692, %v604
        %v726 = vsel %vm716, %v693, %v606
        %v727 = vsel %vm716, %v694, %v608
        %v728 = vsel %vm716, %v695, %v610
        %v729 = vsel %vm716, %v696, %v612
        %v730 = vsel %vm716, %v697, %v614
        %v731 = vsel %vm716, %v698, %v616
        %v732 = vsel %vm716, %v699, %v618
        %v733 = vsel %vm716, %v700, %v620
        %v734 = vsel %vm716, %v701, %v622
        %v735 = vsel %vm716, %v702, %v624
        %v736 = vsel %vm716, %v703, %v626
        %v737 = vsel %vm716, %v704, %v628
        %v738 = vsel %vm716, %v705, %v630
        %v739 = vsel %vm716, %v706, %v632
        %v740 = vsel %vm716, %v707, %v634
        %v741 = vsel %vm716, %v708, %v636
        %v742 = vsel %vm716, %v709, %v638
        %v743 = vsel %vm716, %v710, %v640
        %v744 = vsel %vm716, %v711, %v642
        %v745 = vsel %vm716, %v712, %v644
        %v746 = vsel %vm716, %v713, %v646
        %v747 = vsel %vm716, %v714, %v648
        %v748 = vsel %vm716, %v715, %v650
        %v749 = vld [vmem:[%s1] sm:$0xff]
        %v750 = vld [vmem:[%s1 + $0x8] sm:$0xff]
        %v751 = vld [vmem:[%s1 + $0x10] sm:$0xff]
        %v752 = vld [vmem:[%s1 + $0x18] sm:$0xff]
        %v753 = vld [vmem:[%s1 + $0x20] sm:$0xff]
        %v754 = vld [vmem:[%s1 + $0x28] sm:$0xff]
        %v755 = vld [vmem:[%s1 + $0x30] sm:$0xff]
        %v756 = vld [vmem:[%s1 + $0x38] sm:$0xff]
        %v757 = vld [vmem:[%s1 + $0x40] sm:$0xff]
        %v758 = vld [vmem:[%s1 + $0x48] sm:$0xff]
        %v759 = vld [vmem:[%s1 + $0x50] sm:$0xff]
        %v760 = vld [vmem:[%s1 + $0x58] sm:$0xff]
        %s761 = scalar_lea.vmem %s330, 24
        %v762 = vld [vmem:[%s761] sm:$0xff]
        %v763 = vld [vmem:[%s761 + $0x8] sm:$0xff]
        %v764 = vld [vmem:[%s761 + $0x18] sm:$0xff]
        %v765 = vld [vmem:[%s761 + $0x20] sm:$0xff]
        %v766 = vld [vmem:[%s761 + $0x30] sm:$0xff]
        %v767 = vld [vmem:[%s761 + $0x38] sm:$0xff]
        %v768 = vld [vmem:[%s761 + $0x48] sm:$0xff]
        %v769 = vld [vmem:[%s761 + $0x50] sm:$0xff]
        %v770 = vld [vmem:[%s761 + $0x60] sm:$0xff]
        %v771 = vld [vmem:[%s761 + $0x68] sm:$0xff]
        %v772 = vld [vmem:[%s761 + $0x78] sm:$0xff]
        %v773 = vld [vmem:[%s761 + $0x80] sm:$0xff]
        %v774 = vld [vmem:[%s761 + $0x90] sm:$0xff]
        %v775 = vld [vmem:[%s761 + $0x98] sm:$0xff]
        %v776 = vld [vmem:[%s761 + $0xa8] sm:$0xff]
        %v777 = vld [vmem:[%s761 + $0xb0] sm:$0xff]
        %v778 = vld [vmem:[%s761 + $0xc0] sm:$0xff]
        %v779 = vld [vmem:[%s761 + $0xc8] sm:$0xff]
        %v780 = vld [vmem:[%s761 + $0xd8] sm:$0xff]
        %v781 = vld [vmem:[%s761 + $0xe0] sm:$0xff]
        %v782 = vld [vmem:[%s761 + $0xf0] sm:$0xff]
        %v783 = vld [vmem:[%s761 + $0xf8] sm:$0xff]
        %v784 = vld [vmem:[%s761 + $0x108] sm:$0xff]
        %v785 = vld [vmem:[%s761 + $0x110] sm:$0xff]
        %v786 = vld [vmem:[%s761 + $0x120] sm:$0xff]
        %v787 = vld [vmem:[%s761 + $0x128] sm:$0xff]
        %v788 = vld [vmem:[%s761 + $0x138] sm:$0xff]
        %v789 = vld [vmem:[%s761 + $0x140] sm:$0xff]
        %v790 = vld [vmem:[%s761 + $0x150] sm:$0xff]
        %v791 = vld [vmem:[%s761 + $0x158] sm:$0xff]
        %v792 = vld [vmem:[%s761 + $0x168] sm:$0xff]
        %v793 = vld [vmem:[%s761 + $0x170] sm:$0xff]
        %v794 = vld [vmem:[%s761 + $0x1] sm:$0xff]
        %v795 = vld [vmem:[%s761 + $0x9] sm:$0xff]
        %v796 = vld [vmem:[%s761 + $0x19] sm:$0xff]
        %v797 = vld [vmem:[%s761 + $0x21] sm:$0xff]
        %v798 = vld [vmem:[%s761 + $0x31] sm:$0xff]
        %v799 = vld [vmem:[%s761 + $0x39] sm:$0xff]
        %v800 = vld [vmem:[%s761 + $0x49] sm:$0xff]
        %v801 = vld [vmem:[%s761 + $0x51] sm:$0xff]
        %v802 = vld [vmem:[%s761 + $0x61] sm:$0xff]
        %v803 = vld [vmem:[%s761 + $0x69] sm:$0xff]
        %v804 = vld [vmem:[%s761 + $0x79] sm:$0xff]
        %v805 = vld [vmem:[%s761 + $0x81] sm:$0xff]
        %v806 = vld [vmem:[%s761 + $0x91] sm:$0xff]
        %v807 = vld [vmem:[%s761 + $0x99] sm:$0xff]
        %v808 = vld [vmem:[%s761 + $0xa9] sm:$0xff]
        %v809 = vld [vmem:[%s761 + $0xb1] sm:$0xff]
        %v810 = vld [vmem:[%s761 + $0xc1] sm:$0xff]
        %v811 = vld [vmem:[%s761 + $0xc9] sm:$0xff]
        %v812 = vld [vmem:[%s761 + $0xd9] sm:$0xff]
        %v813 = vld [vmem:[%s761 + $0xe1] sm:$0xff]
        %v814 = vld [vmem:[%s761 + $0xf1] sm:$0xff]
        %v815 = vld [vmem:[%s761 + $0xf9] sm:$0xff]
        %v816 = vld [vmem:[%s761 + $0x109] sm:$0xff]
        %v817 = vld [vmem:[%s761 + $0x111] sm:$0xff]
        %v818 = vld [vmem:[%s761 + $0x121] sm:$0xff]
        %v819 = vld [vmem:[%s761 + $0x129] sm:$0xff]
        %v820 = vld [vmem:[%s761 + $0x139] sm:$0xff]
        %v821 = vld [vmem:[%s761 + $0x141] sm:$0xff]
        %v822 = vld [vmem:[%s761 + $0x151] sm:$0xff]
        %v823 = vld [vmem:[%s761 + $0x159] sm:$0xff]
        %v824 = vld [vmem:[%s761 + $0x169] sm:$0xff]
        %v825 = vld [vmem:[%s761 + $0x171] sm:$0xff]
        %v826 = vld [vmem:[%s761 + $0x2] sm:$0xff]
        %v827 = vld [vmem:[%s761 + $0xa] sm:$0xff]
        %v828 = vld [vmem:[%s761 + $0x1a] sm:$0xff]
        %v829 = vld [vmem:[%s761 + $0x22] sm:$0xff]
        %v830 = vld [vmem:[%s761 + $0x32] sm:$0xff]
        %v831 = vld [vmem:[%s761 + $0x3a] sm:$0xff]
        %v832 = vld [vmem:[%s761 + $0x4a] sm:$0xff]
        %v833 = vld [vmem:[%s761 + $0x52] sm:$0xff]
        %v834 = vld [vmem:[%s761 + $0x62] sm:$0xff]
        %v835 = vld [vmem:[%s761 + $0x6a] sm:$0xff]
        %v836 = vld [vmem:[%s761 + $0x7a] sm:$0xff]
        %v837 = vld [vmem:[%s761 + $0x82] sm:$0xff]
        %v838 = vld [vmem:[%s761 + $0x92] sm:$0xff]
        %v839 = vld [vmem:[%s761 + $0x9a] sm:$0xff]
        %v840 = vld [vmem:[%s761 + $0xaa] sm:$0xff]
        %v841 = vld [vmem:[%s761 + $0xb2] sm:$0xff]
        %v842 = vld [vmem:[%s761 + $0xc2] sm:$0xff]
        %v843 = vld [vmem:[%s761 + $0xca] sm:$0xff]
        %v844 = vld [vmem:[%s761 + $0xda] sm:$0xff]
        %v845 = vld [vmem:[%s761 + $0xe2] sm:$0xff]
        %v846 = vld [vmem:[%s761 + $0xf2] sm:$0xff]
        %v847 = vld [vmem:[%s761 + $0xfa] sm:$0xff]
        %v848 = vld [vmem:[%s761 + $0x10a] sm:$0xff]
        %v849 = vld [vmem:[%s761 + $0x112] sm:$0xff]
        %v850 = vld [vmem:[%s761 + $0x122] sm:$0xff]
        %v851 = vld [vmem:[%s761 + $0x12a] sm:$0xff]
        %v852 = vld [vmem:[%s761 + $0x13a] sm:$0xff]
        %v853 = vld [vmem:[%s761 + $0x142] sm:$0xff]
        %v854 = vld [vmem:[%s761 + $0x152] sm:$0xff]
        %v855 = vld [vmem:[%s761 + $0x15a] sm:$0xff]
        %v856 = vld [vmem:[%s761 + $0x16a] sm:$0xff]
        %v857 = vld [vmem:[%s761 + $0x172] sm:$0xff]
        %890 = vrot.lane.b32.xlu0 %v794, 32
        %v891 = vpop.permute.xlu0 %890
        %892 = vrot.lane.b32.xlu0 %v795, 32
        %v893 = vpop.permute.xlu0 %892
        %894 = vrot.lane.b32.xlu0 %v796, 32
        %v895 = vpop.permute.xlu0 %894
        %896 = vrot.lane.b32.xlu0 %v797, 32
        %v897 = vpop.permute.xlu0 %896
        %898 = vrot.lane.b32.xlu0 %v798, 32
        %v899 = vpop.permute.xlu0 %898
        %900 = vrot.lane.b32.xlu0 %v799, 32
        %v901 = vpop.permute.xlu0 %900
        %902 = vrot.lane.b32.xlu0 %v800, 32
        %v903 = vpop.permute.xlu0 %902
        %904 = vrot.lane.b32.xlu0 %v801, 32
        %v905 = vpop.permute.xlu0 %904
        %906 = vrot.lane.b32.xlu0 %v802, 32
        %v907 = vpop.permute.xlu0 %906
        %908 = vrot.lane.b32.xlu0 %v803, 32
        %v909 = vpop.permute.xlu0 %908
        %910 = vrot.lane.b32.xlu0 %v804, 32
        %v911 = vpop.permute.xlu0 %910
        %912 = vrot.lane.b32.xlu0 %v805, 32
        %v913 = vpop.permute.xlu0 %912
        %914 = vrot.lane.b32.xlu0 %v806, 32
        %v915 = vpop.permute.xlu0 %914
        %916 = vrot.lane.b32.xlu0 %v807, 32
        %v917 = vpop.permute.xlu0 %916
        %918 = vrot.lane.b32.xlu0 %v808, 32
        %v919 = vpop.permute.xlu0 %918
        %920 = vrot.lane.b32.xlu0 %v809, 32
        %v921 = vpop.permute.xlu0 %920
        %922 = vrot.lane.b32.xlu0 %v810, 32
        %v923 = vpop.permute.xlu0 %922
        %924 = vrot.lane.b32.xlu0 %v811, 32
        %v925 = vpop.permute.xlu0 %924
        %926 = vrot.lane.b32.xlu0 %v812, 32
        %v927 = vpop.permute.xlu0 %926
        %928 = vrot.lane.b32.xlu0 %v813, 32
        %v929 = vpop.permute.xlu0 %928
        %930 = vrot.lane.b32.xlu0 %v814, 32
        %v931 = vpop.permute.xlu0 %930
        %932 = vrot.lane.b32.xlu0 %v815, 32
        %v933 = vpop.permute.xlu0 %932
        %934 = vrot.lane.b32.xlu0 %v816, 32
        %v935 = vpop.permute.xlu0 %934
        %936 = vrot.lane.b32.xlu0 %v817, 32
        %v937 = vpop.permute.xlu0 %936
        %938 = vrot.lane.b32.xlu0 %v818, 32
        %v939 = vpop.permute.xlu0 %938
        %940 = vrot.lane.b32.xlu0 %v819, 32
        %v941 = vpop.permute.xlu0 %940
        %942 = vrot.lane.b32.xlu0 %v820, 32
        %v943 = vpop.permute.xlu0 %942
        %944 = vrot.lane.b32.xlu0 %v821, 32
        %v945 = vpop.permute.xlu0 %944
        %946 = vrot.lane.b32.xlu0 %v822, 32
        %v947 = vpop.permute.xlu0 %946
        %948 = vrot.lane.b32.xlu0 %v823, 32
        %v949 = vpop.permute.xlu0 %948
        %950 = vrot.lane.b32.xlu0 %v824, 32
        %v951 = vpop.permute.xlu0 %950
        %952 = vrot.lane.b32.xlu0 %v825, 32
        %v953 = vpop.permute.xlu0 %952
        %1018 = vrot.lane.b32.xlu0 %v826, 64
        %v1019 = vpop.permute.xlu0 %1018
        %1020 = vrot.lane.b32.xlu0 %v827, 64
        %v1021 = vpop.permute.xlu0 %1020
        %1022 = vrot.lane.b32.xlu0 %v828, 64
        %v1023 = vpop.permute.xlu0 %1022
        %1024 = vrot.lane.b32.xlu0 %v829, 64
        %v1025 = vpop.permute.xlu0 %1024
        %1026 = vrot.lane.b32.xlu0 %v830, 64
        %v1027 = vpop.permute.xlu0 %1026
        %1028 = vrot.lane.b32.xlu0 %v831, 64
        %v1029 = vpop.permute.xlu0 %1028
        %1030 = vrot.lane.b32.xlu0 %v832, 64
        %v1031 = vpop.permute.xlu0 %1030
        %1032 = vrot.lane.b32.xlu0 %v833, 64
        %v1033 = vpop.permute.xlu0 %1032
        %1034 = vrot.lane.b32.xlu0 %v834, 64
        %v1035 = vpop.permute.xlu0 %1034
        %1036 = vrot.lane.b32.xlu0 %v835, 64
        %v1037 = vpop.permute.xlu0 %1036
        %1038 = vrot.lane.b32.xlu0 %v836, 64
        %v1039 = vpop.permute.xlu0 %1038
        %1040 = vrot.lane.b32.xlu0 %v837, 64
        %v1041 = vpop.permute.xlu0 %1040
        %1042 = vrot.lane.b32.xlu0 %v838, 64
        %v1043 = vpop.permute.xlu0 %1042
        %1044 = vrot.lane.b32.xlu0 %v839, 64
        %v1045 = vpop.permute.xlu0 %1044
        %1046 = vrot.lane.b32.xlu0 %v840, 64
        %v1047 = vpop.permute.xlu0 %1046
        %1048 = vrot.lane.b32.xlu0 %v841, 64
        %v1049 = vpop.permute.xlu0 %1048
        %1050 = vrot.lane.b32.xlu0 %v842, 64
        %v1051 = vpop.permute.xlu0 %1050
        %1052 = vrot.lane.b32.xlu0 %v843, 64
        %v1053 = vpop.permute.xlu0 %1052
        %1054 = vrot.lane.b32.xlu0 %v844, 64
        %v1055 = vpop.permute.xlu0 %1054
        %1056 = vrot.lane.b32.xlu0 %v845, 64
        %v1057 = vpop.permute.xlu0 %1056
        %1058 = vrot.lane.b32.xlu0 %v846, 64
        %v1059 = vpop.permute.xlu0 %1058
        %1060 = vrot.lane.b32.xlu0 %v847, 64
        %v1061 = vpop.permute.xlu0 %1060
        %1062 = vrot.lane.b32.xlu0 %v848, 64
        %v1063 = vpop.permute.xlu0 %1062
        %1064 = vrot.lane.b32.xlu0 %v849, 64
        %v1065 = vpop.permute.xlu0 %1064
        %1066 = vrot.lane.b32.xlu0 %v850, 64
        %v1067 = vpop.permute.xlu0 %1066
        %1068 = vrot.lane.b32.xlu0 %v851, 64
        %v1069 = vpop.permute.xlu0 %1068
        %1070 = vrot.lane.b32.xlu0 %v852, 64
        %v1071 = vpop.permute.xlu0 %1070
        %1072 = vrot.lane.b32.xlu0 %v853, 64
        %v1073 = vpop.permute.xlu0 %1072
        %1074 = vrot.lane.b32.xlu0 %v854, 64
        %v1075 = vpop.permute.xlu0 %1074
        %1076 = vrot.lane.b32.xlu0 %v855, 64
        %v1077 = vpop.permute.xlu0 %1076
        %1078 = vrot.lane.b32.xlu0 %v856, 64
        %v1079 = vpop.permute.xlu0 %1078
        %1080 = vrot.lane.b32.xlu0 %v857, 64
        %v1081 = vpop.permute.xlu0 %1080
        %v1114 = vsel %vm683, %v762, %v891
        %v1115 = vsel %vm683, %v763, %v893
        %v1116 = vsel %vm683, %v764, %v895
        %v1117 = vsel %vm683, %v765, %v897
        %v1118 = vsel %vm683, %v766, %v899
        %v1119 = vsel %vm683, %v767, %v901
        %v1120 = vsel %vm683, %v768, %v903
        %v1121 = vsel %vm683, %v769, %v905
        %v1122 = vsel %vm683, %v770, %v907
        %v1123 = vsel %vm683, %v771, %v909
        %v1124 = vsel %vm683, %v772, %v911
        %v1125 = vsel %vm683, %v773, %v913
        %v1126 = vsel %vm683, %v774, %v915
        %v1127 = vsel %vm683, %v775, %v917
        %v1128 = vsel %vm683, %v776, %v919
        %v1129 = vsel %vm683, %v777, %v921
        %v1130 = vsel %vm683, %v778, %v923
        %v1131 = vsel %vm683, %v779, %v925
        %v1132 = vsel %vm683, %v780, %v927
        %v1133 = vsel %vm683, %v781, %v929
        %v1134 = vsel %vm683, %v782, %v931
        %v1135 = vsel %vm683, %v783, %v933
        %v1136 = vsel %vm683, %v784, %v935
        %v1137 = vsel %vm683, %v785, %v937
        %v1138 = vsel %vm683, %v786, %v939
        %v1139 = vsel %vm683, %v787, %v941
        %v1140 = vsel %vm683, %v788, %v943
        %v1141 = vsel %vm683, %v789, %v945
        %v1142 = vsel %vm683, %v790, %v947
        %v1143 = vsel %vm683, %v791, %v949
        %v1144 = vsel %vm683, %v792, %v951
        %v1145 = vsel %vm683, %v793, %v953
        %v1146 = vsel %vm716, %v1114, %v1019
        %v1147 = vsel %vm716, %v1115, %v1021
        %v1148 = vsel %vm716, %v1116, %v1023
        %v1149 = vsel %vm716, %v1117, %v1025
        %v1150 = vsel %vm716, %v1118, %v1027
        %v1151 = vsel %vm716, %v1119, %v1029
        %v1152 = vsel %vm716, %v1120, %v1031
        %v1153 = vsel %vm716, %v1121, %v1033
        %v1154 = vsel %vm716, %v1122, %v1035
        %v1155 = vsel %vm716, %v1123, %v1037
        %v1156 = vsel %vm716, %v1124, %v1039
        %v1157 = vsel %vm716, %v1125, %v1041
        %v1158 = vsel %vm716, %v1126, %v1043
        %v1159 = vsel %vm716, %v1127, %v1045
        %v1160 = vsel %vm716, %v1128, %v1047
        %v1161 = vsel %vm716, %v1129, %v1049
        %v1162 = vsel %vm716, %v1130, %v1051
        %v1163 = vsel %vm716, %v1131, %v1053
        %v1164 = vsel %vm716, %v1132, %v1055
        %v1165 = vsel %vm716, %v1133, %v1057
        %v1166 = vsel %vm716, %v1134, %v1059
        %v1167 = vsel %vm716, %v1135, %v1061
        %v1168 = vsel %vm716, %v1136, %v1063
        %v1169 = vsel %vm716, %v1137, %v1065
        %v1170 = vsel %vm716, %v1138, %v1067
        %v1171 = vsel %vm716, %v1139, %v1069
        %v1172 = vsel %vm716, %v1140, %v1071
        %v1173 = vsel %vm716, %v1141, %v1073
        %v1174 = vsel %vm716, %v1142, %v1075
        %v1175 = vsel %vm716, %v1143, %v1077
        %v1176 = vsel %vm716, %v1144, %v1079
        %v1177 = vsel %vm716, %v1145, %v1081
        %s1178 = scalar_lea.vmem %s1, 96
        %v1179 = vld [vmem:[%s1178] sm:$0xff]
        %v1180 = vld [vmem:[%s1178 + $0x8] sm:$0xff]
        %v1181 = vld [vmem:[%s1178 + $0x10] sm:$0xff]
        %v1182 = vld [vmem:[%s1178 + $0x18] sm:$0xff]
        %v1183 = vld [vmem:[%s1178 + $0x20] sm:$0xff]
        %v1184 = vld [vmem:[%s1178 + $0x28] sm:$0xff]
        %v1185 = vld [vmem:[%s1178 + $0x30] sm:$0xff]
        %v1186 = vld [vmem:[%s1178 + $0x38] sm:$0xff]
        %v1187 = vld [vmem:[%s1178 + $0x40] sm:$0xff]
        %v1188 = vld [vmem:[%s1178 + $0x48] sm:$0xff]
        %v1189 = vld [vmem:[%s1178 + $0x50] sm:$0xff]
        %v1190 = vld [vmem:[%s1178 + $0x58] sm:$0xff]
        %vm1191 = vcmask 785408
        %v1193 = vsel %vm1191, %v1146, 0
        %v1196 = vsel %vm1191, %v1147, 0
        %v1199 = vsel %vm1191, %v1148, 0
        %v1202 = vsel %vm1191, %v1149, 0
        %v1205 = vsel %vm1191, %v1150, 0
        %v1208 = vsel %vm1191, %v1151, 0
        %v1211 = vsel %vm1191, %v1152, 0
        %v1214 = vsel %vm1191, %v1153, 0
        %v1217 = vsel %vm1191, %v1154, 0
        %v1220 = vsel %vm1191, %v1155, 0
        %v1223 = vsel %vm1191, %v1156, 0
        %v1226 = vsel %vm1191, %v1157, 0
        %v1229 = vsel %vm1191, %v1158, 0
        %v1232 = vsel %vm1191, %v1159, 0
        %v1235 = vsel %vm1191, %v1160, 0
        %v1238 = vsel %vm1191, %v1161, 0
        %v1241 = vsel %vm1191, %v1162, 0
        %v1244 = vsel %vm1191, %v1163, 0
        %v1247 = vsel %vm1191, %v1164, 0
        %v1250 = vsel %vm1191, %v1165, 0
        %v1253 = vsel %vm1191, %v1166, 0
        %v1256 = vsel %vm1191, %v1167, 0
        %v1259 = vsel %vm1191, %v1168, 0
        %v1262 = vsel %vm1191, %v1169, 0
        %v1265 = vsel %vm1191, %v1170, 0
        %v1268 = vsel %vm1191, %v1171, 0
        %v1271 = vsel %vm1191, %v1172, 0
        %v1274 = vsel %vm1191, %v1173, 0
        %v1277 = vsel %vm1191, %v1174, 0
        %v1280 = vsel %vm1191, %v1175, 0
        %v1283 = vsel %vm1191, %v1176, 0
        %v1286 = vsel %vm1191, %v1177, 0
        %1288 = vmatprep.subr.mxu0 0.0
        %1289 = vmatpush1.msra.mxu0 %v1179
        %1290 = vmatprep.subr.mxu0 0.0
        %1291 = vmatpush1.msra.mxu0 %v1180
        %1292 = vmatprep.subr.mxu0 0.0
        %1293 = vmatpush1.msra.mxu0 %v1181
        %1294 = vmatprep.subr.mxu0 0.0
        %1295 = vmatpush1.msra.mxu0 %v1182
        %1296 = vmatprep.subr.mxu0 0.0
        %1297 = vmatpush1.msra.mxu0 %v1183
        %1298 = vmatprep.subr.mxu0 0.0
        %1299 = vmatpush1.msra.mxu0 %v1184
        %1300 = vmatprep.subr.mxu0 0.0
        %1301 = vmatpush1.msra.mxu0 %v1185
        %1302 = vmatprep.subr.mxu0 0.0
        %1303 = vmatpush1.msra.mxu0 %v1186
        %1304 = vmatprep.subr.mxu0 0.0
        %1305 = vmatpush1.msra.mxu0 %v1187
        %1306 = vmatprep.subr.mxu0 0.0
        %1307 = vmatpush1.msra.mxu0 %v1188
        %1308 = vmatprep.subr.mxu0 0.0
        %1309 = vmatpush1.msra.mxu0 %v1189
        %1310 = vmatprep.subr.mxu0 0.0
        %1311 = vmatpush1.msra.mxu0 %v1190
        %1312 = vmatprep.subr.mxu0 0.0
        %1313 = vmatpush1.msra.mxu0 0.0
        %1314 = vmatprep.subr.mxu0 0.0
        %1315 = vmatpush1.msra.mxu0 0.0
        %1316 = vmatprep.subr.mxu0 0.0
        %1317 = vmatpush1.msra.mxu0 0.0
        %1318 = vmatprep.subr.mxu0 0.0
        %1319 = vmatpush1.msra.mxu0 0.0
        %1320 = vmatprep.subr.mxu0 0.0
        %1321 = vmatpush1.msra.mxu0 0.0
        %1322 = vmatprep.subr.mxu0 0.0
        %1323 = vmatpush1.msra.mxu0 0.0
        %1324 = vmatprep.subr.mxu0 0.0
        %1325 = vmatpush1.msra.mxu0 0.0
        %1326 = vmatprep.subr.mxu0 0.0
        %1327 = vmatpush1.msra.mxu0 0.0
        %1328 = vmatprep.subr.mxu0 0.0
        %1329 = vmatpush1.msra.mxu0 0.0
        %1330 = vmatprep.subr.mxu0 0.0
        %1331 = vmatpush1.msra.mxu0 0.0
        %1332 = vmatprep.subr.mxu0 0.0
        %1333 = vmatpush1.msra.mxu0 0.0
        %1334 = vmatprep.subr.mxu0 0.0
        %1335 = vmatpush1.msra.mxu0 0.0
        %1336 = vmatprep.subr.mxu0 0.0
        %1337 = vmatpush1.msra.mxu0 0.0
        %1338 = vmatprep.subr.mxu0 0.0
        %1339 = vmatpush1.msra.mxu0 0.0
        %1340 = vmatprep.subr.mxu0 0.0
        %1341 = vmatpush1.msra.mxu0 0.0
        %1342 = vmatprep.subr.mxu0 0.0
        %1343 = vmatpush1.msra.mxu0 0.0
        %1344 = vmatprep.subr.mxu0 0.0
        %1345 = vmatpush1.msra.mxu0 0.0
        %1346 = vmatprep.subr.mxu0 0.0
        %1347 = vmatpush1.msra.mxu0 0.0
        %1348 = vmatprep.subr.mxu0 0.0
        %1349 = vmatpush1.msra.mxu0 0.0
        %1350 = vmatprep.subr.mxu0 0.0
        %1351 = vmatpush1.msra.mxu0 0.0
        %1352 = vmatprep.mubr.f32.mxu0 0.0
        %1353 = vmatmul.mubr.f32.gmra.mrb[0].mxu0 %v1193
        %v1354 = vpop.f32.mrb[0].mxu0
        %v1355 = vadd.f32 0.0, %v1354
        %v1356 = vpop.f32.mrb[0].mxu0
        %1357 = vmatprep.mubr.f32.mxu0 0.0
        %1358 = vmatmul.mubr.f32.gmra.mrb[0].mxu0 %v1196
        %v1359 = vpop.f32.mrb[0].mxu0
        %v1360 = vadd.f32 0.0, %v1359
        %v1361 = vpop.f32.mrb[0].mxu0
        %1362 = vmatprep.mubr.f32.mxu0 0.0
        %1363 = vmatmul.mubr.f32.gmra.mrb[0].mxu0 %v1199
        %v1364 = vpop.f32.mrb[0].mxu0
        %v1365 = vadd.f32 0.0, %v1364
        %v1366 = vpop.f32.mrb[0].mxu0
        %1367 = vmatprep.mubr.f32.mxu0 0.0
        %1368 = vmatmul.mubr.f32.gmra.mrb[0].mxu0 %v1202
        %v1369 = vpop.f32.mrb[0].mxu0
        %v1370 = vadd.f32 0.0, %v1369
        %v1371 = vpop.f32.mrb[0].mxu0
        %1372 = vmatprep.mubr.f32.mxu0 0.0
        %1373 = vmatmul.mubr.f32.gmra.mrb[0].mxu0 %v1205
        %v1374 = vpop.f32.mrb[0].mxu0
        %v1375 = vadd.f32 0.0, %v1374
        %v1376 = vpop.f32.mrb[0].mxu0
        %1377 = vmatprep.mubr.f32.mxu0 0.0
        %1378 = vmatmul.mubr.f32.gmra.mrb[0].mxu0 %v1208
        %v1379 = vpop.f32.mrb[0].mxu0
        %v1380 = vadd.f32 0.0, %v1379
        %v1381 = vpop.f32.mrb[0].mxu0
        %1382 = vmatprep.mubr.f32.mxu0 0.0
        %1383 = vmatmul.mubr.f32.gmra.mrb[0].mxu0 %v1211
        %v1384 = vpop.f32.mrb[0].mxu0
        %v1385 = vadd.f32 0.0, %v1384
        %v1386 = vpop.f32.mrb[0].mxu0
        %1387 = vmatprep.mubr.f32.mxu0 0.0
        %1388 = vmatmul.mubr.f32.gmra.mrb[0].mxu0 %v1214
        %v1389 = vpop.f32.mrb[0].mxu0
        %v1390 = vadd.f32 0.0, %v1389
        %v1391 = vpop.f32.mrb[0].mxu0
        %1392 = vmatprep.mubr.f32.mxu0 0.0
        %1393 = vmatmul.mubr.f32.gmra.mrb[0].mxu0 %v1217
        %v1394 = vpop.f32.mrb[0].mxu0
        %v1395 = vadd.f32 0.0, %v1394
        %v1396 = vpop.f32.mrb[0].mxu0
        %1397 = vmatprep.mubr.f32.mxu0 0.0
        %1398 = vmatmul.mubr.f32.gmra.mrb[0].mxu0 %v1220
        %v1399 = vpop.f32.mrb[0].mxu0
        %v1400 = vadd.f32 0.0, %v1399
        %v1401 = vpop.f32.mrb[0].mxu0
        %1402 = vmatprep.mubr.f32.mxu0 0.0
        %1403 = vmatmul.mubr.f32.gmra.mrb[0].mxu0 %v1223
        %v1404 = vpop.f32.mrb[0].mxu0
        %v1405 = vadd.f32 0.0, %v1404
        %v1406 = vpop.f32.mrb[0].mxu0
        %1407 = vmatprep.mubr.f32.mxu0 0.0
        %1408 = vmatmul.mubr.f32.gmra.mrb[0].mxu0 %v1226
        %v1409 = vpop.f32.mrb[0].mxu0
        %v1410 = vadd.f32 0.0, %v1409
        %v1411 = vpop.f32.mrb[0].mxu0
        %1412 = vmatprep.mubr.f32.mxu0 0.0
        %1413 = vmatmul.mubr.f32.gmra.mrb[0].mxu0 %v1229
        %v1414 = vpop.f32.mrb[0].mxu0
        %v1415 = vadd.f32 0.0, %v1414
        %v1416 = vpop.f32.mrb[0].mxu0
        %1417 = vmatprep.mubr.f32.mxu0 0.0
        %1418 = vmatmul.mubr.f32.gmra.mrb[0].mxu0 %v1232
        %v1419 = vpop.f32.mrb[0].mxu0
        %v1420 = vadd.f32 0.0, %v1419
        %v1421 = vpop.f32.mrb[0].mxu0
        %1422 = vmatprep.mubr.f32.mxu0 0.0
        %1423 = vmatmul.mubr.f32.gmra.mrb[0].mxu0 %v1235
        %v1424 = vpop.f32.mrb[0].mxu0
        %v1425 = vadd.f32 0.0, %v1424
        %v1426 = vpop.f32.mrb[0].mxu0
        %1427 = vmatprep.mubr.f32.mxu0 0.0
        %1428 = vmatmul.mubr.f32.gmra.mrb[0].mxu0 %v1238
        %v1429 = vpop.f32.mrb[0].mxu0
        %v1430 = vadd.f32 0.0, %v1429
        %v1431 = vpop.f32.mrb[0].mxu0
        %1432 = vmatprep.mubr.f32.mxu0 0.0
        %1433 = vmatmul.mubr.f32.gmra.mrb[0].mxu0 %v1241
        %v1434 = vpop.f32.mrb[0].mxu0
        %v1435 = vadd.f32 0.0, %v1434
        %v1436 = vpop.f32.mrb[0].mxu0
        %1437 = vmatprep.mubr.f32.mxu0 0.0
        %1438 = vmatmul.mubr.f32.gmra.mrb[0].mxu0 %v1244
        %v1439 = vpop.f32.mrb[0].mxu0
        %v1440 = vadd.f32 0.0, %v1439
        %v1441 = vpop.f32.mrb[0].mxu0
        %1442 = vmatprep.mubr.f32.mxu0 0.0
        %1443 = vmatmul.mubr.f32.gmra.mrb[0].mxu0 %v1247
        %v1444 = vpop.f32.mrb[0].mxu0
        %v1445 = vadd.f32 0.0, %v1444
        %v1446 = vpop.f32.mrb[0].mxu0
        %1447 = vmatprep.mubr.f32.mxu0 0.0
        %1448 = vmatmul.mubr.f32.gmra.mrb[0].mxu0 %v1250
        %v1449 = vpop.f32.mrb[0].mxu0
        %v1450 = vadd.f32 0.0, %v1449
        %v1451 = vpop.f32.mrb[0].mxu0
        %1452 = vmatprep.mubr.f32.mxu0 0.0
        %1453 = vmatmul.mubr.f32.gmra.mrb[0].mxu0 %v1253
        %v1454 = vpop.f32.mrb[0].mxu0
        %v1455 = vadd.f32 0.0, %v1454
        %v1456 = vpop.f32.mrb[0].mxu0
        %1457 = vmatprep.mubr.f32.mxu0 0.0
        %1458 = vmatmul.mubr.f32.gmra.mrb[0].mxu0 %v1256
        %v1459 = vpop.f32.mrb[0].mxu0
        %v1460 = vadd.f32 0.0, %v1459
        %v1461 = vpop.f32.mrb[0].mxu0
        %1462 = vmatprep.mubr.f32.mxu0 0.0
        %1463 = vmatmul.mubr.f32.gmra.mrb[0].mxu0 %v1259
        %v1464 = vpop.f32.mrb[0].mxu0
        %v1465 = vadd.f32 0.0, %v1464
        %v1466 = vpop.f32.mrb[0].mxu0
        %1467 = vmatprep.mubr.f32.mxu0 0.0
        %1468 = vmatmul.mubr.f32.gmra.mrb[0].mxu0 %v1262
        %v1469 = vpop.f32.mrb[0].mxu0
        %v1470 = vadd.f32 0.0, %v1469
        %v1471 = vpop.f32.mrb[0].mxu0
        %1472 = vmatprep.mubr.f32.mxu0 0.0
        %1473 = vmatmul.mubr.f32.gmra.mrb[0].mxu0 %v1265
        %v1474 = vpop.f32.mrb[0].mxu0
        %v1475 = vadd.f32 0.0, %v1474
        %v1476 = vpop.f32.mrb[0].mxu0
        %1477 = vmatprep.mubr.f32.mxu0 0.0
        %1478 = vmatmul.mubr.f32.gmra.mrb[0].mxu0 %v1268
        %v1479 = vpop.f32.mrb[0].mxu0
        %v1480 = vadd.f32 0.0, %v1479
        %v1481 = vpop.f32.mrb[0].mxu0
        %1482 = vmatprep.mubr.f32.mxu0 0.0
        %1483 = vmatmul.mubr.f32.gmra.mrb[0].mxu0 %v1271
        %v1484 = vpop.f32.mrb[0].mxu0
        %v1485 = vadd.f32 0.0, %v1484
        %v1486 = vpop.f32.mrb[0].mxu0
        %1487 = vmatprep.mubr.f32.mxu0 0.0
        %1488 = vmatmul.mubr.f32.gmra.mrb[0].mxu0 %v1274
        %v1489 = vpop.f32.mrb[0].mxu0
        %v1490 = vadd.f32 0.0, %v1489
        %v1491 = vpop.f32.mrb[0].mxu0
        %1492 = vmatprep.mubr.f32.mxu0 0.0
        %1493 = vmatmul.mubr.f32.gmra.mrb[0].mxu0 %v1277
        %v1494 = vpop.f32.mrb[0].mxu0
        %v1495 = vadd.f32 0.0, %v1494
        %v1496 = vpop.f32.mrb[0].mxu0
        %1497 = vmatprep.mubr.f32.mxu0 0.0
        %1498 = vmatmul.mubr.f32.gmra.mrb[0].mxu0 %v1280
        %v1499 = vpop.f32.mrb[0].mxu0
        %v1500 = vadd.f32 0.0, %v1499
        %v1501 = vpop.f32.mrb[0].mxu0
        %1502 = vmatprep.mubr.f32.mxu0 0.0
        %1503 = vmatmul.mubr.f32.gmra.mrb[0].mxu0 %v1283
        %v1504 = vpop.f32.mrb[0].mxu0
        %v1505 = vadd.f32 0.0, %v1504
        %v1506 = vpop.f32.mrb[0].mxu0
        %1507 = vmatprep.mubr.f32.mxu0 0.0
        %1508 = vmatmul.mubr.f32.gmra.mrb[0].mxu0 %v1286
        %v1509 = vpop.f32.mrb[0].mxu0
        %v1510 = vadd.f32 0.0, %v1509
        %v1511 = vpop.f32.mrb[0].mxu0
        %1512 = vdwg.mxu0
        %v1514 = vsel %vm1191, %v717, 0
        %v1517 = vsel %vm1191, %v718, 0
        %v1520 = vsel %vm1191, %v719, 0
        %v1523 = vsel %vm1191, %v720, 0
        %v1526 = vsel %vm1191, %v721, 0
        %v1529 = vsel %vm1191, %v722, 0
        %v1532 = vsel %vm1191, %v723, 0
        %v1535 = vsel %vm1191, %v724, 0
        %v1538 = vsel %vm1191, %v725, 0
        %v1541 = vsel %vm1191, %v726, 0
        %v1544 = vsel %vm1191, %v727, 0
        %v1547 = vsel %vm1191, %v728, 0
        %v1550 = vsel %vm1191, %v729, 0
        %v1553 = vsel %vm1191, %v730, 0
        %v1556 = vsel %vm1191, %v731, 0
        %v1559 = vsel %vm1191, %v732, 0
        %v1562 = vsel %vm1191, %v733, 0
        %v1565 = vsel %vm1191, %v734, 0
        %v1568 = vsel %vm1191, %v735, 0
        %v1571 = vsel %vm1191, %v736, 0
        %v1574 = vsel %vm1191, %v737, 0
        %v1577 = vsel %vm1191, %v738, 0
        %v1580 = vsel %vm1191, %v739, 0
        %v1583 = vsel %vm1191, %v740, 0
        %v1586 = vsel %vm1191, %v741, 0
        %v1589 = vsel %vm1191, %v742, 0
        %v1592 = vsel %vm1191, %v743, 0
        %v1595 = vsel %vm1191, %v744, 0
        %v1598 = vsel %vm1191, %v745, 0
        %v1601 = vsel %vm1191, %v746, 0
        %v1604 = vsel %vm1191, %v747, 0
        %v1607 = vsel %vm1191, %v748, 0
        %1609 = vmatprep.subr.mxu0 0.0
        %1610 = vmatpush1.msra.mxu0 %v749
        %1611 = vmatprep.subr.mxu0 0.0
        %1612 = vmatpush1.msra.mxu0 %v750
        %1613 = vmatprep.subr.mxu0 0.0
        %1614 = vmatpush1.msra.mxu0 %v751
        %1615 = vmatprep.subr.mxu0 0.0
        %1616 = vmatpush1.msra.mxu0 %v752
        %1617 = vmatprep.subr.mxu0 0.0
        %1618 = vmatpush1.msra.mxu0 %v753
        %1619 = vmatprep.subr.mxu0 0.0
        %1620 = vmatpush1.msra.mxu0 %v754
        %1621 = vmatprep.subr.mxu0 0.0
        %1622 = vmatpush1.msra.mxu0 %v755
        %1623 = vmatprep.subr.mxu0 0.0
        %1624 = vmatpush1.msra.mxu0 %v756
        %1625 = vmatprep.subr.mxu0 0.0
        %1626 = vmatpush1.msra.mxu0 %v757
        %1627 = vmatprep.subr.mxu0 0.0
        %1628 = vmatpush1.msra.mxu0 %v758
        %1629 = vmatprep.subr.mxu0 0.0
        %1630 = vmatpush1.msra.mxu0 %v759
        %1631 = vmatprep.subr.mxu0 0.0
        %1632 = vmatpush1.msra.mxu0 %v760
        %1633 = vmatprep.subr.mxu0 0.0
        %1634 = vmatpush1.msra.mxu0 0.0
        %1635 = vmatprep.subr.mxu0 0.0
        %1636 = vmatpush1.msra.mxu0 0.0
        %1637 = vmatprep.subr.mxu0 0.0
        %1638 = vmatpush1.msra.mxu0 0.0
        %1639 = vmatprep.subr.mxu0 0.0
        %1640 = vmatpush1.msra.mxu0 0.0
        %1641 = vmatprep.subr.mxu0 0.0
        %1642 = vmatpush1.msra.mxu0 0.0
        %1643 = vmatprep.subr.mxu0 0.0
        %1644 = vmatpush1.msra.mxu0 0.0
        %1645 = vmatprep.subr.mxu0 0.0
        %1646 = vmatpush1.msra.mxu0 0.0
        %1647 = vmatprep.subr.mxu0 0.0
        %1648 = vmatpush1.msra.mxu0 0.0
        %1649 = vmatprep.subr.mxu0 0.0
        %1650 = vmatpush1.msra.mxu0 0.0
        %1651 = vmatprep.subr.mxu0 0.0
        %1652 = vmatpush1.msra.mxu0 0.0
        %1653 = vmatprep.subr.mxu0 0.0
        %1654 = vmatpush1.msra.mxu0 0.0
        %1655 = vmatprep.subr.mxu0 0.0
        %1656 = vmatpush1.msra.mxu0 0.0
        %1657 = vmatprep.subr.mxu0 0.0
        %1658 = vmatpush1.msra.mxu0 0.0
        %1659 = vmatprep.subr.mxu0 0.0
        %1660 = vmatpush1.msra.mxu0 0.0
        %1661 = vmatprep.subr.mxu0 0.0
        %1662 = vmatpush1.msra.mxu0 0.0
        %1663 = vmatprep.subr.mxu0 0.0
        %1664 = vmatpush1.msra.mxu0 0.0
        %1665 = vmatprep.subr.mxu0 0.0
        %1666 = vmatpush1.msra.mxu0 0.0
        %1667 = vmatprep.subr.mxu0 0.0
        %1668 = vmatpush1.msra.mxu0 0.0
        %1669 = vmatprep.subr.mxu0 0.0
        %1670 = vmatpush1.msra.mxu0 0.0
        %1671 = vmatprep.subr.mxu0 0.0
        %1672 = vmatpush1.msra.mxu0 0.0
        %1673 = vmatprep.mubr.f32.mxu0 0.0
        %1674 = vmatmul.mubr.f32.gmra.mrb[0].mxu0 %v1514
        %v1675 = vpop.f32.mrb[0].mxu0
        %v1676 = vadd.f32 %v1355, %v1675
        %v1677 = vpop.f32.mrb[0].mxu0
        %1678 = vmatprep.mubr.f32.mxu0 0.0
        %1679 = vmatmul.mubr.f32.gmra.mrb[0].mxu0 %v1517
        %v1680 = vpop.f32.mrb[0].mxu0
        %v1681 = vadd.f32 %v1360, %v1680
        %v1682 = vpop.f32.mrb[0].mxu0
        %1683 = vmatprep.mubr.f32.mxu0 0.0
        %1684 = vmatmul.mubr.f32.gmra.mrb[0].mxu0 %v1520
        %v1685 = vpop.f32.mrb[0].mxu0
        %v1686 = vadd.f32 %v1365, %v1685
        %v1687 = vpop.f32.mrb[0].mxu0
        %1688 = vmatprep.mubr.f32.mxu0 0.0
        %1689 = vmatmul.mubr.f32.gmra.mrb[0].mxu0 %v1523
        %v1690 = vpop.f32.mrb[0].mxu0
        %v1691 = vadd.f32 %v1370, %v1690
        %v1692 = vpop.f32.mrb[0].mxu0
        %1693 = vmatprep.mubr.f32.mxu0 0.0
        %1694 = vmatmul.mubr.f32.gmra.mrb[0].mxu0 %v1526
        %v1695 = vpop.f32.mrb[0].mxu0
        %v1696 = vadd.f32 %v1375, %v1695
        %v1697 = vpop.f32.mrb[0].mxu0
        %1698 = vmatprep.mubr.f32.mxu0 0.0
        %1699 = vmatmul.mubr.f32.gmra.mrb[0].mxu0 %v1529
        %v1700 = vpop.f32.mrb[0].mxu0
        %v1701 = vadd.f32 %v1380, %v1700
        %v1702 = vpop.f32.mrb[0].mxu0
        %1703 = vmatprep.mubr.f32.mxu0 0.0
        %1704 = vmatmul.mubr.f32.gmra.mrb[0].mxu0 %v1532
        %v1705 = vpop.f32.mrb[0].mxu0
        %v1706 = vadd.f32 %v1385, %v1705
        %v1707 = vpop.f32.mrb[0].mxu0
        %1708 = vmatprep.mubr.f32.mxu0 0.0
        %1709 = vmatmul.mubr.f32.gmra.mrb[0].mxu0 %v1535
        %v1710 = vpop.f32.mrb[0].mxu0
        %v1711 = vadd.f32 %v1390, %v1710
        %v1712 = vpop.f32.mrb[0].mxu0
        %1713 = vmatprep.mubr.f32.mxu0 0.0
        %1714 = vmatmul.mubr.f32.gmra.mrb[0].mxu0 %v1538
        %v1715 = vpop.f32.mrb[0].mxu0
        %v1716 = vadd.f32 %v1395, %v1715
        %v1717 = vpop.f32.mrb[0].mxu0
        %1718 = vmatprep.mubr.f32.mxu0 0.0
        %1719 = vmatmul.mubr.f32.gmra.mrb[0].mxu0 %v1541
        %v1720 = vpop.f32.mrb[0].mxu0
        %v1721 = vadd.f32 %v1400, %v1720
        %v1722 = vpop.f32.mrb[0].mxu0
        %1723 = vmatprep.mubr.f32.mxu0 0.0
        %1724 = vmatmul.mubr.f32.gmra.mrb[0].mxu0 %v1544
        %v1725 = vpop.f32.mrb[0].mxu0
        %v1726 = vadd.f32 %v1405, %v1725
        %v1727 = vpop.f32.mrb[0].mxu0
        %1728 = vmatprep.mubr.f32.mxu0 0.0
        %1729 = vmatmul.mubr.f32.gmra.mrb[0].mxu0 %v1547
        %v1730 = vpop.f32.mrb[0].mxu0
        %v1731 = vadd.f32 %v1410, %v1730
        %v1732 = vpop.f32.mrb[0].mxu0
        %1733 = vmatprep.mubr.f32.mxu0 0.0
        %1734 = vmatmul.mubr.f32.gmra.mrb[0].mxu0 %v1550
        %v1735 = vpop.f32.mrb[0].mxu0
        %v1736 = vadd.f32 %v1415, %v1735
        %v1737 = vpop.f32.mrb[0].mxu0
        %1738 = vmatprep.mubr.f32.mxu0 0.0
        %1739 = vmatmul.mubr.f32.gmra.mrb[0].mxu0 %v1553
        %v1740 = vpop.f32.mrb[0].mxu0
        %v1741 = vadd.f32 %v1420, %v1740
        %v1742 = vpop.f32.mrb[0].mxu0
        %1743 = vmatprep.mubr.f32.mxu0 0.0
        %1744 = vmatmul.mubr.f32.gmra.mrb[0].mxu0 %v1556
        %v1745 = vpop.f32.mrb[0].mxu0
        %v1746 = vadd.f32 %v1425, %v1745
        %v1747 = vpop.f32.mrb[0].mxu0
        %1748 = vmatprep.mubr.f32.mxu0 0.0
        %1749 = vmatmul.mubr.f32.gmra.mrb[0].mxu0 %v1559
        %v1750 = vpop.f32.mrb[0].mxu0
        %v1751 = vadd.f32 %v1430, %v1750
        %v1752 = vpop.f32.mrb[0].mxu0
        %1753 = vmatprep.mubr.f32.mxu0 0.0
        %1754 = vmatmul.mubr.f32.gmra.mrb[0].mxu0 %v1562
        %v1755 = vpop.f32.mrb[0].mxu0
        %v1756 = vadd.f32 %v1435, %v1755
        %v1757 = vpop.f32.mrb[0].mxu0
        %1758 = vmatprep.mubr.f32.mxu0 0.0
        %1759 = vmatmul.mubr.f32.gmra.mrb[0].mxu0 %v1565
        %v1760 = vpop.f32.mrb[0].mxu0
        %v1761 = vadd.f32 %v1440, %v1760
        %v1762 = vpop.f32.mrb[0].mxu0
        %1763 = vmatprep.mubr.f32.mxu0 0.0
        %1764 = vmatmul.mubr.f32.gmra.mrb[0].mxu0 %v1568
        %v1765 = vpop.f32.mrb[0].mxu0
        %v1766 = vadd.f32 %v1445, %v1765
        %v1767 = vpop.f32.mrb[0].mxu0
        %1768 = vmatprep.mubr.f32.mxu0 0.0
        %1769 = vmatmul.mubr.f32.gmra.mrb[0].mxu0 %v1571
        %v1770 = vpop.f32.mrb[0].mxu0
        %v1771 = vadd.f32 %v1450, %v1770
        %v1772 = vpop.f32.mrb[0].mxu0
        %1773 = vmatprep.mubr.f32.mxu0 0.0
        %1774 = vmatmul.mubr.f32.gmra.mrb[0].mxu0 %v1574
        %v1775 = vpop.f32.mrb[0].mxu0
        %v1776 = vadd.f32 %v1455, %v1775
        %v1777 = vpop.f32.mrb[0].mxu0
        %1778 = vmatprep.mubr.f32.mxu0 0.0
        %1779 = vmatmul.mubr.f32.gmra.mrb[0].mxu0 %v1577
        %v1780 = vpop.f32.mrb[0].mxu0
        %v1781 = vadd.f32 %v1460, %v1780
        %v1782 = vpop.f32.mrb[0].mxu0
        %1783 = vmatprep.mubr.f32.mxu0 0.0
        %1784 = vmatmul.mubr.f32.gmra.mrb[0].mxu0 %v1580
        %v1785 = vpop.f32.mrb[0].mxu0
        %v1786 = vadd.f32 %v1465, %v1785
        %v1787 = vpop.f32.mrb[0].mxu0
        %1788 = vmatprep.mubr.f32.mxu0 0.0
        %1789 = vmatmul.mubr.f32.gmra.mrb[0].mxu0 %v1583
        %v1790 = vpop.f32.mrb[0].mxu0
        %v1791 = vadd.f32 %v1470, %v1790
        %v1792 = vpop.f32.mrb[0].mxu0
        %1793 = vmatprep.mubr.f32.mxu0 0.0
        %1794 = vmatmul.mubr.f32.gmra.mrb[0].mxu0 %v1586
        %v1795 = vpop.f32.mrb[0].mxu0
        %v1796 = vadd.f32 %v1475, %v1795
        %v1797 = vpop.f32.mrb[0].mxu0
        %1798 = vmatprep.mubr.f32.mxu0 0.0
        %1799 = vmatmul.mubr.f32.gmra.mrb[0].mxu0 %v1589
        %v1800 = vpop.f32.mrb[0].mxu0
        %v1801 = vadd.f32 %v1480, %v1800
        %v1802 = vpop.f32.mrb[0].mxu0
        %1803 = vmatprep.mubr.f32.mxu0 0.0
        %1804 = vmatmul.mubr.f32.gmra.mrb[0].mxu0 %v1592
        %v1805 = vpop.f32.mrb[0].mxu0
        %v1806 = vadd.f32 %v1485, %v1805
        %v1807 = vpop.f32.mrb[0].mxu0
        %1808 = vmatprep.mubr.f32.mxu0 0.0
        %1809 = vmatmul.mubr.f32.gmra.mrb[0].mxu0 %v1595
        %v1810 = vpop.f32.mrb[0].mxu0
        %v1811 = vadd.f32 %v1490, %v1810
        %v1812 = vpop.f32.mrb[0].mxu0
        %1813 = vmatprep.mubr.f32.mxu0 0.0
        %1814 = vmatmul.mubr.f32.gmra.mrb[0].mxu0 %v1598
        %v1815 = vpop.f32.mrb[0].mxu0
        %v1816 = vadd.f32 %v1495, %v1815
        %v1817 = vpop.f32.mrb[0].mxu0
        %1818 = vmatprep.mubr.f32.mxu0 0.0
        %1819 = vmatmul.mubr.f32.gmra.mrb[0].mxu0 %v1601
        %v1820 = vpop.f32.mrb[0].mxu0
        %v1821 = vadd.f32 %v1500, %v1820
        %v1822 = vpop.f32.mrb[0].mxu0
        %1823 = vmatprep.mubr.f32.mxu0 0.0
        %1824 = vmatmul.mubr.f32.gmra.mrb[0].mxu0 %v1604
        %v1825 = vpop.f32.mrb[0].mxu0
        %v1826 = vadd.f32 %v1505, %v1825
        %v1827 = vpop.f32.mrb[0].mxu0
        %1828 = vmatprep.mubr.f32.mxu0 0.0
        %1829 = vmatmul.mubr.f32.gmra.mrb[0].mxu0 %v1607
        %v1830 = vpop.f32.mrb[0].mxu0
        %v1831 = vadd.f32 %v1510, %v1830
        %v1832 = vpop.f32.mrb[0].mxu0
        %1833 = vdwg.mxu0
        %s1834 = scalar_lea.vmem %s330, 48
        %v1835 = vld [vmem:[%s1834] sm:$0xff]
        %v1836 = vld [vmem:[%s1834 + $0x8] sm:$0xff]
        %v1837 = vld [vmem:[%s1834 + $0x18] sm:$0xff]
        %v1838 = vld [vmem:[%s1834 + $0x20] sm:$0xff]
        %v1839 = vld [vmem:[%s1834 + $0x30] sm:$0xff]
        %v1840 = vld [vmem:[%s1834 + $0x38] sm:$0xff]
        %v1841 = vld [vmem:[%s1834 + $0x48] sm:$0xff]
        %v1842 = vld [vmem:[%s1834 + $0x50] sm:$0xff]
        %v1843 = vld [vmem:[%s1834 + $0x60] sm:$0xff]
        %v1844 = vld [vmem:[%s1834 + $0x68] sm:$0xff]
        %v1845 = vld [vmem:[%s1834 + $0x78] sm:$0xff]
        %v1846 = vld [vmem:[%s1834 + $0x80] sm:$0xff]
        %v1847 = vld [vmem:[%s1834 + $0x90] sm:$0xff]
        %v1848 = vld [vmem:[%s1834 + $0x98] sm:$0xff]
        %v1849 = vld [vmem:[%s1834 + $0xa8] sm:$0xff]
        %v1850 = vld [vmem:[%s1834 + $0xb0] sm:$0xff]
        %v1851 = vld [vmem:[%s1834 + $0xc0] sm:$0xff]
        %v1852 = vld [vmem:[%s1834 + $0xc8] sm:$0xff]
        %v1853 = vld [vmem:[%s1834 + $0xd8] sm:$0xff]
        %v1854 = vld [vmem:[%s1834 + $0xe0] sm:$0xff]
        %v1855 = vld [vmem:[%s1834 + $0xf0] sm:$0xff]
        %v1856 = vld [vmem:[%s1834 + $0xf8] sm:$0xff]
        %v1857 = vld [vmem:[%s1834 + $0x108] sm:$0xff]
        %v1858 = vld [vmem:[%s1834 + $0x110] sm:$0xff]
        %v1859 = vld [vmem:[%s1834 + $0x120] sm:$0xff]
        %v1860 = vld [vmem:[%s1834 + $0x128] sm:$0xff]
        %v1861 = vld [vmem:[%s1834 + $0x138] sm:$0xff]
        %v1862 = vld [vmem:[%s1834 + $0x140] sm:$0xff]
        %v1863 = vld [vmem:[%s1834 + $0x150] sm:$0xff]
        %v1864 = vld [vmem:[%s1834 + $0x158] sm:$0xff]
        %v1865 = vld [vmem:[%s1834 + $0x168] sm:$0xff]
        %v1866 = vld [vmem:[%s1834 + $0x170] sm:$0xff]
        %v1867 = vld [vmem:[%s1834 + $0x1] sm:$0xff]
        %v1868 = vld [vmem:[%s1834 + $0x9] sm:$0xff]
        %v1869 = vld [vmem:[%s1834 + $0x19] sm:$0xff]
        %v1870 = vld [vmem:[%s1834 + $0x21] sm:$0xff]
        %v1871 = vld [vmem:[%s1834 + $0x31] sm:$0xff]
        %v1872 = vld [vmem:[%s1834 + $0x39] sm:$0xff]
        %v1873 = vld [vmem:[%s1834 + $0x49] sm:$0xff]
        %v1874 = vld [vmem:[%s1834 + $0x51] sm:$0xff]
        %v1875 = vld [vmem:[%s1834 + $0x61] sm:$0xff]
        %v1876 = vld [vmem:[%s1834 + $0x69] sm:$0xff]
        %v1877 = vld [vmem:[%s1834 + $0x79] sm:$0xff]
        %v1878 = vld [vmem:[%s1834 + $0x81] sm:$0xff]
        %v1879 = vld [vmem:[%s1834 + $0x91] sm:$0xff]
        %v1880 = vld [vmem:[%s1834 + $0x99] sm:$0xff]
        %v1881 = vld [vmem:[%s1834 + $0xa9] sm:$0xff]
        %v1882 = vld [vmem:[%s1834 + $0xb1] sm:$0xff]
        %v1883 = vld [vmem:[%s1834 + $0xc1] sm:$0xff]
        %v1884 = vld [vmem:[%s1834 + $0xc9] sm:$0xff]
        %v1885 = vld [vmem:[%s1834 + $0xd9] sm:$0xff]
        %v1886 = vld [vmem:[%s1834 + $0xe1] sm:$0xff]
        %v1887 = vld [vmem:[%s1834 + $0xf1] sm:$0xff]
        %v1888 = vld [vmem:[%s1834 + $0xf9] sm:$0xff]
        %v1889 = vld [vmem:[%s1834 + $0x109] sm:$0xff]
        %v1890 = vld [vmem:[%s1834 + $0x111] sm:$0xff]
        %v1891 = vld [vmem:[%s1834 + $0x121] sm:$0xff]
        %v1892 = vld [vmem:[%s1834 + $0x129] sm:$0xff]
        %v1893 = vld [vmem:[%s1834 + $0x139] sm:$0xff]
        %v1894 = vld [vmem:[%s1834 + $0x141] sm:$0xff]
        %v1895 = vld [vmem:[%s1834 + $0x151] sm:$0xff]
        %v1896 = vld [vmem:[%s1834 + $0x159] sm:$0xff]
        %v1897 = vld [vmem:[%s1834 + $0x169] sm:$0xff]
        %v1898 = vld [vmem:[%s1834 + $0x171] sm:$0xff]
        %v1899 = vld [vmem:[%s1834 + $0x2] sm:$0xff]
        %v1900 = vld [vmem:[%s1834 + $0xa] sm:$0xff]
        %v1901 = vld [vmem:[%s1834 + $0x1a] sm:$0xff]
        %v1902 = vld [vmem:[%s1834 + $0x22] sm:$0xff]
        %v1903 = vld [vmem:[%s1834 + $0x32] sm:$0xff]
        %v1904 = vld [vmem:[%s1834 + $0x3a] sm:$0xff]
        %v1905 = vld [vmem:[%s1834 + $0x4a] sm:$0xff]
        %v1906 = vld [vmem:[%s1834 + $0x52] sm:$0xff]
        %v1907 = vld [vmem:[%s1834 + $0x62] sm:$0xff]
        %v1908 = vld [vmem:[%s1834 + $0x6a] sm:$0xff]
        %v1909 = vld [vmem:[%s1834 + $0x7a] sm:$0xff]
        %v1910 = vld [vmem:[%s1834 + $0x82] sm:$0xff]
        %v1911 = vld [vmem:[%s1834 + $0x92] sm:$0xff]
        %v1912 = vld [vmem:[%s1834 + $0x9a] sm:$0xff]
        %v1913 = vld [vmem:[%s1834 + $0xaa] sm:$0xff]
        %v1914 = vld [vmem:[%s1834 + $0xb2] sm:$0xff]
        %v1915 = vld [vmem:[%s1834 + $0xc2] sm:$0xff]
        %v1916 = vld [vmem:[%s1834 + $0xca] sm:$0xff]
        %v1917 = vld [vmem:[%s1834 + $0xda] sm:$0xff]
        %v1918 = vld [vmem:[%s1834 + $0xe2] sm:$0xff]
        %v1919 = vld [vmem:[%s1834 + $0xf2] sm:$0xff]
        %v1920 = vld [vmem:[%s1834 + $0xfa] sm:$0xff]
        %v1921 = vld [vmem:[%s1834 + $0x10a] sm:$0xff]
        %v1922 = vld [vmem:[%s1834 + $0x112] sm:$0xff]
        %v1923 = vld [vmem:[%s1834 + $0x122] sm:$0xff]
        %v1924 = vld [vmem:[%s1834 + $0x12a] sm:$0xff]
        %v1925 = vld [vmem:[%s1834 + $0x13a] sm:$0xff]
        %v1926 = vld [vmem:[%s1834 + $0x142] sm:$0xff]
        %v1927 = vld [vmem:[%s1834 + $0x152] sm:$0xff]
        %v1928 = vld [vmem:[%s1834 + $0x15a] sm:$0xff]
        %v1929 = vld [vmem:[%s1834 + $0x16a] sm:$0xff]
        %v1930 = vld [vmem:[%s1834 + $0x172] sm:$0xff]
        %1963 = vrot.lane.b32.xlu0 %v1867, 32
        %v1964 = vpop.permute.xlu0 %1963
        %1965 = vrot.lane.b32.xlu0 %v1868, 32
        %v1966 = vpop.permute.xlu0 %1965
        %1967 = vrot.lane.b32.xlu0 %v1869, 32
        %v1968 = vpop.permute.xlu0 %1967
        %1969 = vrot.lane.b32.xlu0 %v1870, 32
        %v1970 = vpop.permute.xlu0 %1969
        %1971 = vrot.lane.b32.xlu0 %v1871, 32
        %v1972 = vpop.permute.xlu0 %1971
        %1973 = vrot.lane.b32.xlu0 %v1872, 32
        %v1974 = vpop.permute.xlu0 %1973
        %1975 = vrot.lane.b32.xlu0 %v1873, 32
        %v1976 = vpop.permute.xlu0 %1975
        %1977 = vrot.lane.b32.xlu0 %v1874, 32
        %v1978 = vpop.permute.xlu0 %1977
        %1979 = vrot.lane.b32.xlu0 %v1875, 32
        %v1980 = vpop.permute.xlu0 %1979
        %1981 = vrot.lane.b32.xlu0 %v1876, 32
        %v1982 = vpop.permute.xlu0 %1981
        %1983 = vrot.lane.b32.xlu0 %v1877, 32
        %v1984 = vpop.permute.xlu0 %1983
        %1985 = vrot.lane.b32.xlu0 %v1878, 32
        %v1986 = vpop.permute.xlu0 %1985
        %1987 = vrot.lane.b32.xlu0 %v1879, 32
        %v1988 = vpop.permute.xlu0 %1987
        %1989 = vrot.lane.b32.xlu0 %v1880, 32
        %v1990 = vpop.permute.xlu0 %1989
        %1991 = vrot.lane.b32.xlu0 %v1881, 32
        %v1992 = vpop.permute.xlu0 %1991
        %1993 = vrot.lane.b32.xlu0 %v1882, 32
        %v1994 = vpop.permute.xlu0 %1993
        %1995 = vrot.lane.b32.xlu0 %v1883, 32
        %v1996 = vpop.permute.xlu0 %1995
        %1997 = vrot.lane.b32.xlu0 %v1884, 32
        %v1998 = vpop.permute.xlu0 %1997
        %1999 = vrot.lane.b32.xlu0 %v1885, 32
        %v2000 = vpop.permute.xlu0 %1999
        %2001 = vrot.lane.b32.xlu0 %v1886, 32
        %v2002 = vpop.permute.xlu0 %2001
        %2003 = vrot.lane.b32.xlu0 %v1887, 32
        %v2004 = vpop.permute.xlu0 %2003
        %2005 = vrot.lane.b32.xlu0 %v1888, 32
        %v2006 = vpop.permute.xlu0 %2005
        %2007 = vrot.lane.b32.xlu0 %v1889, 32
        %v2008 = vpop.permute.xlu0 %2007
        %2009 = vrot.lane.b32.xlu0 %v1890, 32
        %v2010 = vpop.permute.xlu0 %2009
        %2011 = vrot.lane.b32.xlu0 %v1891, 32
        %v2012 = vpop.permute.xlu0 %2011
        %2013 = vrot.lane.b32.xlu0 %v1892, 32
        %v2014 = vpop.permute.xlu0 %2013
        %2015 = vrot.lane.b32.xlu0 %v1893, 32
        %v2016 = vpop.permute.xlu0 %2015
        %2017 = vrot.lane.b32.xlu0 %v1894, 32
        %v2018 = vpop.permute.xlu0 %2017
        %2019 = vrot.lane.b32.xlu0 %v1895, 32
        %v2020 = vpop.permute.xlu0 %2019
        %2021 = vrot.lane.b32.xlu0 %v1896, 32
        %v2022 = vpop.permute.xlu0 %2021
        %2023 = vrot.lane.b32.xlu0 %v1897, 32
        %v2024 = vpop.permute.xlu0 %2023
        %2025 = vrot.lane.b32.xlu0 %v1898, 32
        %v2026 = vpop.permute.xlu0 %2025
        %2091 = vrot.lane.b32.xlu0 %v1899, 64
        %v2092 = vpop.permute.xlu0 %2091
        %2093 = vrot.lane.b32.xlu0 %v1900, 64
        %v2094 = vpop.permute.xlu0 %2093
        %2095 = vrot.lane.b32.xlu0 %v1901, 64
        %v2096 = vpop.permute.xlu0 %2095
        %2097 = vrot.lane.b32.xlu0 %v1902, 64
        %v2098 = vpop.permute.xlu0 %2097
        %2099 = vrot.lane.b32.xlu0 %v1903, 64
        %v2100 = vpop.permute.xlu0 %2099
        %2101 = vrot.lane.b32.xlu0 %v1904, 64
        %v2102 = vpop.permute.xlu0 %2101
        %2103 = vrot.lane.b32.xlu0 %v1905, 64
        %v2104 = vpop.permute.xlu0 %2103
        %2105 = vrot.lane.b32.xlu0 %v1906, 64
        %v2106 = vpop.permute.xlu0 %2105
        %2107 = vrot.lane.b32.xlu0 %v1907, 64
        %v2108 = vpop.permute.xlu0 %2107
        %2109 = vrot.lane.b32.xlu0 %v1908, 64
        %v2110 = vpop.permute.xlu0 %2109
        %2111 = vrot.lane.b32.xlu0 %v1909, 64
        %v2112 = vpop.permute.xlu0 %2111
        %2113 = vrot.lane.b32.xlu0 %v1910, 64
        %v2114 = vpop.permute.xlu0 %2113
        %2115 = vrot.lane.b32.xlu0 %v1911, 64
        %v2116 = vpop.permute.xlu0 %2115
        %2117 = vrot.lane.b32.xlu0 %v1912, 64
        %v2118 = vpop.permute.xlu0 %2117
        %2119 = vrot.lane.b32.xlu0 %v1913, 64
        %v2120 = vpop.permute.xlu0 %2119
        %2121 = vrot.lane.b32.xlu0 %v1914, 64
        %v2122 = vpop.permute.xlu0 %2121
        %2123 = vrot.lane.b32.xlu0 %v1915, 64
        %v2124 = vpop.permute.xlu0 %2123
        %2125 = vrot.lane.b32.xlu0 %v1916, 64
        %v2126 = vpop.permute.xlu0 %2125
        %2127 = vrot.lane.b32.xlu0 %v1917, 64
        %v2128 = vpop.permute.xlu0 %2127
        %2129 = vrot.lane.b32.xlu0 %v1918, 64
        %v2130 = vpop.permute.xlu0 %2129
        %2131 = vrot.lane.b32.xlu0 %v1919, 64
        %v2132 = vpop.permute.xlu0 %2131
        %2133 = vrot.lane.b32.xlu0 %v1920, 64
        %v2134 = vpop.permute.xlu0 %2133
        %2135 = vrot.lane.b32.xlu0 %v1921, 64
        %v2136 = vpop.permute.xlu0 %2135
        %2137 = vrot.lane.b32.xlu0 %v1922, 64
        %v2138 = vpop.permute.xlu0 %2137
        %2139 = vrot.lane.b32.xlu0 %v1923, 64
        %v2140 = vpop.permute.xlu0 %2139
        %2141 = vrot.lane.b32.xlu0 %v1924, 64
        %v2142 = vpop.permute.xlu0 %2141
        %2143 = vrot.lane.b32.xlu0 %v1925, 64
        %v2144 = vpop.permute.xlu0 %2143
        %2145 = vrot.lane.b32.xlu0 %v1926, 64
        %v2146 = vpop.permute.xlu0 %2145
        %2147 = vrot.lane.b32.xlu0 %v1927, 64
        %v2148 = vpop.permute.xlu0 %2147
        %2149 = vrot.lane.b32.xlu0 %v1928, 64
        %v2150 = vpop.permute.xlu0 %2149
        %2151 = vrot.lane.b32.xlu0 %v1929, 64
        %v2152 = vpop.permute.xlu0 %2151
        %2153 = vrot.lane.b32.xlu0 %v1930, 64
        %v2154 = vpop.permute.xlu0 %2153
        %v2187 = vsel %vm683, %v1835, %v1964
        %v2188 = vsel %vm683, %v1836, %v1966
        %v2189 = vsel %vm683, %v1837, %v1968
        %v2190 = vsel %vm683, %v1838, %v1970
        %v2191 = vsel %vm683, %v1839, %v1972
        %v2192 = vsel %vm683, %v1840, %v1974
        %v2193 = vsel %vm683, %v1841, %v1976
        %v2194 = vsel %vm683, %v1842, %v1978
        %v2195 = vsel %vm683, %v1843, %v1980
        %v2196 = vsel %vm683, %v1844, %v1982
        %v2197 = vsel %vm683, %v1845, %v1984
        %v2198 = vsel %vm683, %v1846, %v1986
        %v2199 = vsel %vm683, %v1847, %v1988
        %v2200 = vsel %vm683, %v1848, %v1990
        %v2201 = vsel %vm683, %v1849, %v1992
        %v2202 = vsel %vm683, %v1850, %v1994
        %v2203 = vsel %vm683, %v1851, %v1996
        %v2204 = vsel %vm683, %v1852, %v1998
        %v2205 = vsel %vm683, %v1853, %v2000
        %v2206 = vsel %vm683, %v1854, %v2002
        %v2207 = vsel %vm683, %v1855, %v2004
        %v2208 = vsel %vm683, %v1856, %v2006
        %v2209 = vsel %vm683, %v1857, %v2008
        %v2210 = vsel %vm683, %v1858, %v2010
        %v2211 = vsel %vm683, %v1859, %v2012
        %v2212 = vsel %vm683, %v1860, %v2014
        %v2213 = vsel %vm683, %v1861, %v2016
        %v2214 = vsel %vm683, %v1862, %v2018
        %v2215 = vsel %vm683, %v1863, %v2020
        %v2216 = vsel %vm683, %v1864, %v2022
        %v2217 = vsel %vm683, %v1865, %v2024
        %v2218 = vsel %vm683, %v1866, %v2026
        %v2219 = vsel %vm716, %v2187, %v2092
        %v2220 = vsel %vm716, %v2188, %v2094
        %v2221 = vsel %vm716, %v2189, %v2096
        %v2222 = vsel %vm716, %v2190, %v2098
        %v2223 = vsel %vm716, %v2191, %v2100
        %v2224 = vsel %vm716, %v2192, %v2102
        %v2225 = vsel %vm716, %v2193, %v2104
        %v2226 = vsel %vm716, %v2194, %v2106
        %v2227 = vsel %vm716, %v2195, %v2108
        %v2228 = vsel %vm716, %v2196, %v2110
        %v2229 = vsel %vm716, %v2197, %v2112
        %v2230 = vsel %vm716, %v2198, %v2114
        %v2231 = vsel %vm716, %v2199, %v2116
        %v2232 = vsel %vm716, %v2200, %v2118
        %v2233 = vsel %vm716, %v2201, %v2120
        %v2234 = vsel %vm716, %v2202, %v2122
        %v2235 = vsel %vm716, %v2203, %v2124
        %v2236 = vsel %vm716, %v2204, %v2126
        %v2237 = vsel %vm716, %v2205, %v2128
        %v2238 = vsel %vm716, %v2206, %v2130
        %v2239 = vsel %vm716, %v2207, %v2132
        %v2240 = vsel %vm716, %v2208, %v2134
        %v2241 = vsel %vm716, %v2209, %v2136
        %v2242 = vsel %vm716, %v2210, %v2138
        %v2243 = vsel %vm716, %v2211, %v2140
        %v2244 = vsel %vm716, %v2212, %v2142
        %v2245 = vsel %vm716, %v2213, %v2144
        %v2246 = vsel %vm716, %v2214, %v2146
        %v2247 = vsel %vm716, %v2215, %v2148
        %v2248 = vsel %vm716, %v2216, %v2150
        %v2249 = vsel %vm716, %v2217, %v2152
        %v2250 = vsel %vm716, %v2218, %v2154
        %s2251 = scalar_lea.vmem %s1, 192
        %v2252 = vld [vmem:[%s2251] sm:$0xff]
        %v2253 = vld [vmem:[%s2251 + $0x8] sm:$0xff]
        %v2254 = vld [vmem:[%s2251 + $0x10] sm:$0xff]
        %v2255 = vld [vmem:[%s2251 + $0x18] sm:$0xff]
        %v2256 = vld [vmem:[%s2251 + $0x20] sm:$0xff]
        %v2257 = vld [vmem:[%s2251 + $0x28] sm:$0xff]
        %v2258 = vld [vmem:[%s2251 + $0x30] sm:$0xff]
        %v2259 = vld [vmem:[%s2251 + $0x38] sm:$0xff]
        %v2260 = vld [vmem:[%s2251 + $0x40] sm:$0xff]
        %v2261 = vld [vmem:[%s2251 + $0x48] sm:$0xff]
        %v2262 = vld [vmem:[%s2251 + $0x50] sm:$0xff]
        %v2263 = vld [vmem:[%s2251 + $0x58] sm:$0xff]
        %v2265 = vsel %vm1191, %v2219, 0
        %v2268 = vsel %vm1191, %v2220, 0
        %v2271 = vsel %vm1191, %v2221, 0
        %v2274 = vsel %vm1191, %v2222, 0
        %v2277 = vsel %vm1191, %v2223, 0
        %v2280 = vsel %vm1191, %v2224, 0
        %v2283 = vsel %vm1191, %v2225, 0
        %v2286 = vsel %vm1191, %v2226, 0
        %v2289 = vsel %vm1191, %v2227, 0
        %v2292 = vsel %vm1191, %v2228, 0
        %v2295 = vsel %vm1191, %v2229, 0
        %v2298 = vsel %vm1191, %v2230, 0
        %v2301 = vsel %vm1191, %v2231, 0
        %v2304 = vsel %vm1191, %v2232, 0
        %v2307 = vsel %vm1191, %v2233, 0
        %v2310 = vsel %vm1191, %v2234, 0
        %v2313 = vsel %vm1191, %v2235, 0
        %v2316 = vsel %vm1191, %v2236, 0
        %v2319 = vsel %vm1191, %v2237, 0
        %v2322 = vsel %vm1191, %v2238, 0
        %v2325 = vsel %vm1191, %v2239, 0
        %v2328 = vsel %vm1191, %v2240, 0
        %v2331 = vsel %vm1191, %v2241, 0
        %v2334 = vsel %vm1191, %v2242, 0
        %v2337 = vsel %vm1191, %v2243, 0
        %v2340 = vsel %vm1191, %v2244, 0
        %v2343 = vsel %vm1191, %v2245, 0
        %v2346 = vsel %vm1191, %v2246, 0
        %v2349 = vsel %vm1191, %v2247, 0
        %v2352 = vsel %vm1191, %v2248, 0
        %v2355 = vsel %vm1191, %v2249, 0
        %v2358 = vsel %vm1191, %v2250, 0
        %2360 = vmatprep.subr.mxu0 0.0
        %2361 = vmatpush1.msra.mxu0 %v2252
        %2362 = vmatprep.subr.mxu0 0.0
        %2363 = vmatpush1.msra.mxu0 %v2253
        %2364 = vmatprep.subr.mxu0 0.0
        %2365 = vmatpush1.msra.mxu0 %v2254
        %2366 = vmatprep.subr.mxu0 0.0
        %2367 = vmatpush1.msra.mxu0 %v2255
        %2368 = vmatprep.subr.mxu0 0.0
        %2369 = vmatpush1.msra.mxu0 %v2256
        %2370 = vmatprep.subr.mxu0 0.0
        %2371 = vmatpush1.msra.mxu0 %v2257
        %2372 = vmatprep.subr.mxu0 0.0
        %2373 = vmatpush1.msra.mxu0 %v2258
        %2374 = vmatprep.subr.mxu0 0.0
        %2375 = vmatpush1.msra.mxu0 %v2259
        %2376 = vmatprep.subr.mxu0 0.0
        %2377 = vmatpush1.msra.mxu0 %v2260
        %2378 = vmatprep.subr.mxu0 0.0
        %2379 = vmatpush1.msra.mxu0 %v2261
        %2380 = vmatprep.subr.mxu0 0.0
        %2381 = vmatpush1.msra.mxu0 %v2262
        %2382 = vmatprep.subr.mxu0 0.0
        %2383 = vmatpush1.msra.mxu0 %v2263
        %2384 = vmatprep.subr.mxu0 0.0
        %2385 = vmatpush1.msra.mxu0 0.0
        %2386 = vmatprep.subr.mxu0 0.0
        %2387 = vmatpush1.msra.mxu0 0.0
        %2388 = vmatprep.subr.mxu0 0.0
        %2389 = vmatpush1.msra.mxu0 0.0
        %2390 = vmatprep.subr.mxu0 0.0
        %2391 = vmatpush1.msra.mxu0 0.0
        %2392 = vmatprep.subr.mxu0 0.0
        %2393 = vmatpush1.msra.mxu0 0.0
        %2394 = vmatprep.subr.mxu0 0.0
        %2395 = vmatpush1.msra.mxu0 0.0
        %2396 = vmatprep.subr.mxu0 0.0
        %2397 = vmatpush1.msra.mxu0 0.0
        %2398 = vmatprep.subr.mxu0 0.0
        %2399 = vmatpush1.msra.mxu0 0.0
        %2400 = vmatprep.subr.mxu0 0.0
        %2401 = vmatpush1.msra.mxu0 0.0
        %2402 = vmatprep.subr.mxu0 0.0
        %2403 = vmatpush1.msra.mxu0 0.0
        %2404 = vmatprep.subr.mxu0 0.0
        %2405 = vmatpush1.msra.mxu0 0.0
        %2406 = vmatprep.subr.mxu0 0.0
        %2407 = vmatpush1.msra.mxu0 0.0
        %2408 = vmatprep.subr.mxu0 0.0
        %2409 = vmatpush1.msra.mxu0 0.0
        %2410 = vmatprep.subr.mxu0 0.0
        %2411 = vmatpush1.msra.mxu0 0.0
        %2412 = vmatprep.subr.mxu0 0.0
        %2413 = vmatpush1.msra.mxu0 0.0
        %2414 = vmatprep.subr.mxu0 0.0
        %2415 = vmatpush1.msra.mxu0 0.0
        %2416 = vmatprep.subr.mxu0 0.0
        %2417 = vmatpush1.msra.mxu0 0.0
        %2418 = vmatprep.subr.mxu0 0.0
        %2419 = vmatpush1.msra.mxu0 0.0
        %2420 = vmatprep.subr.mxu0 0.0
        %2421 = vmatpush1.msra.mxu0 0.0
        %2422 = vmatprep.subr.mxu0 0.0
        %2423 = vmatpush1.msra.mxu0 0.0
        %2424 = vmatprep.mubr.f32.mxu0 0.0
        %2425 = vmatmul.mubr.f32.gmra.mrb[0].mxu0 %v2265
        %v2426 = vpop.f32.mrb[0].mxu0
        %v2427 = vadd.f32 0.0, %v2426
        %v2428 = vpop.f32.mrb[0].mxu0
        %2429 = vmatprep.mubr.f32.mxu0 0.0
        %2430 = vmatmul.mubr.f32.gmra.mrb[0].mxu0 %v2268
        %v2431 = vpop.f32.mrb[0].mxu0
        %v2432 = vadd.f32 0.0, %v2431
        %v2433 = vpop.f32.mrb[0].mxu0
        %2434 = vmatprep.mubr.f32.mxu0 0.0
        %2435 = vmatmul.mubr.f32.gmra.mrb[0].mxu0 %v2271
        %v2436 = vpop.f32.mrb[0].mxu0
        %v2437 = vadd.f32 0.0, %v2436
        %v2438 = vpop.f32.mrb[0].mxu0
        %2439 = vmatprep.mubr.f32.mxu0 0.0
        %2440 = vmatmul.mubr.f32.gmra.mrb[0].mxu0 %v2274
        %v2441 = vpop.f32.mrb[0].mxu0
        %v2442 = vadd.f32 0.0, %v2441
        %v2443 = vpop.f32.mrb[0].mxu0
        %2444 = vmatprep.mubr.f32.mxu0 0.0
        %2445 = vmatmul.mubr.f32.gmra.mrb[0].mxu0 %v2277
        %v2446 = vpop.f32.mrb[0].mxu0
        %v2447 = vadd.f32 0.0, %v2446
        %v2448 = vpop.f32.mrb[0].mxu0
        %2449 = vmatprep.mubr.f32.mxu0 0.0
        %2450 = vmatmul.mubr.f32.gmra.mrb[0].mxu0 %v2280
        %v2451 = vpop.f32.mrb[0].mxu0
        %v2452 = vadd.f32 0.0, %v2451
        %v2453 = vpop.f32.mrb[0].mxu0
        %2454 = vmatprep.mubr.f32.mxu0 0.0
        %2455 = vmatmul.mubr.f32.gmra.mrb[0].mxu0 %v2283
        %v2456 = vpop.f32.mrb[0].mxu0
        %v2457 = vadd.f32 0.0, %v2456
        %v2458 = vpop.f32.mrb[0].mxu0
        %2459 = vmatprep.mubr.f32.mxu0 0.0
        %2460 = vmatmul.mubr.f32.gmra.mrb[0].mxu0 %v2286
        %v2461 = vpop.f32.mrb[0].mxu0
        %v2462 = vadd.f32 0.0, %v2461
        %v2463 = vpop.f32.mrb[0].mxu0
        %2464 = vmatprep.mubr.f32.mxu0 0.0
        %2465 = vmatmul.mubr.f32.gmra.mrb[0].mxu0 %v2289
        %v2466 = vpop.f32.mrb[0].mxu0
        %v2467 = vadd.f32 0.0, %v2466
        %v2468 = vpop.f32.mrb[0].mxu0
        %2469 = vmatprep.mubr.f32.mxu0 0.0
        %2470 = vmatmul.mubr.f32.gmra.mrb[0].mxu0 %v2292
        %v2471 = vpop.f32.mrb[0].mxu0
        %v2472 = vadd.f32 0.0, %v2471
        %v2473 = vpop.f32.mrb[0].mxu0
        %2474 = vmatprep.mubr.f32.mxu0 0.0
        %2475 = vmatmul.mubr.f32.gmra.mrb[0].mxu0 %v2295
        %v2476 = vpop.f32.mrb[0].mxu0
        %v2477 = vadd.f32 0.0, %v2476
        %v2478 = vpop.f32.mrb[0].mxu0
        %2479 = vmatprep.mubr.f32.mxu0 0.0
        %2480 = vmatmul.mubr.f32.gmra.mrb[0].mxu0 %v2298
        %v2481 = vpop.f32.mrb[0].mxu0
        %v2482 = vadd.f32 0.0, %v2481
        %v2483 = vpop.f32.mrb[0].mxu0
        %2484 = vmatprep.mubr.f32.mxu0 0.0
        %2485 = vmatmul.mubr.f32.gmra.mrb[0].mxu0 %v2301
        %v2486 = vpop.f32.mrb[0].mxu0
        %v2487 = vadd.f32 0.0, %v2486
        %v2488 = vpop.f32.mrb[0].mxu0
        %2489 = vmatprep.mubr.f32.mxu0 0.0
        %2490 = vmatmul.mubr.f32.gmra.mrb[0].mxu0 %v2304
        %v2491 = vpop.f32.mrb[0].mxu0
        %v2492 = vadd.f32 0.0, %v2491
        %v2493 = vpop.f32.mrb[0].mxu0
        %2494 = vmatprep.mubr.f32.mxu0 0.0
        %2495 = vmatmul.mubr.f32.gmra.mrb[0].mxu0 %v2307
        %v2496 = vpop.f32.mrb[0].mxu0
        %v2497 = vadd.f32 0.0, %v2496
        %v2498 = vpop.f32.mrb[0].mxu0
        %2499 = vmatprep.mubr.f32.mxu0 0.0
        %2500 = vmatmul.mubr.f32.gmra.mrb[0].mxu0 %v2310
        %v2501 = vpop.f32.mrb[0].mxu0
        %v2502 = vadd.f32 0.0, %v2501
        %v2503 = vpop.f32.mrb[0].mxu0
        %2504 = vmatprep.mubr.f32.mxu0 0.0
        %2505 = vmatmul.mubr.f32.gmra.mrb[0].mxu0 %v2313
        %v2506 = vpop.f32.mrb[0].mxu0
        %v2507 = vadd.f32 0.0, %v2506
        %v2508 = vpop.f32.mrb[0].mxu0
        %2509 = vmatprep.mubr.f32.mxu0 0.0
        %2510 = vmatmul.mubr.f32.gmra.mrb[0].mxu0 %v2316
        %v2511 = vpop.f32.mrb[0].mxu0
        %v2512 = vadd.f32 0.0, %v2511
        %v2513 = vpop.f32.mrb[0].mxu0
        %2514 = vmatprep.mubr.f32.mxu0 0.0
        %2515 = vmatmul.mubr.f32.gmra.mrb[0].mxu0 %v2319
        %v2516 = vpop.f32.mrb[0].mxu0
        %v2517 = vadd.f32 0.0, %v2516
        %v2518 = vpop.f32.mrb[0].mxu0
        %2519 = vmatprep.mubr.f32.mxu0 0.0
        %2520 = vmatmul.mubr.f32.gmra.mrb[0].mxu0 %v2322
        %v2521 = vpop.f32.mrb[0].mxu0
        %v2522 = vadd.f32 0.0, %v2521
        %v2523 = vpop.f32.mrb[0].mxu0
        %2524 = vmatprep.mubr.f32.mxu0 0.0
        %2525 = vmatmul.mubr.f32.gmra.mrb[0].mxu0 %v2325
        %v2526 = vpop.f32.mrb[0].mxu0
        %v2527 = vadd.f32 0.0, %v2526
        %v2528 = vpop.f32.mrb[0].mxu0
        %2529 = vmatprep.mubr.f32.mxu0 0.0
        %2530 = vmatmul.mubr.f32.gmra.mrb[0].mxu0 %v2328
        %v2531 = vpop.f32.mrb[0].mxu0
        %v2532 = vadd.f32 0.0, %v2531
        %v2533 = vpop.f32.mrb[0].mxu0
        %2534 = vmatprep.mubr.f32.mxu0 0.0
        %2535 = vmatmul.mubr.f32.gmra.mrb[0].mxu0 %v2331
        %v2536 = vpop.f32.mrb[0].mxu0
        %v2537 = vadd.f32 0.0, %v2536
        %v2538 = vpop.f32.mrb[0].mxu0
        %2539 = vmatprep.mubr.f32.mxu0 0.0
        %2540 = vmatmul.mubr.f32.gmra.mrb[0].mxu0 %v2334
        %v2541 = vpop.f32.mrb[0].mxu0
        %v2542 = vadd.f32 0.0, %v2541
        %v2543 = vpop.f32.mrb[0].mxu0
        %2544 = vmatprep.mubr.f32.mxu0 0.0
        %2545 = vmatmul.mubr.f32.gmra.mrb[0].mxu0 %v2337
        %v2546 = vpop.f32.mrb[0].mxu0
        %v2547 = vadd.f32 0.0, %v2546
        %v2548 = vpop.f32.mrb[0].mxu0
        %2549 = vmatprep.mubr.f32.mxu0 0.0
        %2550 = vmatmul.mubr.f32.gmra.mrb[0].mxu0 %v2340
        %v2551 = vpop.f32.mrb[0].mxu0
        %v2552 = vadd.f32 0.0, %v2551
        %v2553 = vpop.f32.mrb[0].mxu0
        %2554 = vmatprep.mubr.f32.mxu0 0.0
        %2555 = vmatmul.mubr.f32.gmra.mrb[0].mxu0 %v2343
        %v2556 = vpop.f32.mrb[0].mxu0
        %v2557 = vadd.f32 0.0, %v2556
        %v2558 = vpop.f32.mrb[0].mxu0
        %2559 = vmatprep.mubr.f32.mxu0 0.0
        %2560 = vmatmul.mubr.f32.gmra.mrb[0].mxu0 %v2346
        %v2561 = vpop.f32.mrb[0].mxu0
        %v2562 = vadd.f32 0.0, %v2561
        %v2563 = vpop.f32.mrb[0].mxu0
        %2564 = vmatprep.mubr.f32.mxu0 0.0
        %2565 = vmatmul.mubr.f32.gmra.mrb[0].mxu0 %v2349
        %v2566 = vpop.f32.mrb[0].mxu0
        %v2567 = vadd.f32 0.0, %v2566
        %v2568 = vpop.f32.mrb[0].mxu0
        %2569 = vmatprep.mubr.f32.mxu0 0.0
        %2570 = vmatmul.mubr.f32.gmra.mrb[0].mxu0 %v2352
        %v2571 = vpop.f32.mrb[0].mxu0
        %v2572 = vadd.f32 0.0, %v2571
        %v2573 = vpop.f32.mrb[0].mxu0
        %2574 = vmatprep.mubr.f32.mxu0 0.0
        %2575 = vmatmul.mubr.f32.gmra.mrb[0].mxu0 %v2355
        %v2576 = vpop.f32.mrb[0].mxu0
        %v2577 = vadd.f32 0.0, %v2576
        %v2578 = vpop.f32.mrb[0].mxu0
        %2579 = vmatprep.mubr.f32.mxu0 0.0
        %2580 = vmatmul.mubr.f32.gmra.mrb[0].mxu0 %v2358
        %v2581 = vpop.f32.mrb[0].mxu0
        %v2582 = vadd.f32 0.0, %v2581
        %v2583 = vpop.f32.mrb[0].mxu0
        %2584 = vdwg.mxu0
        %v2585 = vadd.f32 %v1676, %v2427
        %v2586 = vadd.f32 %v1681, %v2432
        %v2587 = vadd.f32 %v1686, %v2437
        %v2588 = vadd.f32 %v1691, %v2442
        %v2589 = vadd.f32 %v1696, %v2447
        %v2590 = vadd.f32 %v1701, %v2452
        %v2591 = vadd.f32 %v1706, %v2457
        %v2592 = vadd.f32 %v1711, %v2462
        %v2593 = vadd.f32 %v1716, %v2467
        %v2594 = vadd.f32 %v1721, %v2472
        %v2595 = vadd.f32 %v1726, %v2477
        %v2596 = vadd.f32 %v1731, %v2482
        %v2597 = vadd.f32 %v1736, %v2487
        %v2598 = vadd.f32 %v1741, %v2492
        %v2599 = vadd.f32 %v1746, %v2497
        %v2600 = vadd.f32 %v1751, %v2502
        %v2601 = vadd.f32 %v1756, %v2507
        %v2602 = vadd.f32 %v1761, %v2512
        %v2603 = vadd.f32 %v1766, %v2517
        %v2604 = vadd.f32 %v1771, %v2522
        %v2605 = vadd.f32 %v1776, %v2527
        %v2606 = vadd.f32 %v1781, %v2532
        %v2607 = vadd.f32 %v1786, %v2537
        %v2608 = vadd.f32 %v1791, %v2542
        %v2609 = vadd.f32 %v1796, %v2547
        %v2610 = vadd.f32 %v1801, %v2552
        %v2611 = vadd.f32 %v1806, %v2557
        %v2612 = vadd.f32 %v1811, %v2562
        %v2613 = vadd.f32 %v1816, %v2567
        %v2614 = vadd.f32 %v1821, %v2572
        %v2615 = vadd.f32 %v1826, %v2577
        %v2616 = vadd.f32 %v1831, %v2582
        %v2617 = vld [vmem:[%s2] sm:$0x1]
        %v2619 = vlaneseq
        %v2620 = vshrl.u32 %v2619, 7
        %v2621 = vsub.s32 0, %v2620
        %v2622 = vrot.slane %v2617, %v2621
        %v2624 = vadd.f32 %v2585, %v2622
        %v2625 = vadd.f32 %v2586, %v2622
        %v2626 = vadd.f32 %v2587, %v2622
        %v2627 = vadd.f32 %v2588, %v2622
        %v2628 = vadd.f32 %v2589, %v2622
        %v2629 = vadd.f32 %v2590, %v2622
        %v2630 = vadd.f32 %v2591, %v2622
        %v2631 = vadd.f32 %v2592, %v2622
        %v2632 = vadd.f32 %v2593, %v2622
        %v2633 = vadd.f32 %v2594, %v2622
        %v2634 = vadd.f32 %v2595, %v2622
        %v2635 = vadd.f32 %v2596, %v2622
        %v2636 = vadd.f32 %v2597, %v2622
        %v2637 = vadd.f32 %v2598, %v2622
        %v2638 = vadd.f32 %v2599, %v2622
        %v2639 = vadd.f32 %v2600, %v2622
        %v2640 = vadd.f32 %v2601, %v2622
        %v2641 = vadd.f32 %v2602, %v2622
        %v2642 = vadd.f32 %v2603, %v2622
        %v2643 = vadd.f32 %v2604, %v2622
        %v2644 = vadd.f32 %v2605, %v2622
        %v2645 = vadd.f32 %v2606, %v2622
        %v2646 = vadd.f32 %v2607, %v2622
        %v2647 = vadd.f32 %v2608, %v2622
        %v2648 = vadd.f32 %v2609, %v2622
        %v2649 = vadd.f32 %v2610, %v2622
        %v2650 = vadd.f32 %v2611, %v2622
        %v2651 = vadd.f32 %v2612, %v2622
        %v2652 = vadd.f32 %v2613, %v2622
        %v2653 = vadd.f32 %v2614, %v2622
        %v2654 = vadd.f32 %v2615, %v2622
        %v2655 = vadd.f32 %v2616, %v2622
        %v2656 = vmax.f32 %v2624, 0.0
        %v2657 = vmax.f32 %v2625, 0.0
        %v2658 = vmax.f32 %v2626, 0.0
        %v2659 = vmax.f32 %v2627, 0.0
        %v2660 = vmax.f32 %v2628, 0.0
        %v2661 = vmax.f32 %v2629, 0.0
        %v2662 = vmax.f32 %v2630, 0.0
        %v2663 = vmax.f32 %v2631, 0.0
        %v2664 = vmax.f32 %v2632, 0.0
        %v2665 = vmax.f32 %v2633, 0.0
        %v2666 = vmax.f32 %v2634, 0.0
        %v2667 = vmax.f32 %v2635, 0.0
        %v2668 = vmax.f32 %v2636, 0.0
        %v2669 = vmax.f32 %v2637, 0.0
        %v2670 = vmax.f32 %v2638, 0.0
        %v2671 = vmax.f32 %v2639, 0.0
        %v2672 = vmax.f32 %v2640, 0.0
        %v2673 = vmax.f32 %v2641, 0.0
        %v2674 = vmax.f32 %v2642, 0.0
        %v2675 = vmax.f32 %v2643, 0.0
        %v2676 = vmax.f32 %v2644, 0.0
        %v2677 = vmax.f32 %v2645, 0.0
        %v2678 = vmax.f32 %v2646, 0.0
        %v2679 = vmax.f32 %v2647, 0.0
        %v2680 = vmax.f32 %v2648, 0.0
        %v2681 = vmax.f32 %v2649, 0.0
        %v2682 = vmax.f32 %v2650, 0.0
        %v2683 = vmax.f32 %v2651, 0.0
        %v2684 = vmax.f32 %v2652, 0.0
        %v2685 = vmax.f32 %v2653, 0.0
        %v2686 = vmax.f32 %v2654, 0.0
        %v2687 = vmax.f32 %v2655, 0.0
        %2688 = vst.msk [vmem:[#allocation2] sm:$0xff] %vm683, 0.0
        %2689 = vst.msk [vmem:[#allocation2 + $0x8] sm:$0xff] %vm683, 0.0
        %vm2690 = vcmask 254976
        %2691 = vst.msk [vmem:[#allocation2 + $0x10] sm:$0x3] %vm2690, 0.0
        %2692 = vst.msk [vmem:[#allocation2 + $0x18] sm:$0xff] %vm683, 0.0
        %2693 = vst.msk [vmem:[#allocation2 + $0x20] sm:$0xff] %vm683, 0.0
        %2694 = vst.msk [vmem:[#allocation2 + $0x28] sm:$0x3] %vm2690, 0.0
        %2695 = vst.msk [vmem:[#allocation2 + $0x30] sm:$0xff] %vm683, 0.0
        %2696 = vst.msk [vmem:[#allocation2 + $0x38] sm:$0xff] %vm683, 0.0
        %2697 = vst.msk [vmem:[#allocation2 + $0x40] sm:$0x3] %vm2690, 0.0
        %2698 = vst.msk [vmem:[#allocation2 + $0x48] sm:$0xff] %vm683, 0.0
        %2699 = vst.msk [vmem:[#allocation2 + $0x50] sm:$0xff] %vm683, 0.0
        %2700 = vst.msk [vmem:[#allocation2 + $0x58] sm:$0x3] %vm2690, 0.0
        %2701 = vst.msk [vmem:[#allocation2 + $0x60] sm:$0xff] %vm683, 0.0
        %2702 = vst.msk [vmem:[#allocation2 + $0x68] sm:$0xff] %vm683, 0.0
        %2703 = vst.msk [vmem:[#allocation2 + $0x70] sm:$0x3] %vm2690, 0.0
        %2704 = vst.msk [vmem:[#allocation2 + $0x78] sm:$0xff] %vm683, 0.0
        %2705 = vst.msk [vmem:[#allocation2 + $0x80] sm:$0xff] %vm683, 0.0
        %2706 = vst.msk [vmem:[#allocation2 + $0x88] sm:$0x3] %vm2690, 0.0
        %2707 = vst.msk [vmem:[#allocation2 + $0x90] sm:$0xff] %vm683, 0.0
        %2708 = vst.msk [vmem:[#allocation2 + $0x98] sm:$0xff] %vm683, 0.0
        %2709 = vst.msk [vmem:[#allocation2 + $0xa0] sm:$0x3] %vm2690, 0.0
        %2710 = vst.msk [vmem:[#allocation2 + $0xa8] sm:$0xff] %vm683, 0.0
        %2711 = vst.msk [vmem:[#allocation2 + $0xb0] sm:$0xff] %vm683, 0.0
        %2712 = vst.msk [vmem:[#allocation2 + $0xb8] sm:$0x3] %vm2690, 0.0
        %2713 = vst.msk [vmem:[#allocation2 + $0xc0] sm:$0xff] %vm683, 0.0
        %2714 = vst.msk [vmem:[#allocation2 + $0xc8] sm:$0xff] %vm683, 0.0
        %2715 = vst.msk [vmem:[#allocation2 + $0xd0] sm:$0x3] %vm2690, 0.0
        %2716 = vst.msk [vmem:[#allocation2 + $0xd8] sm:$0xff] %vm683, 0.0
        %2717 = vst.msk [vmem:[#allocation2 + $0xe0] sm:$0xff] %vm683, 0.0
        %2718 = vst.msk [vmem:[#allocation2 + $0xe8] sm:$0x3] %vm2690, 0.0
        %2719 = vst.msk [vmem:[#allocation2 + $0xf0] sm:$0xff] %vm683, 0.0
        %2720 = vst.msk [vmem:[#allocation2 + $0xf8] sm:$0xff] %vm683, 0.0
        %2721 = vst.msk [vmem:[#allocation2 + $0x100] sm:$0x3] %vm2690, 0.0
        %2722 = vst.msk [vmem:[#allocation2 + $0x108] sm:$0xff] %vm683, 0.0
        %2723 = vst.msk [vmem:[#allocation2 + $0x110] sm:$0xff] %vm683, 0.0
        %2724 = vst.msk [vmem:[#allocation2 + $0x118] sm:$0x3] %vm2690, 0.0
        %2725 = vst.msk [vmem:[#allocation2 + $0x120] sm:$0xff] %vm683, 0.0
        %2726 = vst.msk [vmem:[#allocation2 + $0x128] sm:$0xff] %vm683, 0.0
        %2727 = vst.msk [vmem:[#allocation2 + $0x130] sm:$0x3] %vm2690, 0.0
        %2728 = vst.msk [vmem:[#allocation2 + $0x138] sm:$0xff] %vm683, 0.0
        %2729 = vst.msk [vmem:[#allocation2 + $0x140] sm:$0xff] %vm683, 0.0
        %2730 = vst.msk [vmem:[#allocation2 + $0x148] sm:$0x3] %vm2690, 0.0
        %2731 = vst.msk [vmem:[#allocation2 + $0x150] sm:$0xff] %vm683, 0.0
        %2732 = vst.msk [vmem:[#allocation2 + $0x158] sm:$0xff] %vm683, 0.0
        %2733 = vst.msk [vmem:[#allocation2 + $0x160] sm:$0x3] %vm2690, 0.0
        %2734 = vst.msk [vmem:[#allocation2 + $0x168] sm:$0xff] %vm683, 0.0
        %2735 = vst.msk [vmem:[#allocation2 + $0x170] sm:$0xff] %vm683, 0.0
        %2736 = vst.msk [vmem:[#allocation2 + $0x178] sm:$0x3] %vm2690, 0.0
        %2737 = vst.msk [vmem:[#allocation2 + $0x180] sm:$0xff] %vm683, 0.0
        %2738 = vst.msk [vmem:[#allocation2 + $0x188] sm:$0xff] %vm683, 0.0
        %2739 = vst.msk [vmem:[#allocation2 + $0x190] sm:$0x3] %vm2690, 0.0
        %2740 = vst.msk [vmem:[#allocation2 + $0x198] sm:$0xff] %vm683, 0.0
        %2741 = vst.msk [vmem:[#allocation2 + $0x1a0] sm:$0xff] %vm683, 0.0
        %2742 = vst.msk [vmem:[#allocation2 + $0x1a8] sm:$0x3] %vm2690, 0.0
        %s2743 = scalar_lea.vmem [#allocation2], 24
        %2744 = vst.msk [vmem:[%s2743 + $0x1] sm:$0xff] %vm683, %v2656
        %2745 = vst.msk [vmem:[%s2743 + $0x9] sm:$0xff] %vm683, %v2657
        %2746 = vst.msk [vmem:[%s2743 + $0x19] sm:$0xff] %vm683, %v2658
        %2747 = vst.msk [vmem:[%s2743 + $0x21] sm:$0xff] %vm683, %v2659
        %2748 = vst.msk [vmem:[%s2743 + $0x31] sm:$0xff] %vm683, %v2660
        %2749 = vst.msk [vmem:[%s2743 + $0x39] sm:$0xff] %vm683, %v2661
        %2750 = vst.msk [vmem:[%s2743 + $0x49] sm:$0xff] %vm683, %v2662
        %2751 = vst.msk [vmem:[%s2743 + $0x51] sm:$0xff] %vm683, %v2663
        %2752 = vst.msk [vmem:[%s2743 + $0x61] sm:$0xff] %vm683, %v2664
        %2753 = vst.msk [vmem:[%s2743 + $0x69] sm:$0xff] %vm683, %v2665
        %2754 = vst.msk [vmem:[%s2743 + $0x79] sm:$0xff] %vm683, %v2666
        %2755 = vst.msk [vmem:[%s2743 + $0x81] sm:$0xff] %vm683, %v2667
        %2756 = vst.msk [vmem:[%s2743 + $0x91] sm:$0xff] %vm683, %v2668
        %2757 = vst.msk [vmem:[%s2743 + $0x99] sm:$0xff] %vm683, %v2669
        %2758 = vst.msk [vmem:[%s2743 + $0xa9] sm:$0xff] %vm683, %v2670
        %2759 = vst.msk [vmem:[%s2743 + $0xb1] sm:$0xff] %vm683, %v2671
        %2760 = vst.msk [vmem:[%s2743 + $0xc1] sm:$0xff] %vm683, %v2672
        %2761 = vst.msk [vmem:[%s2743 + $0xc9] sm:$0xff] %vm683, %v2673
        %2762 = vst.msk [vmem:[%s2743 + $0xd9] sm:$0xff] %vm683, %v2674
        %2763 = vst.msk [vmem:[%s2743 + $0xe1] sm:$0xff] %vm683, %v2675
        %2764 = vst.msk [vmem:[%s2743 + $0xf1] sm:$0xff] %vm683, %v2676
        %2765 = vst.msk [vmem:[%s2743 + $0xf9] sm:$0xff] %vm683, %v2677
        %2766 = vst.msk [vmem:[%s2743 + $0x109] sm:$0xff] %vm683, %v2678
        %2767 = vst.msk [vmem:[%s2743 + $0x111] sm:$0xff] %vm683, %v2679
        %2768 = vst.msk [vmem:[%s2743 + $0x121] sm:$0xff] %vm683, %v2680
        %2769 = vst.msk [vmem:[%s2743 + $0x129] sm:$0xff] %vm683, %v2681
        %2770 = vst.msk [vmem:[%s2743 + $0x139] sm:$0xff] %vm683, %v2682
        %2771 = vst.msk [vmem:[%s2743 + $0x141] sm:$0xff] %vm683, %v2683
        %2772 = vst.msk [vmem:[%s2743 + $0x151] sm:$0xff] %vm683, %v2684
        %2773 = vst.msk [vmem:[%s2743 + $0x159] sm:$0xff] %vm683, %v2685
        %2774 = vst.msk [vmem:[%s2743 + $0x169] sm:$0xff] %vm683, %v2686
        %2775 = vst.msk [vmem:[%s2743 + $0x171] sm:$0xff] %vm683, %v2687
        %v2776 = vld [vmem:[#allocation2] sm:$0xff]
        %v2777 = vld [vmem:[#allocation2 + $0x8] sm:$0xff]
        %v2778 = vld [vmem:[#allocation2 + $0x18] sm:$0xff]
        %v2779 = vld [vmem:[#allocation2 + $0x20] sm:$0xff]
        %v2780 = vld [vmem:[#allocation2 + $0x30] sm:$0xff]
        %v2781 = vld [vmem:[#allocation2 + $0x38] sm:$0xff]
        %v2782 = vld [vmem:[#allocation2 + $0x48] sm:$0xff]
        %v2783 = vld [vmem:[#allocation2 + $0x50] sm:$0xff]
        %v2784 = vld [vmem:[#allocation2 + $0x60] sm:$0xff]
        %v2785 = vld [vmem:[#allocation2 + $0x68] sm:$0xff]
        %v2786 = vld [vmem:[#allocation2 + $0x78] sm:$0xff]
        %v2787 = vld [vmem:[#allocation2 + $0x80] sm:$0xff]
        %v2788 = vld [vmem:[#allocation2 + $0x90] sm:$0xff]
        %v2789 = vld [vmem:[#allocation2 + $0x98] sm:$0xff]
        %v2790 = vld [vmem:[#allocation2 + $0xa8] sm:$0xff]
        %v2791 = vld [vmem:[#allocation2 + $0xb0] sm:$0xff]
        %v2792 = vld [vmem:[#allocation2 + $0xc0] sm:$0xff]
        %v2793 = vld [vmem:[#allocation2 + $0xc8] sm:$0xff]
        %v2794 = vld [vmem:[#allocation2 + $0xd8] sm:$0xff]
        %v2795 = vld [vmem:[#allocation2 + $0xe0] sm:$0xff]
        %v2796 = vld [vmem:[#allocation2 + $0xf0] sm:$0xff]
        %v2797 = vld [vmem:[#allocation2 + $0xf8] sm:$0xff]
        %v2798 = vld [vmem:[#allocation2 + $0x108] sm:$0xff]
        %v2799 = vld [vmem:[#allocation2 + $0x110] sm:$0xff]
        %v2800 = vld [vmem:[#allocation2 + $0x120] sm:$0xff]
        %v2801 = vld [vmem:[#allocation2 + $0x128] sm:$0xff]
        %v2802 = vld [vmem:[#allocation2 + $0x138] sm:$0xff]
        %v2803 = vld [vmem:[#allocation2 + $0x140] sm:$0xff]
        %v2804 = vld [vmem:[#allocation2 + $0x150] sm:$0xff]
        %v2805 = vld [vmem:[#allocation2 + $0x158] sm:$0xff]
        %v2806 = vld [vmem:[#allocation2 + $0x168] sm:$0xff]
        %v2807 = vld [vmem:[#allocation2 + $0x170] sm:$0xff]
        %v2808 = vld [vmem:[#allocation2 + $0x1] sm:$0xff]
        %v2809 = vld [vmem:[#allocation2 + $0x9] sm:$0xff]
        %v2810 = vld [vmem:[#allocation2 + $0x19] sm:$0xff]
        %v2811 = vld [vmem:[#allocation2 + $0x21] sm:$0xff]
        %v2812 = vld [vmem:[#allocation2 + $0x31] sm:$0xff]
        %v2813 = vld [vmem:[#allocation2 + $0x39] sm:$0xff]
        %v2814 = vld [vmem:[#allocation2 + $0x49] sm:$0xff]
        %v2815 = vld [vmem:[#allocation2 + $0x51] sm:$0xff]
        %v2816 = vld [vmem:[#allocation2 + $0x61] sm:$0xff]
        %v2817 = vld [vmem:[#allocation2 + $0x69] sm:$0xff]
        %v2818 = vld [vmem:[#allocation2 + $0x79] sm:$0xff]
        %v2819 = vld [vmem:[#allocation2 + $0x81] sm:$0xff]
        %v2820 = vld [vmem:[#allocation2 + $0x91] sm:$0xff]
        %v2821 = vld [vmem:[#allocation2 + $0x99] sm:$0xff]
        %v2822 = vld [vmem:[#allocation2 + $0xa9] sm:$0xff]
        %v2823 = vld [vmem:[#allocation2 + $0xb1] sm:$0xff]
        %v2824 = vld [vmem:[#allocation2 + $0xc1] sm:$0xff]
        %v2825 = vld [vmem:[#allocation2 + $0xc9] sm:$0xff]
        %v2826 = vld [vmem:[#allocation2 + $0xd9] sm:$0xff]
        %v2827 = vld [vmem:[#allocation2 + $0xe1] sm:$0xff]
        %v2828 = vld [vmem:[#allocation2 + $0xf1] sm:$0xff]
        %v2829 = vld [vmem:[#allocation2 + $0xf9] sm:$0xff]
        %v2830 = vld [vmem:[#allocation2 + $0x109] sm:$0xff]
        %v2831 = vld [vmem:[#allocation2 + $0x111] sm:$0xff]
        %v2832 = vld [vmem:[#allocation2 + $0x121] sm:$0xff]
        %v2833 = vld [vmem:[#allocation2 + $0x129] sm:$0xff]
        %v2834 = vld [vmem:[#allocation2 + $0x139] sm:$0xff]
        %v2835 = vld [vmem:[#allocation2 + $0x141] sm:$0xff]
        %v2836 = vld [vmem:[#allocation2 + $0x151] sm:$0xff]
        %v2837 = vld [vmem:[#allocation2 + $0x159] sm:$0xff]
        %v2838 = vld [vmem:[#allocation2 + $0x169] sm:$0xff]
        %v2839 = vld [vmem:[#allocation2 + $0x171] sm:$0xff]
        %v2840 = vld [vmem:[#allocation2 + $0x2] sm:$0xff]
        %v2841 = vld [vmem:[#allocation2 + $0xa] sm:$0xff]
        %v2842 = vld [vmem:[#allocation2 + $0x1a] sm:$0xff]
        %v2843 = vld [vmem:[#allocation2 + $0x22] sm:$0xff]
        %v2844 = vld [vmem:[#allocation2 + $0x32] sm:$0xff]
        %v2845 = vld [vmem:[#allocation2 + $0x3a] sm:$0xff]
        %v2846 = vld [vmem:[#allocation2 + $0x4a] sm:$0xff]
        %v2847 = vld [vmem:[#allocation2 + $0x52] sm:$0xff]
        %v2848 = vld [vmem:[#allocation2 + $0x62] sm:$0xff]
        %v2849 = vld [vmem:[#allocation2 + $0x6a] sm:$0xff]
        %v2850 = vld [vmem:[#allocation2 + $0x7a] sm:$0xff]
        %v2851 = vld [vmem:[#allocation2 + $0x82] sm:$0xff]
        %v2852 = vld [vmem:[#allocation2 + $0x92] sm:$0xff]
        %v2853 = vld [vmem:[#allocation2 + $0x9a] sm:$0xff]
        %v2854 = vld [vmem:[#allocation2 + $0xaa] sm:$0xff]
        %v2855 = vld [vmem:[#allocation2 + $0xb2] sm:$0xff]
        %v2856 = vld [vmem:[#allocation2 + $0xc2] sm:$0xff]
        %v2857 = vld [vmem:[#allocation2 + $0xca] sm:$0xff]
        %v2858 = vld [vmem:[#allocation2 + $0xda] sm:$0xff]
        %v2859 = vld [vmem:[#allocation2 + $0xe2] sm:$0xff]
        %v2860 = vld [vmem:[#allocation2 + $0xf2] sm:$0xff]
        %v2861 = vld [vmem:[#allocation2 + $0xfa] sm:$0xff]
        %v2862 = vld [vmem:[#allocation2 + $0x10a] sm:$0xff]
        %v2863 = vld [vmem:[#allocation2 + $0x112] sm:$0xff]
        %v2864 = vld [vmem:[#allocation2 + $0x122] sm:$0xff]
        %v2865 = vld [vmem:[#allocation2 + $0x12a] sm:$0xff]
        %v2866 = vld [vmem:[#allocation2 + $0x13a] sm:$0xff]
        %v2867 = vld [vmem:[#allocation2 + $0x142] sm:$0xff]
        %v2868 = vld [vmem:[#allocation2 + $0x152] sm:$0xff]
        %v2869 = vld [vmem:[#allocation2 + $0x15a] sm:$0xff]
        %v2870 = vld [vmem:[#allocation2 + $0x16a] sm:$0xff]
        %v2871 = vld [vmem:[#allocation2 + $0x172] sm:$0xff]
        %2904 = vrot.lane.b32.xlu0 %v2808, 32
        %v2905 = vpop.permute.xlu0 %2904
        %2906 = vrot.lane.b32.xlu0 %v2809, 32
        %v2907 = vpop.permute.xlu0 %2906
        %2908 = vrot.lane.b32.xlu0 %v2810, 32
        %v2909 = vpop.permute.xlu0 %2908
        %2910 = vrot.lane.b32.xlu0 %v2811, 32
        %v2911 = vpop.permute.xlu0 %2910
        %2912 = vrot.lane.b32.xlu0 %v2812, 32
        %v2913 = vpop.permute.xlu0 %2912
        %2914 = vrot.lane.b32.xlu0 %v2813, 32
        %v2915 = vpop.permute.xlu0 %2914
        %2916 = vrot.lane.b32.xlu0 %v2814, 32
        %v2917 = vpop.permute.xlu0 %2916
        %2918 = vrot.lane.b32.xlu0 %v2815, 32
        %v2919 = vpop.permute.xlu0 %2918
        %2920 = vrot.lane.b32.xlu0 %v2816, 32
        %v2921 = vpop.permute.xlu0 %2920
        %2922 = vrot.lane.b32.xlu0 %v2817, 32
        %v2923 = vpop.permute.xlu0 %2922
        %2924 = vrot.lane.b32.xlu0 %v2818, 32
        %v2925 = vpop.permute.xlu0 %2924
        %2926 = vrot.lane.b32.xlu0 %v2819, 32
        %v2927 = vpop.permute.xlu0 %2926
        %2928 = vrot.lane.b32.xlu0 %v2820, 32
        %v2929 = vpop.permute.xlu0 %2928
        %2930 = vrot.lane.b32.xlu0 %v2821, 32
        %v2931 = vpop.permute.xlu0 %2930
        %2932 = vrot.lane.b32.xlu0 %v2822, 32
        %v2933 = vpop.permute.xlu0 %2932
        %2934 = vrot.lane.b32.xlu0 %v2823, 32
        %v2935 = vpop.permute.xlu0 %2934
        %2936 = vrot.lane.b32.xlu0 %v2824, 32
        %v2937 = vpop.permute.xlu0 %2936
        %2938 = vrot.lane.b32.xlu0 %v2825, 32
        %v2939 = vpop.permute.xlu0 %2938
        %2940 = vrot.lane.b32.xlu0 %v2826, 32
        %v2941 = vpop.permute.xlu0 %2940
        %2942 = vrot.lane.b32.xlu0 %v2827, 32
        %v2943 = vpop.permute.xlu0 %2942
        %2944 = vrot.lane.b32.xlu0 %v2828, 32
        %v2945 = vpop.permute.xlu0 %2944
        %2946 = vrot.lane.b32.xlu0 %v2829, 32
        %v2947 = vpop.permute.xlu0 %2946
        %2948 = vrot.lane.b32.xlu0 %v2830, 32
        %v2949 = vpop.permute.xlu0 %2948
        %2950 = vrot.lane.b32.xlu0 %v2831, 32
        %v2951 = vpop.permute.xlu0 %2950
        %2952 = vrot.lane.b32.xlu0 %v2832, 32
        %v2953 = vpop.permute.xlu0 %2952
        %2954 = vrot.lane.b32.xlu0 %v2833, 32
        %v2955 = vpop.permute.xlu0 %2954
        %2956 = vrot.lane.b32.xlu0 %v2834, 32
        %v2957 = vpop.permute.xlu0 %2956
        %2958 = vrot.lane.b32.xlu0 %v2835, 32
        %v2959 = vpop.permute.xlu0 %2958
        %2960 = vrot.lane.b32.xlu0 %v2836, 32
        %v2961 = vpop.permute.xlu0 %2960
        %2962 = vrot.lane.b32.xlu0 %v2837, 32
        %v2963 = vpop.permute.xlu0 %2962
        %2964 = vrot.lane.b32.xlu0 %v2838, 32
        %v2965 = vpop.permute.xlu0 %2964
        %2966 = vrot.lane.b32.xlu0 %v2839, 32
        %v2967 = vpop.permute.xlu0 %2966
        %3032 = vrot.lane.b32.xlu0 %v2840, 64
        %v3033 = vpop.permute.xlu0 %3032
        %3034 = vrot.lane.b32.xlu0 %v2841, 64
        %v3035 = vpop.permute.xlu0 %3034
        %3036 = vrot.lane.b32.xlu0 %v2842, 64
        %v3037 = vpop.permute.xlu0 %3036
        %3038 = vrot.lane.b32.xlu0 %v2843, 64
        %v3039 = vpop.permute.xlu0 %3038
        %3040 = vrot.lane.b32.xlu0 %v2844, 64
        %v3041 = vpop.permute.xlu0 %3040
        %3042 = vrot.lane.b32.xlu0 %v2845, 64
        %v3043 = vpop.permute.xlu0 %3042
        %3044 = vrot.lane.b32.xlu0 %v2846, 64
        %v3045 = vpop.permute.xlu0 %3044
        %3046 = vrot.lane.b32.xlu0 %v2847, 64
        %v3047 = vpop.permute.xlu0 %3046
        %3048 = vrot.lane.b32.xlu0 %v2848, 64
        %v3049 = vpop.permute.xlu0 %3048
        %3050 = vrot.lane.b32.xlu0 %v2849, 64
        %v3051 = vpop.permute.xlu0 %3050
        %3052 = vrot.lane.b32.xlu0 %v2850, 64
        %v3053 = vpop.permute.xlu0 %3052
        %3054 = vrot.lane.b32.xlu0 %v2851, 64
        %v3055 = vpop.permute.xlu0 %3054
        %3056 = vrot.lane.b32.xlu0 %v2852, 64
        %v3057 = vpop.permute.xlu0 %3056
        %3058 = vrot.lane.b32.xlu0 %v2853, 64
        %v3059 = vpop.permute.xlu0 %3058
        %3060 = vrot.lane.b32.xlu0 %v2854, 64
        %v3061 = vpop.permute.xlu0 %3060
        %3062 = vrot.lane.b32.xlu0 %v2855, 64
        %v3063 = vpop.permute.xlu0 %3062
        %3064 = vrot.lane.b32.xlu0 %v2856, 64
        %v3065 = vpop.permute.xlu0 %3064
        %3066 = vrot.lane.b32.xlu0 %v2857, 64
        %v3067 = vpop.permute.xlu0 %3066
        %3068 = vrot.lane.b32.xlu0 %v2858, 64
        %v3069 = vpop.permute.xlu0 %3068
        %3070 = vrot.lane.b32.xlu0 %v2859, 64
        %v3071 = vpop.permute.xlu0 %3070
        %3072 = vrot.lane.b32.xlu0 %v2860, 64
        %v3073 = vpop.permute.xlu0 %3072
        %3074 = vrot.lane.b32.xlu0 %v2861, 64
        %v3075 = vpop.permute.xlu0 %3074
        %3076 = vrot.lane.b32.xlu0 %v2862, 64
        %v3077 = vpop.permute.xlu0 %3076
        %3078 = vrot.lane.b32.xlu0 %v2863, 64
        %v3079 = vpop.permute.xlu0 %3078
        %3080 = vrot.lane.b32.xlu0 %v2864, 64
        %v3081 = vpop.permute.xlu0 %3080
        %3082 = vrot.lane.b32.xlu0 %v2865, 64
        %v3083 = vpop.permute.xlu0 %3082
        %3084 = vrot.lane.b32.xlu0 %v2866, 64
        %v3085 = vpop.permute.xlu0 %3084
        %3086 = vrot.lane.b32.xlu0 %v2867, 64
        %v3087 = vpop.permute.xlu0 %3086
        %3088 = vrot.lane.b32.xlu0 %v2868, 64
        %v3089 = vpop.permute.xlu0 %3088
        %3090 = vrot.lane.b32.xlu0 %v2869, 64
        %v3091 = vpop.permute.xlu0 %3090
        %3092 = vrot.lane.b32.xlu0 %v2870, 64
        %v3093 = vpop.permute.xlu0 %3092
        %3094 = vrot.lane.b32.xlu0 %v2871, 64
        %v3095 = vpop.permute.xlu0 %3094
        %v3128 = vsel %vm683, %v2776, %v2905
        %v3129 = vsel %vm683, %v2777, %v2907
        %v3130 = vsel %vm683, %v2778, %v2909
        %v3131 = vsel %vm683, %v2779, %v2911
        %v3132 = vsel %vm683, %v2780, %v2913
        %v3133 = vsel %vm683, %v2781, %v2915
        %v3134 = vsel %vm683, %v2782, %v2917
        %v3135 = vsel %vm683, %v2783, %v2919
        %v3136 = vsel %vm683, %v2784, %v2921
        %v3137 = vsel %vm683, %v2785, %v2923
        %v3138 = vsel %vm683, %v2786, %v2925
        %v3139 = vsel %vm683, %v2787, %v2927
        %v3140 = vsel %vm683, %v2788, %v2929
        %v3141 = vsel %vm683, %v2789, %v2931
        %v3142 = vsel %vm683, %v2790, %v2933
        %v3143 = vsel %vm683, %v2791, %v2935
        %v3144 = vsel %vm683, %v2792, %v2937
        %v3145 = vsel %vm683, %v2793, %v2939
        %v3146 = vsel %vm683, %v2794, %v2941
        %v3147 = vsel %vm683, %v2795, %v2943
        %v3148 = vsel %vm683, %v2796, %v2945
        %v3149 = vsel %vm683, %v2797, %v2947
        %v3150 = vsel %vm683, %v2798, %v2949
        %v3151 = vsel %vm683, %v2799, %v2951
        %v3152 = vsel %vm683, %v2800, %v2953
        %v3153 = vsel %vm683, %v2801, %v2955
        %v3154 = vsel %vm683, %v2802, %v2957
        %v3155 = vsel %vm683, %v2803, %v2959
        %v3156 = vsel %vm683, %v2804, %v2961
        %v3157 = vsel %vm683, %v2805, %v2963
        %v3158 = vsel %vm683, %v2806, %v2965
        %v3159 = vsel %vm683, %v2807, %v2967
        %v3160 = vsel %vm716, %v3128, %v3033
        %v3161 = vsel %vm716, %v3129, %v3035
        %v3162 = vsel %vm716, %v3130, %v3037
        %v3163 = vsel %vm716, %v3131, %v3039
        %v3164 = vsel %vm716, %v3132, %v3041
        %v3165 = vsel %vm716, %v3133, %v3043
        %v3166 = vsel %vm716, %v3134, %v3045
        %v3167 = vsel %vm716, %v3135, %v3047
        %v3168 = vsel %vm716, %v3136, %v3049
        %v3169 = vsel %vm716, %v3137, %v3051
        %v3170 = vsel %vm716, %v3138, %v3053
        %v3171 = vsel %vm716, %v3139, %v3055
        %v3172 = vsel %vm716, %v3140, %v3057
        %v3173 = vsel %vm716, %v3141, %v3059
        %v3174 = vsel %vm716, %v3142, %v3061
        %v3175 = vsel %vm716, %v3143, %v3063
        %v3176 = vsel %vm716, %v3144, %v3065
        %v3177 = vsel %vm716, %v3145, %v3067
        %v3178 = vsel %vm716, %v3146, %v3069
        %v3179 = vsel %vm716, %v3147, %v3071
        %v3180 = vsel %vm716, %v3148, %v3073
        %v3181 = vsel %vm716, %v3149, %v3075
        %v3182 = vsel %vm716, %v3150, %v3077
        %v3183 = vsel %vm716, %v3151, %v3079
        %v3184 = vsel %vm716, %v3152, %v3081
        %v3185 = vsel %vm716, %v3153, %v3083
        %v3186 = vsel %vm716, %v3154, %v3085
        %v3187 = vsel %vm716, %v3155, %v3087
        %v3188 = vsel %vm716, %v3156, %v3089
        %v3189 = vsel %vm716, %v3157, %v3091
        %v3190 = vsel %vm716, %v3158, %v3093
        %v3191 = vsel %vm716, %v3159, %v3095
        %v3192 = vld [vmem:[%s3] sm:$0xff]
        %v3193 = vld [vmem:[%s3 + $0x8] sm:$0xff]
        %v3194 = vld [vmem:[%s3 + $0x10] sm:$0xff]
        %v3195 = vld [vmem:[%s3 + $0x18] sm:$0xff]
        %v3196 = vld [vmem:[%s3 + $0x20] sm:$0xff]
        %v3197 = vld [vmem:[%s3 + $0x28] sm:$0xff]
        %v3198 = vld [vmem:[%s3 + $0x30] sm:$0xff]
        %v3199 = vld [vmem:[%s3 + $0x38] sm:$0xff]
        %v3200 = vld [vmem:[%s3 + $0x40] sm:$0xff]
        %v3201 = vld [vmem:[%s3 + $0x48] sm:$0xff]
        %v3202 = vld [vmem:[%s3 + $0x50] sm:$0xff]
        %v3203 = vld [vmem:[%s3 + $0x58] sm:$0xff]
        %v3204 = vld [vmem:[%s2743] sm:$0xff]
        %v3205 = vld [vmem:[%s2743 + $0x8] sm:$0xff]
        %v3206 = vld [vmem:[%s2743 + $0x18] sm:$0xff]
        %v3207 = vld [vmem:[%s2743 + $0x20] sm:$0xff]
        %v3208 = vld [vmem:[%s2743 + $0x30] sm:$0xff]
        %v3209 = vld [vmem:[%s2743 + $0x38] sm:$0xff]
        %v3210 = vld [vmem:[%s2743 + $0x48] sm:$0xff]
        %v3211 = vld [vmem:[%s2743 + $0x50] sm:$0xff]
        %v3212 = vld [vmem:[%s2743 + $0x60] sm:$0xff]
        %v3213 = vld [vmem:[%s2743 + $0x68] sm:$0xff]
        %v3214 = vld [vmem:[%s2743 + $0x78] sm:$0xff]
        %v3215 = vld [vmem:[%s2743 + $0x80] sm:$0xff]
        %v3216 = vld [vmem:[%s2743 + $0x90] sm:$0xff]
        %v3217 = vld [vmem:[%s2743 + $0x98] sm:$0xff]
        %v3218 = vld [vmem:[%s2743 + $0xa8] sm:$0xff]
        %v3219 = vld [vmem:[%s2743 + $0xb0] sm:$0xff]
        %v3220 = vld [vmem:[%s2743 + $0xc0] sm:$0xff]
        %v3221 = vld [vmem:[%s2743 + $0xc8] sm:$0xff]
        %v3222 = vld [vmem:[%s2743 + $0xd8] sm:$0xff]
        %v3223 = vld [vmem:[%s2743 + $0xe0] sm:$0xff]
        %v3224 = vld [vmem:[%s2743 + $0xf0] sm:$0xff]
        %v3225 = vld [vmem:[%s2743 + $0xf8] sm:$0xff]
        %v3226 = vld [vmem:[%s2743 + $0x108] sm:$0xff]
        %v3227 = vld [vmem:[%s2743 + $0x110] sm:$0xff]
        %v3228 = vld [vmem:[%s2743 + $0x120] sm:$0xff]
        %v3229 = vld [vmem:[%s2743 + $0x128] sm:$0xff]
        %v3230 = vld [vmem:[%s2743 + $0x138] sm:$0xff]
        %v3231 = vld [vmem:[%s2743 + $0x140] sm:$0xff]
        %v3232 = vld [vmem:[%s2743 + $0x150] sm:$0xff]
        %v3233 = vld [vmem:[%s2743 + $0x158] sm:$0xff]
        %v3234 = vld [vmem:[%s2743 + $0x168] sm:$0xff]
        %v3235 = vld [vmem:[%s2743 + $0x170] sm:$0xff]
        %v3236 = vld [vmem:[%s2743 + $0x1] sm:$0xff]
        %v3237 = vld [vmem:[%s2743 + $0x9] sm:$0xff]
        %v3238 = vld [vmem:[%s2743 + $0x19] sm:$0xff]
        %v3239 = vld [vmem:[%s2743 + $0x21] sm:$0xff]
        %v3240 = vld [vmem:[%s2743 + $0x31] sm:$0xff]
        %v3241 = vld [vmem:[%s2743 + $0x39] sm:$0xff]
        %v3242 = vld [vmem:[%s2743 + $0x49] sm:$0xff]
        %v3243 = vld [vmem:[%s2743 + $0x51] sm:$0xff]
        %v3244 = vld [vmem:[%s2743 + $0x61] sm:$0xff]
        %v3245 = vld [vmem:[%s2743 + $0x69] sm:$0xff]
        %v3246 = vld [vmem:[%s2743 + $0x79] sm:$0xff]
        %v3247 = vld [vmem:[%s2743 + $0x81] sm:$0xff]
        %v3248 = vld [vmem:[%s2743 + $0x91] sm:$0xff]
        %v3249 = vld [vmem:[%s2743 + $0x99] sm:$0xff]
        %v3250 = vld [vmem:[%s2743 + $0xa9] sm:$0xff]
        %v3251 = vld [vmem:[%s2743 + $0xb1] sm:$0xff]
        %v3252 = vld [vmem:[%s2743 + $0xc1] sm:$0xff]
        %v3253 = vld [vmem:[%s2743 + $0xc9] sm:$0xff]
        %v3254 = vld [vmem:[%s2743 + $0xd9] sm:$0xff]
        %v3255 = vld [vmem:[%s2743 + $0xe1] sm:$0xff]
        %v3256 = vld [vmem:[%s2743 + $0xf1] sm:$0xff]
        %v3257 = vld [vmem:[%s2743 + $0xf9] sm:$0xff]
        %v3258 = vld [vmem:[%s2743 + $0x109] sm:$0xff]
        %v3259 = vld [vmem:[%s2743 + $0x111] sm:$0xff]
        %v3260 = vld [vmem:[%s2743 + $0x121] sm:$0xff]
        %v3261 = vld [vmem:[%s2743 + $0x129] sm:$0xff]
        %v3262 = vld [vmem:[%s2743 + $0x139] sm:$0xff]
        %v3263 = vld [vmem:[%s2743 + $0x141] sm:$0xff]
        %v3264 = vld [vmem:[%s2743 + $0x151] sm:$0xff]
        %v3265 = vld [vmem:[%s2743 + $0x159] sm:$0xff]
        %v3266 = vld [vmem:[%s2743 + $0x169] sm:$0xff]
        %v3267 = vld [vmem:[%s2743 + $0x171] sm:$0xff]
        %v3268 = vld [vmem:[%s2743 + $0x2] sm:$0xff]
        %v3269 = vld [vmem:[%s2743 + $0xa] sm:$0xff]
        %v3270 = vld [vmem:[%s2743 + $0x1a] sm:$0xff]
        %v3271 = vld [vmem:[%s2743 + $0x22] sm:$0xff]
        %v3272 = vld [vmem:[%s2743 + $0x32] sm:$0xff]
        %v3273 = vld [vmem:[%s2743 + $0x3a] sm:$0xff]
        %v3274 = vld [vmem:[%s2743 + $0x4a] sm:$0xff]
        %v3275 = vld [vmem:[%s2743 + $0x52] sm:$0xff]
        %v3276 = vld [vmem:[%s2743 + $0x62] sm:$0xff]
        %v3277 = vld [vmem:[%s2743 + $0x6a] sm:$0xff]
        %v3278 = vld [vmem:[%s2743 + $0x7a] sm:$0xff]
        %v3279 = vld [vmem:[%s2743 + $0x82] sm:$0xff]
        %v3280 = vld [vmem:[%s2743 + $0x92] sm:$0xff]
        %v3281 = vld [vmem:[%s2743 + $0x9a] sm:$0xff]
        %v3282 = vld [vmem:[%s2743 + $0xaa] sm:$0xff]
        %v3283 = vld [vmem:[%s2743 + $0xb2] sm:$0xff]
        %v3284 = vld [vmem:[%s2743 + $0xc2] sm:$0xff]
        %v3285 = vld [vmem:[%s2743 + $0xca] sm:$0xff]
        %v3286 = vld [vmem:[%s2743 + $0xda] sm:$0xff]
        %v3287 = vld [vmem:[%s2743 + $0xe2] sm:$0xff]
        %v3288 = vld [vmem:[%s2743 + $0xf2] sm:$0xff]
        %v3289 = vld [vmem:[%s2743 + $0xfa] sm:$0xff]
        %v3290 = vld [vmem:[%s2743 + $0x10a] sm:$0xff]
        %v3291 = vld [vmem:[%s2743 + $0x112] sm:$0xff]
        %v3292 = vld [vmem:[%s2743 + $0x122] sm:$0xff]
        %v3293 = vld [vmem:[%s2743 + $0x12a] sm:$0xff]
        %v3294 = vld [vmem:[%s2743 + $0x13a] sm:$0xff]
        %v3295 = vld [vmem:[%s2743 + $0x142] sm:$0xff]
        %v3296 = vld [vmem:[%s2743 + $0x152] sm:$0xff]
        %v3297 = vld [vmem:[%s2743 + $0x15a] sm:$0xff]
        %v3298 = vld [vmem:[%s2743 + $0x16a] sm:$0xff]
        %v3299 = vld [vmem:[%s2743 + $0x172] sm:$0xff]
        %3332 = vrot.lane.b32.xlu0 %v3236, 32
        %v3333 = vpop.permute.xlu0 %3332
        %3334 = vrot.lane.b32.xlu0 %v3237, 32
        %v3335 = vpop.permute.xlu0 %3334
        %3336 = vrot.lane.b32.xlu0 %v3238, 32
        %v3337 = vpop.permute.xlu0 %3336
        %3338 = vrot.lane.b32.xlu0 %v3239, 32
        %v3339 = vpop.permute.xlu0 %3338
        %3340 = vrot.lane.b32.xlu0 %v3240, 32
        %v3341 = vpop.permute.xlu0 %3340
        %3342 = vrot.lane.b32.xlu0 %v3241, 32
        %v3343 = vpop.permute.xlu0 %3342
        %3344 = vrot.lane.b32.xlu0 %v3242, 32
        %v3345 = vpop.permute.xlu0 %3344
        %3346 = vrot.lane.b32.xlu0 %v3243, 32
        %v3347 = vpop.permute.xlu0 %3346
        %3348 = vrot.lane.b32.xlu0 %v3244, 32
        %v3349 = vpop.permute.xlu0 %3348
        %3350 = vrot.lane.b32.xlu0 %v3245, 32
        %v3351 = vpop.permute.xlu0 %3350
        %3352 = vrot.lane.b32.xlu0 %v3246, 32
        %v3353 = vpop.permute.xlu0 %3352
        %3354 = vrot.lane.b32.xlu0 %v3247, 32
        %v3355 = vpop.permute.xlu0 %3354
        %3356 = vrot.lane.b32.xlu0 %v3248, 32
        %v3357 = vpop.permute.xlu0 %3356
        %3358 = vrot.lane.b32.xlu0 %v3249, 32
        %v3359 = vpop.permute.xlu0 %3358
        %3360 = vrot.lane.b32.xlu0 %v3250, 32
        %v3361 = vpop.permute.xlu0 %3360
        %3362 = vrot.lane.b32.xlu0 %v3251, 32
        %v3363 = vpop.permute.xlu0 %3362
        %3364 = vrot.lane.b32.xlu0 %v3252, 32
        %v3365 = vpop.permute.xlu0 %3364
        %3366 = vrot.lane.b32.xlu0 %v3253, 32
        %v3367 = vpop.permute.xlu0 %3366
        %3368 = vrot.lane.b32.xlu0 %v3254, 32
        %v3369 = vpop.permute.xlu0 %3368
        %3370 = vrot.lane.b32.xlu0 %v3255, 32
        %v3371 = vpop.permute.xlu0 %3370
        %3372 = vrot.lane.b32.xlu0 %v3256, 32
        %v3373 = vpop.permute.xlu0 %3372
        %3374 = vrot.lane.b32.xlu0 %v3257, 32
        %v3375 = vpop.permute.xlu0 %3374
        %3376 = vrot.lane.b32.xlu0 %v3258, 32
        %v3377 = vpop.permute.xlu0 %3376
        %3378 = vrot.lane.b32.xlu0 %v3259, 32
        %v3379 = vpop.permute.xlu0 %3378
        %3380 = vrot.lane.b32.xlu0 %v3260, 32
        %v3381 = vpop.permute.xlu0 %3380
        %3382 = vrot.lane.b32.xlu0 %v3261, 32
        %v3383 = vpop.permute.xlu0 %3382
        %3384 = vrot.lane.b32.xlu0 %v3262, 32
        %v3385 = vpop.permute.xlu0 %3384
        %3386 = vrot.lane.b32.xlu0 %v3263, 32
        %v3387 = vpop.permute.xlu0 %3386
        %3388 = vrot.lane.b32.xlu0 %v3264, 32
        %v3389 = vpop.permute.xlu0 %3388
        %3390 = vrot.lane.b32.xlu0 %v3265, 32
        %v3391 = vpop.permute.xlu0 %3390
        %3392 = vrot.lane.b32.xlu0 %v3266, 32
        %v3393 = vpop.permute.xlu0 %3392
        %3394 = vrot.lane.b32.xlu0 %v3267, 32
        %v3395 = vpop.permute.xlu0 %3394
        %3460 = vrot.lane.b32.xlu0 %v3268, 64
        %v3461 = vpop.permute.xlu0 %3460
        %3462 = vrot.lane.b32.xlu0 %v3269, 64
        %v3463 = vpop.permute.xlu0 %3462
        %3464 = vrot.lane.b32.xlu0 %v3270, 64
        %v3465 = vpop.permute.xlu0 %3464
        %3466 = vrot.lane.b32.xlu0 %v3271, 64
        %v3467 = vpop.permute.xlu0 %3466
        %3468 = vrot.lane.b32.xlu0 %v3272, 64
        %v3469 = vpop.permute.xlu0 %3468
        %3470 = vrot.lane.b32.xlu0 %v3273, 64
        %v3471 = vpop.permute.xlu0 %3470
        %3472 = vrot.lane.b32.xlu0 %v3274, 64
        %v3473 = vpop.permute.xlu0 %3472
        %3474 = vrot.lane.b32.xlu0 %v3275, 64
        %v3475 = vpop.permute.xlu0 %3474
        %3476 = vrot.lane.b32.xlu0 %v3276, 64
        %v3477 = vpop.permute.xlu0 %3476
        %3478 = vrot.lane.b32.xlu0 %v3277, 64
        %v3479 = vpop.permute.xlu0 %3478
        %3480 = vrot.lane.b32.xlu0 %v3278, 64
        %v3481 = vpop.permute.xlu0 %3480
        %3482 = vrot.lane.b32.xlu0 %v3279, 64
        %v3483 = vpop.permute.xlu0 %3482
        %3484 = vrot.lane.b32.xlu0 %v3280, 64
        %v3485 = vpop.permute.xlu0 %3484
        %3486 = vrot.lane.b32.xlu0 %v3281, 64
        %v3487 = vpop.permute.xlu0 %3486
        %3488 = vrot.lane.b32.xlu0 %v3282, 64
        %v3489 = vpop.permute.xlu0 %3488
        %3490 = vrot.lane.b32.xlu0 %v3283, 64
        %v3491 = vpop.permute.xlu0 %3490
        %3492 = vrot.lane.b32.xlu0 %v3284, 64
        %v3493 = vpop.permute.xlu0 %3492
        %3494 = vrot.lane.b32.xlu0 %v3285, 64
        %v3495 = vpop.permute.xlu0 %3494
        %3496 = vrot.lane.b32.xlu0 %v3286, 64
        %v3497 = vpop.permute.xlu0 %3496
        %3498 = vrot.lane.b32.xlu0 %v3287, 64
        %v3499 = vpop.permute.xlu0 %3498
        %3500 = vrot.lane.b32.xlu0 %v3288, 64
        %v3501 = vpop.permute.xlu0 %3500
        %3502 = vrot.lane.b32.xlu0 %v3289, 64
        %v3503 = vpop.permute.xlu0 %3502
        %3504 = vrot.lane.b32.xlu0 %v3290, 64
        %v3505 = vpop.permute.xlu0 %3504
        %3506 = vrot.lane.b32.xlu0 %v3291, 64
        %v3507 = vpop.permute.xlu0 %3506
        %3508 = vrot.lane.b32.xlu0 %v3292, 64
        %v3509 = vpop.permute.xlu0 %3508
        %3510 = vrot.lane.b32.xlu0 %v3293, 64
        %v3511 = vpop.permute.xlu0 %3510
        %3512 = vrot.lane.b32.xlu0 %v3294, 64
        %v3513 = vpop.permute.xlu0 %3512
        %3514 = vrot.lane.b32.xlu0 %v3295, 64
        %v3515 = vpop.permute.xlu0 %3514
        %3516 = vrot.lane.b32.xlu0 %v3296, 64
        %v3517 = vpop.permute.xlu0 %3516
        %3518 = vrot.lane.b32.xlu0 %v3297, 64
        %v3519 = vpop.permute.xlu0 %3518
        %3520 = vrot.lane.b32.xlu0 %v3298, 64
        %v3521 = vpop.permute.xlu0 %3520
        %3522 = vrot.lane.b32.xlu0 %v3299, 64
        %v3523 = vpop.permute.xlu0 %3522
        %v3556 = vsel %vm683, %v3204, %v3333
        %v3557 = vsel %vm683, %v3205, %v3335
        %v3558 = vsel %vm683, %v3206, %v3337
        %v3559 = vsel %vm683, %v3207, %v3339
        %v3560 = vsel %vm683, %v3208, %v3341
        %v3561 = vsel %vm683, %v3209, %v3343
        %v3562 = vsel %vm683, %v3210, %v3345
        %v3563 = vsel %vm683, %v3211, %v3347
        %v3564 = vsel %vm683, %v3212, %v3349
        %v3565 = vsel %vm683, %v3213, %v3351
        %v3566 = vsel %vm683, %v3214, %v3353
        %v3567 = vsel %vm683, %v3215, %v3355
        %v3568 = vsel %vm683, %v3216, %v3357
        %v3569 = vsel %vm683, %v3217, %v3359
        %v3570 = vsel %vm683, %v3218, %v3361
        %v3571 = vsel %vm683, %v3219, %v3363
        %v3572 = vsel %vm683, %v3220, %v3365
        %v3573 = vsel %vm683, %v3221, %v3367
        %v3574 = vsel %vm683, %v3222, %v3369
        %v3575 = vsel %vm683, %v3223, %v3371
        %v3576 = vsel %vm683, %v3224, %v3373
        %v3577 = vsel %vm683, %v3225, %v3375
        %v3578 = vsel %vm683, %v3226, %v3377
        %v3579 = vsel %vm683, %v3227, %v3379
        %v3580 = vsel %vm683, %v3228, %v3381
        %v3581 = vsel %vm683, %v3229, %v3383
        %v3582 = vsel %vm683, %v3230, %v3385
        %v3583 = vsel %vm683, %v3231, %v3387
        %v3584 = vsel %vm683, %v3232, %v3389
        %v3585 = vsel %vm683, %v3233, %v3391
        %v3586 = vsel %vm683, %v3234, %v3393
        %v3587 = vsel %vm683, %v3235, %v3395
        %v3588 = vsel %vm716, %v3556, %v3461
        %v3589 = vsel %vm716, %v3557, %v3463
        %v3590 = vsel %vm716, %v3558, %v3465
        %v3591 = vsel %vm716, %v3559, %v3467
        %v3592 = vsel %vm716, %v3560, %v3469
        %v3593 = vsel %vm716, %v3561, %v3471
        %v3594 = vsel %vm716, %v3562, %v3473
        %v3595 = vsel %vm716, %v3563, %v3475
        %v3596 = vsel %vm716, %v3564, %v3477
        %v3597 = vsel %vm716, %v3565, %v3479
        %v3598 = vsel %vm716, %v3566, %v3481
        %v3599 = vsel %vm716, %v3567, %v3483
        %v3600 = vsel %vm716, %v3568, %v3485
        %v3601 = vsel %vm716, %v3569, %v3487
        %v3602 = vsel %vm716, %v3570, %v3489
        %v3603 = vsel %vm716, %v3571, %v3491
        %v3604 = vsel %vm716, %v3572, %v3493
        %v3605 = vsel %vm716, %v3573, %v3495
        %v3606 = vsel %vm716, %v3574, %v3497
        %v3607 = vsel %vm716, %v3575, %v3499
        %v3608 = vsel %vm716, %v3576, %v3501
        %v3609 = vsel %vm716, %v3577, %v3503
        %v3610 = vsel %vm716, %v3578, %v3505
        %v3611 = vsel %vm716, %v3579, %v3507
        %v3612 = vsel %vm716, %v3580, %v3509
        %v3613 = vsel %vm716, %v3581, %v3511
        %v3614 = vsel %vm716, %v3582, %v3513
        %v3615 = vsel %vm716, %v3583, %v3515
        %v3616 = vsel %vm716, %v3584, %v3517
        %v3617 = vsel %vm716, %v3585, %v3519
        %v3618 = vsel %vm716, %v3586, %v3521
        %v3619 = vsel %vm716, %v3587, %v3523
        %s3620 = scalar_lea.vmem %s3, 96
        %v3621 = vld [vmem:[%s3620] sm:$0xff]
        %v3622 = vld [vmem:[%s3620 + $0x8] sm:$0xff]
        %v3623 = vld [vmem:[%s3620 + $0x10] sm:$0xff]
        %v3624 = vld [vmem:[%s3620 + $0x18] sm:$0xff]
        %v3625 = vld [vmem:[%s3620 + $0x20] sm:$0xff]
        %v3626 = vld [vmem:[%s3620 + $0x28] sm:$0xff]
        %v3627 = vld [vmem:[%s3620 + $0x30] sm:$0xff]
        %v3628 = vld [vmem:[%s3620 + $0x38] sm:$0xff]
        %v3629 = vld [vmem:[%s3620 + $0x40] sm:$0xff]
        %v3630 = vld [vmem:[%s3620 + $0x48] sm:$0xff]
        %v3631 = vld [vmem:[%s3620 + $0x50] sm:$0xff]
        %v3632 = vld [vmem:[%s3620 + $0x58] sm:$0xff]
        %v3634 = vsel %vm1191, %v3588, 0
        %v3637 = vsel %vm1191, %v3589, 0
        %v3640 = vsel %vm1191, %v3590, 0
        %v3643 = vsel %vm1191, %v3591, 0
        %v3646 = vsel %vm1191, %v3592, 0
        %v3649 = vsel %vm1191, %v3593, 0
        %v3652 = vsel %vm1191, %v3594, 0
        %v3655 = vsel %vm1191, %v3595, 0
        %v3658 = vsel %vm1191, %v3596, 0
        %v3661 = vsel %vm1191, %v3597, 0
        %v3664 = vsel %vm1191, %v3598, 0
        %v3667 = vsel %vm1191, %v3599, 0
        %v3670 = vsel %vm1191, %v3600, 0
        %v3673 = vsel %vm1191, %v3601, 0
        %v3676 = vsel %vm1191, %v3602, 0
        %v3679 = vsel %vm1191, %v3603, 0
        %v3682 = vsel %vm1191, %v3604, 0
        %v3685 = vsel %vm1191, %v3605, 0
        %v3688 = vsel %vm1191, %v3606, 0
        %v3691 = vsel %vm1191, %v3607, 0
        %v3694 = vsel %vm1191, %v3608, 0
        %v3697 = vsel %vm1191, %v3609, 0
        %v3700 = vsel %vm1191, %v3610, 0
        %v3703 = vsel %vm1191, %v3611, 0
        %v3706 = vsel %vm1191, %v3612, 0
        %v3709 = vsel %vm1191, %v3613, 0
        %v3712 = vsel %vm1191, %v3614, 0
        %v3715 = vsel %vm1191, %v3615, 0
        %v3718 = vsel %vm1191, %v3616, 0
        %v3721 = vsel %vm1191, %v3617, 0
        %v3724 = vsel %vm1191, %v3618, 0
        %v3727 = vsel %vm1191, %v3619, 0
        %3729 = vmatprep.subr.mxu0 0.0
        %3730 = vmatpush1.msra.mxu0 %v3621
        %3731 = vmatprep.subr.mxu0 0.0
        %3732 = vmatpush1.msra.mxu0 %v3622
        %3733 = vmatprep.subr.mxu0 0.0
        %3734 = vmatpush1.msra.mxu0 %v3623
        %3735 = vmatprep.subr.mxu0 0.0
        %3736 = vmatpush1.msra.mxu0 %v3624
        %3737 = vmatprep.subr.mxu0 0.0
        %3738 = vmatpush1.msra.mxu0 %v3625
        %3739 = vmatprep.subr.mxu0 0.0
        %3740 = vmatpush1.msra.mxu0 %v3626
        %3741 = vmatprep.subr.mxu0 0.0
        %3742 = vmatpush1.msra.mxu0 %v3627
        %3743 = vmatprep.subr.mxu0 0.0
        %3744 = vmatpush1.msra.mxu0 %v3628
        %3745 = vmatprep.subr.mxu0 0.0
        %3746 = vmatpush1.msra.mxu0 %v3629
        %3747 = vmatprep.subr.mxu0 0.0
        %3748 = vmatpush1.msra.mxu0 %v3630
        %3749 = vmatprep.subr.mxu0 0.0
        %3750 = vmatpush1.msra.mxu0 %v3631
        %3751 = vmatprep.subr.mxu0 0.0
        %3752 = vmatpush1.msra.mxu0 %v3632
        %3753 = vmatprep.subr.mxu0 0.0
        %3754 = vmatpush1.msra.mxu0 0.0
        %3755 = vmatprep.subr.mxu0 0.0
        %3756 = vmatpush1.msra.mxu0 0.0
        %3757 = vmatprep.subr.mxu0 0.0
        %3758 = vmatpush1.msra.mxu0 0.0
        %3759 = vmatprep.subr.mxu0 0.0
        %3760 = vmatpush1.msra.mxu0 0.0
        %3761 = vmatprep.subr.mxu0 0.0
        %3762 = vmatpush1.msra.mxu0 0.0
        %3763 = vmatprep.subr.mxu0 0.0
        %3764 = vmatpush1.msra.mxu0 0.0
        %3765 = vmatprep.subr.mxu0 0.0
        %3766 = vmatpush1.msra.mxu0 0.0
        %3767 = vmatprep.subr.mxu0 0.0
        %3768 = vmatpush1.msra.mxu0 0.0
        %3769 = vmatprep.subr.mxu0 0.0
        %3770 = vmatpush1.msra.mxu0 0.0
        %3771 = vmatprep.subr.mxu0 0.0
        %3772 = vmatpush1.msra.mxu0 0.0
        %3773 = vmatprep.subr.mxu0 0.0
        %3774 = vmatpush1.msra.mxu0 0.0
        %3775 = vmatprep.subr.mxu0 0.0
        %3776 = vmatpush1.msra.mxu0 0.0
        %3777 = vmatprep.subr.mxu0 0.0
        %3778 = vmatpush1.msra.mxu0 0.0
        %3779 = vmatprep.subr.mxu0 0.0
        %3780 = vmatpush1.msra.mxu0 0.0
        %3781 = vmatprep.subr.mxu0 0.0
        %3782 = vmatpush1.msra.mxu0 0.0
        %3783 = vmatprep.subr.mxu0 0.0
        %3784 = vmatpush1.msra.mxu0 0.0
        %3785 = vmatprep.subr.mxu0 0.0
        %3786 = vmatpush1.msra.mxu0 0.0
        %3787 = vmatprep.subr.mxu0 0.0
        %3788 = vmatpush1.msra.mxu0 0.0
        %3789 = vmatprep.subr.mxu0 0.0
        %3790 = vmatpush1.msra.mxu0 0.0
        %3791 = vmatprep.subr.mxu0 0.0
        %3792 = vmatpush1.msra.mxu0 0.0
        %3793 = vmatprep.mubr.f32.mxu0 0.0
        %3794 = vmatmul.mubr.f32.gmra.mrb[0].mxu0 %v3634
        %v3795 = vpop.f32.mrb[0].mxu0
        %v3796 = vadd.f32 0.0, %v3795
        %v3797 = vpop.f32.mrb[0].mxu0
        %3798 = vmatprep.mubr.f32.mxu0 0.0
        %3799 = vmatmul.mubr.f32.gmra.mrb[0].mxu0 %v3637
        %v3800 = vpop.f32.mrb[0].mxu0
        %v3801 = vadd.f32 0.0, %v3800
        %v3802 = vpop.f32.mrb[0].mxu0
        %3803 = vmatprep.mubr.f32.mxu0 0.0
        %3804 = vmatmul.mubr.f32.gmra.mrb[0].mxu0 %v3640
        %v3805 = vpop.f32.mrb[0].mxu0
        %v3806 = vadd.f32 0.0, %v3805
        %v3807 = vpop.f32.mrb[0].mxu0
        %3808 = vmatprep.mubr.f32.mxu0 0.0
        %3809 = vmatmul.mubr.f32.gmra.mrb[0].mxu0 %v3643
        %v3810 = vpop.f32.mrb[0].mxu0
        %v3811 = vadd.f32 0.0, %v3810
        %v3812 = vpop.f32.mrb[0].mxu0
        %3813 = vmatprep.mubr.f32.mxu0 0.0
        %3814 = vmatmul.mubr.f32.gmra.mrb[0].mxu0 %v3646
        %v3815 = vpop.f32.mrb[0].mxu0
        %v3816 = vadd.f32 0.0, %v3815
        %v3817 = vpop.f32.mrb[0].mxu0
        %3818 = vmatprep.mubr.f32.mxu0 0.0
        %3819 = vmatmul.mubr.f32.gmra.mrb[0].mxu0 %v3649
        %v3820 = vpop.f32.mrb[0].mxu0
        %v3821 = vadd.f32 0.0, %v3820
        %v3822 = vpop.f32.mrb[0].mxu0
        %3823 = vmatprep.mubr.f32.mxu0 0.0
        %3824 = vmatmul.mubr.f32.gmra.mrb[0].mxu0 %v3652
        %v3825 = vpop.f32.mrb[0].mxu0
        %v3826 = vadd.f32 0.0, %v3825
        %v3827 = vpop.f32.mrb[0].mxu0
        %3828 = vmatprep.mubr.f32.mxu0 0.0
        %3829 = vmatmul.mubr.f32.gmra.mrb[0].mxu0 %v3655
        %v3830 = vpop.f32.mrb[0].mxu0
        %v3831 = vadd.f32 0.0, %v3830
        %v3832 = vpop.f32.mrb[0].mxu0
        %3833 = vmatprep.mubr.f32.mxu0 0.0
        %3834 = vmatmul.mubr.f32.gmra.mrb[0].mxu0 %v3658
        %v3835 = vpop.f32.mrb[0].mxu0
        %v3836 = vadd.f32 0.0, %v3835
        %v3837 = vpop.f32.mrb[0].mxu0
        %3838 = vmatprep.mubr.f32.mxu0 0.0
        %3839 = vmatmul.mubr.f32.gmra.mrb[0].mxu0 %v3661
        %v3840 = vpop.f32.mrb[0].mxu0
        %v3841 = vadd.f32 0.0, %v3840
        %v3842 = vpop.f32.mrb[0].mxu0
        %3843 = vmatprep.mubr.f32.mxu0 0.0
        %3844 = vmatmul.mubr.f32.gmra.mrb[0].mxu0 %v3664
        %v3845 = vpop.f32.mrb[0].mxu0
        %v3846 = vadd.f32 0.0, %v3845
        %v3847 = vpop.f32.mrb[0].mxu0
        %3848 = vmatprep.mubr.f32.mxu0 0.0
        %3849 = vmatmul.mubr.f32.gmra.mrb[0].mxu0 %v3667
        %v3850 = vpop.f32.mrb[0].mxu0
        %v3851 = vadd.f32 0.0, %v3850
        %v3852 = vpop.f32.mrb[0].mxu0
        %3853 = vmatprep.mubr.f32.mxu0 0.0
        %3854 = vmatmul.mubr.f32.gmra.mrb[0].mxu0 %v3670
        %v3855 = vpop.f32.mrb[0].mxu0
        %v3856 = vadd.f32 0.0, %v3855
        %v3857 = vpop.f32.mrb[0].mxu0
        %3858 = vmatprep.mubr.f32.mxu0 0.0
        %3859 = vmatmul.mubr.f32.gmra.mrb[0].mxu0 %v3673
        %v3860 = vpop.f32.mrb[0].mxu0
        %v3861 = vadd.f32 0.0, %v3860
        %v3862 = vpop.f32.mrb[0].mxu0
        %3863 = vmatprep.mubr.f32.mxu0 0.0
        %3864 = vmatmul.mubr.f32.gmra.mrb[0].mxu0 %v3676
        %v3865 = vpop.f32.mrb[0].mxu0
        %v3866 = vadd.f32 0.0, %v3865
        %v3867 = vpop.f32.mrb[0].mxu0
        %3868 = vmatprep.mubr.f32.mxu0 0.0
        %3869 = vmatmul.mubr.f32.gmra.mrb[0].mxu0 %v3679
        %v3870 = vpop.f32.mrb[0].mxu0
        %v3871 = vadd.f32 0.0, %v3870
        %v3872 = vpop.f32.mrb[0].mxu0
        %3873 = vmatprep.mubr.f32.mxu0 0.0
        %3874 = vmatmul.mubr.f32.gmra.mrb[0].mxu0 %v3682
        %v3875 = vpop.f32.mrb[0].mxu0
        %v3876 = vadd.f32 0.0, %v3875
        %v3877 = vpop.f32.mrb[0].mxu0
        %3878 = vmatprep.mubr.f32.mxu0 0.0
        %3879 = vmatmul.mubr.f32.gmra.mrb[0].mxu0 %v3685
        %v3880 = vpop.f32.mrb[0].mxu0
        %v3881 = vadd.f32 0.0, %v3880
        %v3882 = vpop.f32.mrb[0].mxu0
        %3883 = vmatprep.mubr.f32.mxu0 0.0
        %3884 = vmatmul.mubr.f32.gmra.mrb[0].mxu0 %v3688
        %v3885 = vpop.f32.mrb[0].mxu0
        %v3886 = vadd.f32 0.0, %v3885
        %v3887 = vpop.f32.mrb[0].mxu0
        %3888 = vmatprep.mubr.f32.mxu0 0.0
        %3889 = vmatmul.mubr.f32.gmra.mrb[0].mxu0 %v3691
        %v3890 = vpop.f32.mrb[0].mxu0
        %v3891 = vadd.f32 0.0, %v3890
        %v3892 = vpop.f32.mrb[0].mxu0
        %3893 = vmatprep.mubr.f32.mxu0 0.0
        %3894 = vmatmul.mubr.f32.gmra.mrb[0].mxu0 %v3694
        %v3895 = vpop.f32.mrb[0].mxu0
        %v3896 = vadd.f32 0.0, %v3895
        %v3897 = vpop.f32.mrb[0].mxu0
        %3898 = vmatprep.mubr.f32.mxu0 0.0
        %3899 = vmatmul.mubr.f32.gmra.mrb[0].mxu0 %v3697
        %v3900 = vpop.f32.mrb[0].mxu0
        %v3901 = vadd.f32 0.0, %v3900
        %v3902 = vpop.f32.mrb[0].mxu0
        %3903 = vmatprep.mubr.f32.mxu0 0.0
        %3904 = vmatmul.mubr.f32.gmra.mrb[0].mxu0 %v3700
        %v3905 = vpop.f32.mrb[0].mxu0
        %v3906 = vadd.f32 0.0, %v3905
        %v3907 = vpop.f32.mrb[0].mxu0
        %3908 = vmatprep.mubr.f32.mxu0 0.0
        %3909 = vmatmul.mubr.f32.gmra.mrb[0].mxu0 %v3703
        %v3910 = vpop.f32.mrb[0].mxu0
        %v3911 = vadd.f32 0.0, %v3910
        %v3912 = vpop.f32.mrb[0].mxu0
        %3913 = vmatprep.mubr.f32.mxu0 0.0
        %3914 = vmatmul.mubr.f32.gmra.mrb[0].mxu0 %v3706
        %v3915 = vpop.f32.mrb[0].mxu0
        %v3916 = vadd.f32 0.0, %v3915
        %v3917 = vpop.f32.mrb[0].mxu0
        %3918 = vmatprep.mubr.f32.mxu0 0.0
        %3919 = vmatmul.mubr.f32.gmra.mrb[0].mxu0 %v3709
        %v3920 = vpop.f32.mrb[0].mxu0
        %v3921 = vadd.f32 0.0, %v3920
        %v3922 = vpop.f32.mrb[0].mxu0
        %3923 = vmatprep.mubr.f32.mxu0 0.0
        %3924 = vmatmul.mubr.f32.gmra.mrb[0].mxu0 %v3712
        %v3925 = vpop.f32.mrb[0].mxu0
        %v3926 = vadd.f32 0.0, %v3925
        %v3927 = vpop.f32.mrb[0].mxu0
        %3928 = vmatprep.mubr.f32.mxu0 0.0
        %3929 = vmatmul.mubr.f32.gmra.mrb[0].mxu0 %v3715
        %v3930 = vpop.f32.mrb[0].mxu0
        %v3931 = vadd.f32 0.0, %v3930
        %v3932 = vpop.f32.mrb[0].mxu0
        %3933 = vmatprep.mubr.f32.mxu0 0.0
        %3934 = vmatmul.mubr.f32.gmra.mrb[0].mxu0 %v3718
        %v3935 = vpop.f32.mrb[0].mxu0
        %v3936 = vadd.f32 0.0, %v3935
        %v3937 = vpop.f32.mrb[0].mxu0
        %3938 = vmatprep.mubr.f32.mxu0 0.0
        %3939 = vmatmul.mubr.f32.gmra.mrb[0].mxu0 %v3721
        %v3940 = vpop.f32.mrb[0].mxu0
        %v3941 = vadd.f32 0.0, %v3940
        %v3942 = vpop.f32.mrb[0].mxu0
        %3943 = vmatprep.mubr.f32.mxu0 0.0
        %3944 = vmatmul.mubr.f32.gmra.mrb[0].mxu0 %v3724
        %v3945 = vpop.f32.mrb[0].mxu0
        %v3946 = vadd.f32 0.0, %v3945
        %v3947 = vpop.f32.mrb[0].mxu0
        %3948 = vmatprep.mubr.f32.mxu0 0.0
        %3949 = vmatmul.mubr.f32.gmra.mrb[0].mxu0 %v3727
        %v3950 = vpop.f32.mrb[0].mxu0
        %v3951 = vadd.f32 0.0, %v3950
        %v3952 = vpop.f32.mrb[0].mxu0
        %3953 = vdwg.mxu0
        %v3955 = vsel %vm1191, %v3160, 0
        %v3958 = vsel %vm1191, %v3161, 0
        %v3961 = vsel %vm1191, %v3162, 0
        %v3964 = vsel %vm1191, %v3163, 0
        %v3967 = vsel %vm1191, %v3164, 0
        %v3970 = vsel %vm1191, %v3165, 0
        %v3973 = vsel %vm1191, %v3166, 0
        %v3976 = vsel %vm1191, %v3167, 0
        %v3979 = vsel %vm1191, %v3168, 0
        %v3982 = vsel %vm1191, %v3169, 0
        %v3985 = vsel %vm1191, %v3170, 0
        %v3988 = vsel %vm1191, %v3171, 0
        %v3991 = vsel %vm1191, %v3172, 0
        %v3994 = vsel %vm1191, %v3173, 0
        %v3997 = vsel %vm1191, %v3174, 0
        %v4000 = vsel %vm1191, %v3175, 0
        %v4003 = vsel %vm1191, %v3176, 0
        %v4006 = vsel %vm1191, %v3177, 0
        %v4009 = vsel %vm1191, %v3178, 0
        %v4012 = vsel %vm1191, %v3179, 0
        %v4015 = vsel %vm1191, %v3180, 0
        %v4018 = vsel %vm1191, %v3181, 0
        %v4021 = vsel %vm1191, %v3182, 0
        %v4024 = vsel %vm1191, %v3183, 0
        %v4027 = vsel %vm1191, %v3184, 0
        %v4030 = vsel %vm1191, %v3185, 0
        %v4033 = vsel %vm1191, %v3186, 0
        %v4036 = vsel %vm1191, %v3187, 0
        %v4039 = vsel %vm1191, %v3188, 0
        %v4042 = vsel %vm1191, %v3189, 0
        %v4045 = vsel %vm1191, %v3190, 0
        %v4048 = vsel %vm1191, %v3191, 0
        %4050 = vmatprep.subr.mxu0 0.0
        %4051 = vmatpush1.msra.mxu0 %v3192
        %4052 = vmatprep.subr.mxu0 0.0
        %4053 = vmatpush1.msra.mxu0 %v3193
        %4054 = vmatprep.subr.mxu0 0.0
        %4055 = vmatpush1.msra.mxu0 %v3194
        %4056 = vmatprep.subr.mxu0 0.0
        %4057 = vmatpush1.msra.mxu0 %v3195
        %4058 = vmatprep.subr.mxu0 0.0
        %4059 = vmatpush1.msra.mxu0 %v3196
        %4060 = vmatprep.subr.mxu0 0.0
        %4061 = vmatpush1.msra.mxu0 %v3197
        %4062 = vmatprep.subr.mxu0 0.0
        %4063 = vmatpush1.msra.mxu0 %v3198
        %4064 = vmatprep.subr.mxu0 0.0
        %4065 = vmatpush1.msra.mxu0 %v3199
        %4066 = vmatprep.subr.mxu0 0.0
        %4067 = vmatpush1.msra.mxu0 %v3200
        %4068 = vmatprep.subr.mxu0 0.0
        %4069 = vmatpush1.msra.mxu0 %v3201
        %4070 = vmatprep.subr.mxu0 0.0
        %4071 = vmatpush1.msra.mxu0 %v3202
        %4072 = vmatprep.subr.mxu0 0.0
        %4073 = vmatpush1.msra.mxu0 %v3203
        %4074 = vmatprep.subr.mxu0 0.0
        %4075 = vmatpush1.msra.mxu0 0.0
        %4076 = vmatprep.subr.mxu0 0.0
        %4077 = vmatpush1.msra.mxu0 0.0
        %4078 = vmatprep.subr.mxu0 0.0
        %4079 = vmatpush1.msra.mxu0 0.0
        %4080 = vmatprep.subr.mxu0 0.0
        %4081 = vmatpush1.msra.mxu0 0.0
        %4082 = vmatprep.subr.mxu0 0.0
        %4083 = vmatpush1.msra.mxu0 0.0
        %4084 = vmatprep.subr.mxu0 0.0
        %4085 = vmatpush1.msra.mxu0 0.0
        %4086 = vmatprep.subr.mxu0 0.0
        %4087 = vmatpush1.msra.mxu0 0.0
        %4088 = vmatprep.subr.mxu0 0.0
        %4089 = vmatpush1.msra.mxu0 0.0
        %4090 = vmatprep.subr.mxu0 0.0
        %4091 = vmatpush1.msra.mxu0 0.0
        %4092 = vmatprep.subr.mxu0 0.0
        %4093 = vmatpush1.msra.mxu0 0.0
        %4094 = vmatprep.subr.mxu0 0.0
        %4095 = vmatpush1.msra.mxu0 0.0
        %4096 = vmatprep.subr.mxu0 0.0
        %4097 = vmatpush1.msra.mxu0 0.0
        %4098 = vmatprep.subr.mxu0 0.0
        %4099 = vmatpush1.msra.mxu0 0.0
        %4100 = vmatprep.subr.mxu0 0.0
        %4101 = vmatpush1.msra.mxu0 0.0
        %4102 = vmatprep.subr.mxu0 0.0
        %4103 = vmatpush1.msra.mxu0 0.0
        %4104 = vmatprep.subr.mxu0 0.0
        %4105 = vmatpush1.msra.mxu0 0.0
        %4106 = vmatprep.subr.mxu0 0.0
        %4107 = vmatpush1.msra.mxu0 0.0
        %4108 = vmatprep.subr.mxu0 0.0
        %4109 = vmatpush1.msra.mxu0 0.0
        %4110 = vmatprep.subr.mxu0 0.0
        %4111 = vmatpush1.msra.mxu0 0.0
        %4112 = vmatprep.subr.mxu0 0.0
        %4113 = vmatpush1.msra.mxu0 0.0
        %4114 = vmatprep.mubr.f32.mxu0 0.0
        %4115 = vmatmul.mubr.f32.gmra.mrb[0].mxu0 %v3955
        %v4116 = vpop.f32.mrb[0].mxu0
        %v4117 = vadd.f32 %v3796, %v4116
        %v4118 = vpop.f32.mrb[0].mxu0
        %4119 = vmatprep.mubr.f32.mxu0 0.0
        %4120 = vmatmul.mubr.f32.gmra.mrb[0].mxu0 %v3958
        %v4121 = vpop.f32.mrb[0].mxu0
        %v4122 = vadd.f32 %v3801, %v4121
        %v4123 = vpop.f32.mrb[0].mxu0
        %4124 = vmatprep.mubr.f32.mxu0 0.0
        %4125 = vmatmul.mubr.f32.gmra.mrb[0].mxu0 %v3961
        %v4126 = vpop.f32.mrb[0].mxu0
        %v4127 = vadd.f32 %v3806, %v4126
        %v4128 = vpop.f32.mrb[0].mxu0
        %4129 = vmatprep.mubr.f32.mxu0 0.0
        %4130 = vmatmul.mubr.f32.gmra.mrb[0].mxu0 %v3964
        %v4131 = vpop.f32.mrb[0].mxu0
        %v4132 = vadd.f32 %v3811, %v4131
        %v4133 = vpop.f32.mrb[0].mxu0
        %4134 = vmatprep.mubr.f32.mxu0 0.0
        %4135 = vmatmul.mubr.f32.gmra.mrb[0].mxu0 %v3967
        %v4136 = vpop.f32.mrb[0].mxu0
        %v4137 = vadd.f32 %v3816, %v4136
        %v4138 = vpop.f32.mrb[0].mxu0
        %4139 = vmatprep.mubr.f32.mxu0 0.0
        %4140 = vmatmul.mubr.f32.gmra.mrb[0].mxu0 %v3970
        %v4141 = vpop.f32.mrb[0].mxu0
        %v4142 = vadd.f32 %v3821, %v4141
        %v4143 = vpop.f32.mrb[0].mxu0
        %4144 = vmatprep.mubr.f32.mxu0 0.0
        %4145 = vmatmul.mubr.f32.gmra.mrb[0].mxu0 %v3973
        %v4146 = vpop.f32.mrb[0].mxu0
        %v4147 = vadd.f32 %v3826, %v4146
        %v4148 = vpop.f32.mrb[0].mxu0
        %4149 = vmatprep.mubr.f32.mxu0 0.0
        %4150 = vmatmul.mubr.f32.gmra.mrb[0].mxu0 %v3976
        %v4151 = vpop.f32.mrb[0].mxu0
        %v4152 = vadd.f32 %v3831, %v4151
        %v4153 = vpop.f32.mrb[0].mxu0
        %4154 = vmatprep.mubr.f32.mxu0 0.0
        %4155 = vmatmul.mubr.f32.gmra.mrb[0].mxu0 %v3979
        %v4156 = vpop.f32.mrb[0].mxu0
        %v4157 = vadd.f32 %v3836, %v4156
        %v4158 = vpop.f32.mrb[0].mxu0
        %4159 = vmatprep.mubr.f32.mxu0 0.0
        %4160 = vmatmul.mubr.f32.gmra.mrb[0].mxu0 %v3982
        %v4161 = vpop.f32.mrb[0].mxu0
        %v4162 = vadd.f32 %v3841, %v4161
        %v4163 = vpop.f32.mrb[0].mxu0
        %4164 = vmatprep.mubr.f32.mxu0 0.0
        %4165 = vmatmul.mubr.f32.gmra.mrb[0].mxu0 %v3985
        %v4166 = vpop.f32.mrb[0].mxu0
        %v4167 = vadd.f32 %v3846, %v4166
        %v4168 = vpop.f32.mrb[0].mxu0
        %4169 = vmatprep.mubr.f32.mxu0 0.0
        %4170 = vmatmul.mubr.f32.gmra.mrb[0].mxu0 %v3988
        %v4171 = vpop.f32.mrb[0].mxu0
        %v4172 = vadd.f32 %v3851, %v4171
        %v4173 = vpop.f32.mrb[0].mxu0
        %4174 = vmatprep.mubr.f32.mxu0 0.0
        %4175 = vmatmul.mubr.f32.gmra.mrb[0].mxu0 %v3991
        %v4176 = vpop.f32.mrb[0].mxu0
        %v4177 = vadd.f32 %v3856, %v4176
        %v4178 = vpop.f32.mrb[0].mxu0
        %4179 = vmatprep.mubr.f32.mxu0 0.0
        %4180 = vmatmul.mubr.f32.gmra.mrb[0].mxu0 %v3994
        %v4181 = vpop.f32.mrb[0].mxu0
        %v4182 = vadd.f32 %v3861, %v4181
        %v4183 = vpop.f32.mrb[0].mxu0
        %4184 = vmatprep.mubr.f32.mxu0 0.0
        %4185 = vmatmul.mubr.f32.gmra.mrb[0].mxu0 %v3997
        %v4186 = vpop.f32.mrb[0].mxu0
        %v4187 = vadd.f32 %v3866, %v4186
        %v4188 = vpop.f32.mrb[0].mxu0
        %4189 = vmatprep.mubr.f32.mxu0 0.0
        %4190 = vmatmul.mubr.f32.gmra.mrb[0].mxu0 %v4000
        %v4191 = vpop.f32.mrb[0].mxu0
        %v4192 = vadd.f32 %v3871, %v4191
        %v4193 = vpop.f32.mrb[0].mxu0
        %4194 = vmatprep.mubr.f32.mxu0 0.0
        %4195 = vmatmul.mubr.f32.gmra.mrb[0].mxu0 %v4003
        %v4196 = vpop.f32.mrb[0].mxu0
        %v4197 = vadd.f32 %v3876, %v4196
        %v4198 = vpop.f32.mrb[0].mxu0
        %4199 = vmatprep.mubr.f32.mxu0 0.0
        %4200 = vmatmul.mubr.f32.gmra.mrb[0].mxu0 %v4006
        %v4201 = vpop.f32.mrb[0].mxu0
        %v4202 = vadd.f32 %v3881, %v4201
        %v4203 = vpop.f32.mrb[0].mxu0
        %4204 = vmatprep.mubr.f32.mxu0 0.0
        %4205 = vmatmul.mubr.f32.gmra.mrb[0].mxu0 %v4009
        %v4206 = vpop.f32.mrb[0].mxu0
        %v4207 = vadd.f32 %v3886, %v4206
        %v4208 = vpop.f32.mrb[0].mxu0
        %4209 = vmatprep.mubr.f32.mxu0 0.0
        %4210 = vmatmul.mubr.f32.gmra.mrb[0].mxu0 %v4012
        %v4211 = vpop.f32.mrb[0].mxu0
        %v4212 = vadd.f32 %v3891, %v4211
        %v4213 = vpop.f32.mrb[0].mxu0
        %4214 = vmatprep.mubr.f32.mxu0 0.0
        %4215 = vmatmul.mubr.f32.gmra.mrb[0].mxu0 %v4015
        %v4216 = vpop.f32.mrb[0].mxu0
        %v4217 = vadd.f32 %v3896, %v4216
        %v4218 = vpop.f32.mrb[0].mxu0
        %4219 = vmatprep.mubr.f32.mxu0 0.0
        %4220 = vmatmul.mubr.f32.gmra.mrb[0].mxu0 %v4018
        %v4221 = vpop.f32.mrb[0].mxu0
        %v4222 = vadd.f32 %v3901, %v4221
        %v4223 = vpop.f32.mrb[0].mxu0
        %4224 = vmatprep.mubr.f32.mxu0 0.0
        %4225 = vmatmul.mubr.f32.gmra.mrb[0].mxu0 %v4021
        %v4226 = vpop.f32.mrb[0].mxu0
        %v4227 = vadd.f32 %v3906, %v4226
        %v4228 = vpop.f32.mrb[0].mxu0
        %4229 = vmatprep.mubr.f32.mxu0 0.0
        %4230 = vmatmul.mubr.f32.gmra.mrb[0].mxu0 %v4024
        %v4231 = vpop.f32.mrb[0].mxu0
        %v4232 = vadd.f32 %v3911, %v4231
        %v4233 = vpop.f32.mrb[0].mxu0
        %4234 = vmatprep.mubr.f32.mxu0 0.0
        %4235 = vmatmul.mubr.f32.gmra.mrb[0].mxu0 %v4027
        %v4236 = vpop.f32.mrb[0].mxu0
        %v4237 = vadd.f32 %v3916, %v4236
        %v4238 = vpop.f32.mrb[0].mxu0
        %4239 = vmatprep.mubr.f32.mxu0 0.0
        %4240 = vmatmul.mubr.f32.gmra.mrb[0].mxu0 %v4030
        %v4241 = vpop.f32.mrb[0].mxu0
        %v4242 = vadd.f32 %v3921, %v4241
        %v4243 = vpop.f32.mrb[0].mxu0
        %4244 = vmatprep.mubr.f32.mxu0 0.0
        %4245 = vmatmul.mubr.f32.gmra.mrb[0].mxu0 %v4033
        %v4246 = vpop.f32.mrb[0].mxu0
        %v4247 = vadd.f32 %v3926, %v4246
        %v4248 = vpop.f32.mrb[0].mxu0
        %4249 = vmatprep.mubr.f32.mxu0 0.0
        %4250 = vmatmul.mubr.f32.gmra.mrb[0].mxu0 %v4036
        %v4251 = vpop.f32.mrb[0].mxu0
        %v4252 = vadd.f32 %v3931, %v4251
        %v4253 = vpop.f32.mrb[0].mxu0
        %4254 = vmatprep.mubr.f32.mxu0 0.0
        %4255 = vmatmul.mubr.f32.gmra.mrb[0].mxu0 %v4039
        %v4256 = vpop.f32.mrb[0].mxu0
        %v4257 = vadd.f32 %v3936, %v4256
        %v4258 = vpop.f32.mrb[0].mxu0
        %4259 = vmatprep.mubr.f32.mxu0 0.0
        %4260 = vmatmul.mubr.f32.gmra.mrb[0].mxu0 %v4042
        %v4261 = vpop.f32.mrb[0].mxu0
        %v4262 = vadd.f32 %v3941, %v4261
        %v4263 = vpop.f32.mrb[0].mxu0
        %4264 = vmatprep.mubr.f32.mxu0 0.0
        %4265 = vmatmul.mubr.f32.gmra.mrb[0].mxu0 %v4045
        %v4266 = vpop.f32.mrb[0].mxu0
        %v4267 = vadd.f32 %v3946, %v4266
        %v4268 = vpop.f32.mrb[0].mxu0
        %4269 = vmatprep.mubr.f32.mxu0 0.0
        %4270 = vmatmul.mubr.f32.gmra.mrb[0].mxu0 %v4048
        %v4271 = vpop.f32.mrb[0].mxu0
        %v4272 = vadd.f32 %v3951, %v4271
        %v4273 = vpop.f32.mrb[0].mxu0
        %4274 = vdwg.mxu0
        %s4275 = scalar_lea.vmem [#allocation2], 48
        %v4276 = vld [vmem:[%s4275] sm:$0xff]
        %v4277 = vld [vmem:[%s4275 + $0x8] sm:$0xff]
        %v4278 = vld [vmem:[%s4275 + $0x18] sm:$0xff]
        %v4279 = vld [vmem:[%s4275 + $0x20] sm:$0xff]
        %v4280 = vld [vmem:[%s4275 + $0x30] sm:$0xff]
        %v4281 = vld [vmem:[%s4275 + $0x38] sm:$0xff]
        %v4282 = vld [vmem:[%s4275 + $0x48] sm:$0xff]
        %v4283 = vld [vmem:[%s4275 + $0x50] sm:$0xff]
        %v4284 = vld [vmem:[%s4275 + $0x60] sm:$0xff]
        %v4285 = vld [vmem:[%s4275 + $0x68] sm:$0xff]
        %v4286 = vld [vmem:[%s4275 + $0x78] sm:$0xff]
        %v4287 = vld [vmem:[%s4275 + $0x80] sm:$0xff]
        %v4288 = vld [vmem:[%s4275 + $0x90] sm:$0xff]
        %v4289 = vld [vmem:[%s4275 + $0x98] sm:$0xff]
        %v4290 = vld [vmem:[%s4275 + $0xa8] sm:$0xff]
        %v4291 = vld [vmem:[%s4275 + $0xb0] sm:$0xff]
        %v4292 = vld [vmem:[%s4275 + $0xc0] sm:$0xff]
        %v4293 = vld [vmem:[%s4275 + $0xc8] sm:$0xff]
        %v4294 = vld [vmem:[%s4275 + $0xd8] sm:$0xff]
        %v4295 = vld [vmem:[%s4275 + $0xe0] sm:$0xff]
        %v4296 = vld [vmem:[%s4275 + $0xf0] sm:$0xff]
        %v4297 = vld [vmem:[%s4275 + $0xf8] sm:$0xff]
        %v4298 = vld [vmem:[%s4275 + $0x108] sm:$0xff]
        %v4299 = vld [vmem:[%s4275 + $0x110] sm:$0xff]
        %v4300 = vld [vmem:[%s4275 + $0x120] sm:$0xff]
        %v4301 = vld [vmem:[%s4275 + $0x128] sm:$0xff]
        %v4302 = vld [vmem:[%s4275 + $0x138] sm:$0xff]
        %v4303 = vld [vmem:[%s4275 + $0x140] sm:$0xff]
        %v4304 = vld [vmem:[%s4275 + $0x150] sm:$0xff]
        %v4305 = vld [vmem:[%s4275 + $0x158] sm:$0xff]
        %v4306 = vld [vmem:[%s4275 + $0x168] sm:$0xff]
        %v4307 = vld [vmem:[%s4275 + $0x170] sm:$0xff]
        %v4308 = vld [vmem:[%s4275 + $0x1] sm:$0xff]
        %v4309 = vld [vmem:[%s4275 + $0x9] sm:$0xff]
        %v4310 = vld [vmem:[%s4275 + $0x19] sm:$0xff]
        %v4311 = vld [vmem:[%s4275 + $0x21] sm:$0xff]
        %v4312 = vld [vmem:[%s4275 + $0x31] sm:$0xff]
        %v4313 = vld [vmem:[%s4275 + $0x39] sm:$0xff]
        %v4314 = vld [vmem:[%s4275 + $0x49] sm:$0xff]
        %v4315 = vld [vmem:[%s4275 + $0x51] sm:$0xff]
        %v4316 = vld [vmem:[%s4275 + $0x61] sm:$0xff]
        %v4317 = vld [vmem:[%s4275 + $0x69] sm:$0xff]
        %v4318 = vld [vmem:[%s4275 + $0x79] sm:$0xff]
        %v4319 = vld [vmem:[%s4275 + $0x81] sm:$0xff]
        %v4320 = vld [vmem:[%s4275 + $0x91] sm:$0xff]
        %v4321 = vld [vmem:[%s4275 + $0x99] sm:$0xff]
        %v4322 = vld [vmem:[%s4275 + $0xa9] sm:$0xff]
        %v4323 = vld [vmem:[%s4275 + $0xb1] sm:$0xff]
        %v4324 = vld [vmem:[%s4275 + $0xc1] sm:$0xff]
        %v4325 = vld [vmem:[%s4275 + $0xc9] sm:$0xff]
        %v4326 = vld [vmem:[%s4275 + $0xd9] sm:$0xff]
        %v4327 = vld [vmem:[%s4275 + $0xe1] sm:$0xff]
        %v4328 = vld [vmem:[%s4275 + $0xf1] sm:$0xff]
        %v4329 = vld [vmem:[%s4275 + $0xf9] sm:$0xff]
        %v4330 = vld [vmem:[%s4275 + $0x109] sm:$0xff]
        %v4331 = vld [vmem:[%s4275 + $0x111] sm:$0xff]
        %v4332 = vld [vmem:[%s4275 + $0x121] sm:$0xff]
        %v4333 = vld [vmem:[%s4275 + $0x129] sm:$0xff]
        %v4334 = vld [vmem:[%s4275 + $0x139] sm:$0xff]
        %v4335 = vld [vmem:[%s4275 + $0x141] sm:$0xff]
        %v4336 = vld [vmem:[%s4275 + $0x151] sm:$0xff]
        %v4337 = vld [vmem:[%s4275 + $0x159] sm:$0xff]
        %v4338 = vld [vmem:[%s4275 + $0x169] sm:$0xff]
        %v4339 = vld [vmem:[%s4275 + $0x171] sm:$0xff]
        %v4340 = vld [vmem:[%s4275 + $0x2] sm:$0xff]
        %v4341 = vld [vmem:[%s4275 + $0xa] sm:$0xff]
        %v4342 = vld [vmem:[%s4275 + $0x1a] sm:$0xff]
        %v4343 = vld [vmem:[%s4275 + $0x22] sm:$0xff]
        %v4344 = vld [vmem:[%s4275 + $0x32] sm:$0xff]
        %v4345 = vld [vmem:[%s4275 + $0x3a] sm:$0xff]
        %v4346 = vld [vmem:[%s4275 + $0x4a] sm:$0xff]
        %v4347 = vld [vmem:[%s4275 + $0x52] sm:$0xff]
        %v4348 = vld [vmem:[%s4275 + $0x62] sm:$0xff]
        %v4349 = vld [vmem:[%s4275 + $0x6a] sm:$0xff]
        %v4350 = vld [vmem:[%s4275 + $0x7a] sm:$0xff]
        %v4351 = vld [vmem:[%s4275 + $0x82] sm:$0xff]
        %v4352 = vld [vmem:[%s4275 + $0x92] sm:$0xff]
        %v4353 = vld [vmem:[%s4275 + $0x9a] sm:$0xff]
        %v4354 = vld [vmem:[%s4275 + $0xaa] sm:$0xff]
        %v4355 = vld [vmem:[%s4275 + $0xb2] sm:$0xff]
        %v4356 = vld [vmem:[%s4275 + $0xc2] sm:$0xff]
        %v4357 = vld [vmem:[%s4275 + $0xca] sm:$0xff]
        %v4358 = vld [vmem:[%s4275 + $0xda] sm:$0xff]
        %v4359 = vld [vmem:[%s4275 + $0xe2] sm:$0xff]
        %v4360 = vld [vmem:[%s4275 + $0xf2] sm:$0xff]
        %v4361 = vld [vmem:[%s4275 + $0xfa] sm:$0xff]
        %v4362 = vld [vmem:[%s4275 + $0x10a] sm:$0xff]
        %v4363 = vld [vmem:[%s4275 + $0x112] sm:$0xff]
        %v4364 = vld [vmem:[%s4275 + $0x122] sm:$0xff]
        %v4365 = vld [vmem:[%s4275 + $0x12a] sm:$0xff]
        %v4366 = vld [vmem:[%s4275 + $0x13a] sm:$0xff]
        %v4367 = vld [vmem:[%s4275 + $0x142] sm:$0xff]
        %v4368 = vld [vmem:[%s4275 + $0x152] sm:$0xff]
        %v4369 = vld [vmem:[%s4275 + $0x15a] sm:$0xff]
        %v4370 = vld [vmem:[%s4275 + $0x16a] sm:$0xff]
        %v4371 = vld [vmem:[%s4275 + $0x172] sm:$0xff]
        %4404 = vrot.lane.b32.xlu0 %v4308, 32
        %v4405 = vpop.permute.xlu0 %4404
        %4406 = vrot.lane.b32.xlu0 %v4309, 32
        %v4407 = vpop.permute.xlu0 %4406
        %4408 = vrot.lane.b32.xlu0 %v4310, 32
        %v4409 = vpop.permute.xlu0 %4408
        %4410 = vrot.lane.b32.xlu0 %v4311, 32
        %v4411 = vpop.permute.xlu0 %4410
        %4412 = vrot.lane.b32.xlu0 %v4312, 32
        %v4413 = vpop.permute.xlu0 %4412
        %4414 = vrot.lane.b32.xlu0 %v4313, 32
        %v4415 = vpop.permute.xlu0 %4414
        %4416 = vrot.lane.b32.xlu0 %v4314, 32
        %v4417 = vpop.permute.xlu0 %4416
        %4418 = vrot.lane.b32.xlu0 %v4315, 32
        %v4419 = vpop.permute.xlu0 %4418
        %4420 = vrot.lane.b32.xlu0 %v4316, 32
        %v4421 = vpop.permute.xlu0 %4420
        %4422 = vrot.lane.b32.xlu0 %v4317, 32
        %v4423 = vpop.permute.xlu0 %4422
        %4424 = vrot.lane.b32.xlu0 %v4318, 32
        %v4425 = vpop.permute.xlu0 %4424
        %4426 = vrot.lane.b32.xlu0 %v4319, 32
        %v4427 = vpop.permute.xlu0 %4426
        %4428 = vrot.lane.b32.xlu0 %v4320, 32
        %v4429 = vpop.permute.xlu0 %4428
        %4430 = vrot.lane.b32.xlu0 %v4321, 32
        %v4431 = vpop.permute.xlu0 %4430
        %4432 = vrot.lane.b32.xlu0 %v4322, 32
        %v4433 = vpop.permute.xlu0 %4432
        %4434 = vrot.lane.b32.xlu0 %v4323, 32
        %v4435 = vpop.permute.xlu0 %4434
        %4436 = vrot.lane.b32.xlu0 %v4324, 32
        %v4437 = vpop.permute.xlu0 %4436
        %4438 = vrot.lane.b32.xlu0 %v4325, 32
        %v4439 = vpop.permute.xlu0 %4438
        %4440 = vrot.lane.b32.xlu0 %v4326, 32
        %v4441 = vpop.permute.xlu0 %4440
        %4442 = vrot.lane.b32.xlu0 %v4327, 32
        %v4443 = vpop.permute.xlu0 %4442
        %4444 = vrot.lane.b32.xlu0 %v4328, 32
        %v4445 = vpop.permute.xlu0 %4444
        %4446 = vrot.lane.b32.xlu0 %v4329, 32
        %v4447 = vpop.permute.xlu0 %4446
        %4448 = vrot.lane.b32.xlu0 %v4330, 32
        %v4449 = vpop.permute.xlu0 %4448
        %4450 = vrot.lane.b32.xlu0 %v4331, 32
        %v4451 = vpop.permute.xlu0 %4450
        %4452 = vrot.lane.b32.xlu0 %v4332, 32
        %v4453 = vpop.permute.xlu0 %4452
        %4454 = vrot.lane.b32.xlu0 %v4333, 32
        %v4455 = vpop.permute.xlu0 %4454
        %4456 = vrot.lane.b32.xlu0 %v4334, 32
        %v4457 = vpop.permute.xlu0 %4456
        %4458 = vrot.lane.b32.xlu0 %v4335, 32
        %v4459 = vpop.permute.xlu0 %4458
        %4460 = vrot.lane.b32.xlu0 %v4336, 32
        %v4461 = vpop.permute.xlu0 %4460
        %4462 = vrot.lane.b32.xlu0 %v4337, 32
        %v4463 = vpop.permute.xlu0 %4462
        %4464 = vrot.lane.b32.xlu0 %v4338, 32
        %v4465 = vpop.permute.xlu0 %4464
        %4466 = vrot.lane.b32.xlu0 %v4339, 32
        %v4467 = vpop.permute.xlu0 %4466
        %4532 = vrot.lane.b32.xlu0 %v4340, 64
        %v4533 = vpop.permute.xlu0 %4532
        %4534 = vrot.lane.b32.xlu0 %v4341, 64
        %v4535 = vpop.permute.xlu0 %4534
        %4536 = vrot.lane.b32.xlu0 %v4342, 64
        %v4537 = vpop.permute.xlu0 %4536
        %4538 = vrot.lane.b32.xlu0 %v4343, 64
        %v4539 = vpop.permute.xlu0 %4538
        %4540 = vrot.lane.b32.xlu0 %v4344, 64
        %v4541 = vpop.permute.xlu0 %4540
        %4542 = vrot.lane.b32.xlu0 %v4345, 64
        %v4543 = vpop.permute.xlu0 %4542
        %4544 = vrot.lane.b32.xlu0 %v4346, 64
        %v4545 = vpop.permute.xlu0 %4544
        %4546 = vrot.lane.b32.xlu0 %v4347, 64
        %v4547 = vpop.permute.xlu0 %4546
        %4548 = vrot.lane.b32.xlu0 %v4348, 64
        %v4549 = vpop.permute.xlu0 %4548
        %4550 = vrot.lane.b32.xlu0 %v4349, 64
        %v4551 = vpop.permute.xlu0 %4550
        %4552 = vrot.lane.b32.xlu0 %v4350, 64
        %v4553 = vpop.permute.xlu0 %4552
        %4554 = vrot.lane.b32.xlu0 %v4351, 64
        %v4555 = vpop.permute.xlu0 %4554
        %4556 = vrot.lane.b32.xlu0 %v4352, 64
        %v4557 = vpop.permute.xlu0 %4556
        %4558 = vrot.lane.b32.xlu0 %v4353, 64
        %v4559 = vpop.permute.xlu0 %4558
        %4560 = vrot.lane.b32.xlu0 %v4354, 64
        %v4561 = vpop.permute.xlu0 %4560
        %4562 = vrot.lane.b32.xlu0 %v4355, 64
        %v4563 = vpop.permute.xlu0 %4562
        %4564 = vrot.lane.b32.xlu0 %v4356, 64
        %v4565 = vpop.permute.xlu0 %4564
        %4566 = vrot.lane.b32.xlu0 %v4357, 64
        %v4567 = vpop.permute.xlu0 %4566
        %4568 = vrot.lane.b32.xlu0 %v4358, 64
        %v4569 = vpop.permute.xlu0 %4568
        %4570 = vrot.lane.b32.xlu0 %v4359, 64
        %v4571 = vpop.permute.xlu0 %4570
        %4572 = vrot.lane.b32.xlu0 %v4360, 64
        %v4573 = vpop.permute.xlu0 %4572
        %4574 = vrot.lane.b32.xlu0 %v4361, 64
        %v4575 = vpop.permute.xlu0 %4574
        %4576 = vrot.lane.b32.xlu0 %v4362, 64
        %v4577 = vpop.permute.xlu0 %4576
        %4578 = vrot.lane.b32.xlu0 %v4363, 64
        %v4579 = vpop.permute.xlu0 %4578
        %4580 = vrot.lane.b32.xlu0 %v4364, 64
        %v4581 = vpop.permute.xlu0 %4580
        %4582 = vrot.lane.b32.xlu0 %v4365, 64
        %v4583 = vpop.permute.xlu0 %4582
        %4584 = vrot.lane.b32.xlu0 %v4366, 64
        %v4585 = vpop.permute.xlu0 %4584
        %4586 = vrot.lane.b32.xlu0 %v4367, 64
        %v4587 = vpop.permute.xlu0 %4586
        %4588 = vrot.lane.b32.xlu0 %v4368, 64
        %v4589 = vpop.permute.xlu0 %4588
        %4590 = vrot.lane.b32.xlu0 %v4369, 64
        %v4591 = vpop.permute.xlu0 %4590
        %4592 = vrot.lane.b32.xlu0 %v4370, 64
        %v4593 = vpop.permute.xlu0 %4592
        %4594 = vrot.lane.b32.xlu0 %v4371, 64
        %v4595 = vpop.permute.xlu0 %4594
        %v4628 = vsel %vm683, %v4276, %v4405
        %v4629 = vsel %vm683, %v4277, %v4407
        %v4630 = vsel %vm683, %v4278, %v4409
        %v4631 = vsel %vm683, %v4279, %v4411
        %v4632 = vsel %vm683, %v4280, %v4413
        %v4633 = vsel %vm683, %v4281, %v4415
        %v4634 = vsel %vm683, %v4282, %v4417
        %v4635 = vsel %vm683, %v4283, %v4419
        %v4636 = vsel %vm683, %v4284, %v4421
        %v4637 = vsel %vm683, %v4285, %v4423
        %v4638 = vsel %vm683, %v4286, %v4425
        %v4639 = vsel %vm683, %v4287, %v4427
        %v4640 = vsel %vm683, %v4288, %v4429
        %v4641 = vsel %vm683, %v4289, %v4431
        %v4642 = vsel %vm683, %v4290, %v4433
        %v4643 = vsel %vm683, %v4291, %v4435
        %v4644 = vsel %vm683, %v4292, %v4437
        %v4645 = vsel %vm683, %v4293, %v4439
        %v4646 = vsel %vm683, %v4294, %v4441
        %v4647 = vsel %vm683, %v4295, %v4443
        %v4648 = vsel %vm683, %v4296, %v4445
        %v4649 = vsel %vm683, %v4297, %v4447
        %v4650 = vsel %vm683, %v4298, %v4449
        %v4651 = vsel %vm683, %v4299, %v4451
        %v4652 = vsel %vm683, %v4300, %v4453
        %v4653 = vsel %vm683, %v4301, %v4455
        %v4654 = vsel %vm683, %v4302, %v4457
        %v4655 = vsel %vm683, %v4303, %v4459
        %v4656 = vsel %vm683, %v4304, %v4461
        %v4657 = vsel %vm683, %v4305, %v4463
        %v4658 = vsel %vm683, %v4306, %v4465
        %v4659 = vsel %vm683, %v4307, %v4467
        %v4660 = vsel %vm716, %v4628, %v4533
        %v4661 = vsel %vm716, %v4629, %v4535
        %v4662 = vsel %vm716, %v4630, %v4537
        %v4663 = vsel %vm716, %v4631, %v4539
        %v4664 = vsel %vm716, %v4632, %v4541
        %v4665 = vsel %vm716, %v4633, %v4543
        %v4666 = vsel %vm716, %v4634, %v4545
        %v4667 = vsel %vm716, %v4635, %v4547
        %v4668 = vsel %vm716, %v4636, %v4549
        %v4669 = vsel %vm716, %v4637, %v4551
        %v4670 = vsel %vm716, %v4638, %v4553
        %v4671 = vsel %vm716, %v4639, %v4555
        %v4672 = vsel %vm716, %v4640, %v4557
        %v4673 = vsel %vm716, %v4641, %v4559
        %v4674 = vsel %vm716, %v4642, %v4561
        %v4675 = vsel %vm716, %v4643, %v4563
        %v4676 = vsel %vm716, %v4644, %v4565
        %v4677 = vsel %vm716, %v4645, %v4567
        %v4678 = vsel %vm716, %v4646, %v4569
        %v4679 = vsel %vm716, %v4647, %v4571
        %v4680 = vsel %vm716, %v4648, %v4573
        %v4681 = vsel %vm716, %v4649, %v4575
        %v4682 = vsel %vm716, %v4650, %v4577
        %v4683 = vsel %vm716, %v4651, %v4579
        %v4684 = vsel %vm716, %v4652, %v4581
        %v4685 = vsel %vm716, %v4653, %v4583
        %v4686 = vsel %vm716, %v4654, %v4585
        %v4687 = vsel %vm716, %v4655, %v4587
        %v4688 = vsel %vm716, %v4656, %v4589
        %v4689 = vsel %vm716, %v4657, %v4591
        %v4690 = vsel %vm716, %v4658, %v4593
        %v4691 = vsel %vm716, %v4659, %v4595
        %s4692 = scalar_lea.vmem %s3, 192
        %v4693 = vld [vmem:[%s4692] sm:$0xff]
        %v4694 = vld [vmem:[%s4692 + $0x8] sm:$0xff]
        %v4695 = vld [vmem:[%s4692 + $0x10] sm:$0xff]
        %v4696 = vld [vmem:[%s4692 + $0x18] sm:$0xff]
        %v4697 = vld [vmem:[%s4692 + $0x20] sm:$0xff]
        %v4698 = vld [vmem:[%s4692 + $0x28] sm:$0xff]
        %v4699 = vld [vmem:[%s4692 + $0x30] sm:$0xff]
        %v4700 = vld [vmem:[%s4692 + $0x38] sm:$0xff]
        %v4701 = vld [vmem:[%s4692 + $0x40] sm:$0xff]
        %v4702 = vld [vmem:[%s4692 + $0x48] sm:$0xff]
        %v4703 = vld [vmem:[%s4692 + $0x50] sm:$0xff]
        %v4704 = vld [vmem:[%s4692 + $0x58] sm:$0xff]
        %v4706 = vsel %vm1191, %v4660, 0
        %v4709 = vsel %vm1191, %v4661, 0
        %v4712 = vsel %vm1191, %v4662, 0
        %v4715 = vsel %vm1191, %v4663, 0
        %v4718 = vsel %vm1191, %v4664, 0
        %v4721 = vsel %vm1191, %v4665, 0
        %v4724 = vsel %vm1191, %v4666, 0
        %v4727 = vsel %vm1191, %v4667, 0
        %v4730 = vsel %vm1191, %v4668, 0
        %v4733 = vsel %vm1191, %v4669, 0
        %v4736 = vsel %vm1191, %v4670, 0
        %v4739 = vsel %vm1191, %v4671, 0
        %v4742 = vsel %vm1191, %v4672, 0
        %v4745 = vsel %vm1191, %v4673, 0
        %v4748 = vsel %vm1191, %v4674, 0
        %v4751 = vsel %vm1191, %v4675, 0
        %v4754 = vsel %vm1191, %v4676, 0
        %v4757 = vsel %vm1191, %v4677, 0
        %v4760 = vsel %vm1191, %v4678, 0
        %v4763 = vsel %vm1191, %v4679, 0
        %v4766 = vsel %vm1191, %v4680, 0
        %v4769 = vsel %vm1191, %v4681, 0
        %v4772 = vsel %vm1191, %v4682, 0
        %v4775 = vsel %vm1191, %v4683, 0
        %v4778 = vsel %vm1191, %v4684, 0
        %v4781 = vsel %vm1191, %v4685, 0
        %v4784 = vsel %vm1191, %v4686, 0
        %v4787 = vsel %vm1191, %v4687, 0
        %v4790 = vsel %vm1191, %v4688, 0
        %v4793 = vsel %vm1191, %v4689, 0
        %v4796 = vsel %vm1191, %v4690, 0
        %v4799 = vsel %vm1191, %v4691, 0
        %4801 = vmatprep.subr.mxu0 0.0
        %4802 = vmatpush1.msra.mxu0 %v4693
        %4803 = vmatprep.subr.mxu0 0.0
        %4804 = vmatpush1.msra.mxu0 %v4694
        %4805 = vmatprep.subr.mxu0 0.0
        %4806 = vmatpush1.msra.mxu0 %v4695
        %4807 = vmatprep.subr.mxu0 0.0
        %4808 = vmatpush1.msra.mxu0 %v4696
        %4809 = vmatprep.subr.mxu0 0.0
        %4810 = vmatpush1.msra.mxu0 %v4697
        %4811 = vmatprep.subr.mxu0 0.0
        %4812 = vmatpush1.msra.mxu0 %v4698
        %4813 = vmatprep.subr.mxu0 0.0
        %4814 = vmatpush1.msra.mxu0 %v4699
        %4815 = vmatprep.subr.mxu0 0.0
        %4816 = vmatpush1.msra.mxu0 %v4700
        %4817 = vmatprep.subr.mxu0 0.0
        %4818 = vmatpush1.msra.mxu0 %v4701
        %4819 = vmatprep.subr.mxu0 0.0
        %4820 = vmatpush1.msra.mxu0 %v4702
        %4821 = vmatprep.subr.mxu0 0.0
        %4822 = vmatpush1.msra.mxu0 %v4703
        %4823 = vmatprep.subr.mxu0 0.0
        %4824 = vmatpush1.msra.mxu0 %v4704
        %4825 = vmatprep.subr.mxu0 0.0
        %4826 = vmatpush1.msra.mxu0 0.0
        %4827 = vmatprep.subr.mxu0 0.0
        %4828 = vmatpush1.msra.mxu0 0.0
        %4829 = vmatprep.subr.mxu0 0.0
        %4830 = vmatpush1.msra.mxu0 0.0
        %4831 = vmatprep.subr.mxu0 0.0
        %4832 = vmatpush1.msra.mxu0 0.0
        %4833 = vmatprep.subr.mxu0 0.0
        %4834 = vmatpush1.msra.mxu0 0.0
        %4835 = vmatprep.subr.mxu0 0.0
        %4836 = vmatpush1.msra.mxu0 0.0
        %4837 = vmatprep.subr.mxu0 0.0
        %4838 = vmatpush1.msra.mxu0 0.0
        %4839 = vmatprep.subr.mxu0 0.0
        %4840 = vmatpush1.msra.mxu0 0.0
        %4841 = vmatprep.subr.mxu0 0.0
        %4842 = vmatpush1.msra.mxu0 0.0
        %4843 = vmatprep.subr.mxu0 0.0
        %4844 = vmatpush1.msra.mxu0 0.0
        %4845 = vmatprep.subr.mxu0 0.0
        %4846 = vmatpush1.msra.mxu0 0.0
        %4847 = vmatprep.subr.mxu0 0.0
        %4848 = vmatpush1.msra.mxu0 0.0
        %4849 = vmatprep.subr.mxu0 0.0
        %4850 = vmatpush1.msra.mxu0 0.0
        %4851 = vmatprep.subr.mxu0 0.0
        %4852 = vmatpush1.msra.mxu0 0.0
        %4853 = vmatprep.subr.mxu0 0.0
        %4854 = vmatpush1.msra.mxu0 0.0
        %4855 = vmatprep.subr.mxu0 0.0
        %4856 = vmatpush1.msra.mxu0 0.0
        %4857 = vmatprep.subr.mxu0 0.0
        %4858 = vmatpush1.msra.mxu0 0.0
        %4859 = vmatprep.subr.mxu0 0.0
        %4860 = vmatpush1.msra.mxu0 0.0
        %4861 = vmatprep.subr.mxu0 0.0
        %4862 = vmatpush1.msra.mxu0 0.0
        %4863 = vmatprep.subr.mxu0 0.0
        %4864 = vmatpush1.msra.mxu0 0.0
        %4865 = vmatprep.mubr.f32.mxu0 0.0
        %4866 = vmatmul.mubr.f32.gmra.mrb[0].mxu0 %v4706
        %v4867 = vpop.f32.mrb[0].mxu0
        %v4868 = vadd.f32 0.0, %v4867
        %v4869 = vpop.f32.mrb[0].mxu0
        %4870 = vmatprep.mubr.f32.mxu0 0.0
        %4871 = vmatmul.mubr.f32.gmra.mrb[0].mxu0 %v4709
        %v4872 = vpop.f32.mrb[0].mxu0
        %v4873 = vadd.f32 0.0, %v4872
        %v4874 = vpop.f32.mrb[0].mxu0
        %4875 = vmatprep.mubr.f32.mxu0 0.0
        %4876 = vmatmul.mubr.f32.gmra.mrb[0].mxu0 %v4712
        %v4877 = vpop.f32.mrb[0].mxu0
        %v4878 = vadd.f32 0.0, %v4877
        %v4879 = vpop.f32.mrb[0].mxu0
        %4880 = vmatprep.mubr.f32.mxu0 0.0
        %4881 = vmatmul.mubr.f32.gmra.mrb[0].mxu0 %v4715
        %v4882 = vpop.f32.mrb[0].mxu0
        %v4883 = vadd.f32 0.0, %v4882
        %v4884 = vpop.f32.mrb[0].mxu0
        %4885 = vmatprep.mubr.f32.mxu0 0.0
        %4886 = vmatmul.mubr.f32.gmra.mrb[0].mxu0 %v4718
        %v4887 = vpop.f32.mrb[0].mxu0
        %v4888 = vadd.f32 0.0, %v4887
        %v4889 = vpop.f32.mrb[0].mxu0
        %4890 = vmatprep.mubr.f32.mxu0 0.0
        %4891 = vmatmul.mubr.f32.gmra.mrb[0].mxu0 %v4721
        %v4892 = vpop.f32.mrb[0].mxu0
        %v4893 = vadd.f32 0.0, %v4892
        %v4894 = vpop.f32.mrb[0].mxu0
        %4895 = vmatprep.mubr.f32.mxu0 0.0
        %4896 = vmatmul.mubr.f32.gmra.mrb[0].mxu0 %v4724
        %v4897 = vpop.f32.mrb[0].mxu0
        %v4898 = vadd.f32 0.0, %v4897
        %v4899 = vpop.f32.mrb[0].mxu0
        %4900 = vmatprep.mubr.f32.mxu0 0.0
        %4901 = vmatmul.mubr.f32.gmra.mrb[0].mxu0 %v4727
        %v4902 = vpop.f32.mrb[0].mxu0
        %v4903 = vadd.f32 0.0, %v4902
        %v4904 = vpop.f32.mrb[0].mxu0
        %4905 = vmatprep.mubr.f32.mxu0 0.0
        %4906 = vmatmul.mubr.f32.gmra.mrb[0].mxu0 %v4730
        %v4907 = vpop.f32.mrb[0].mxu0
        %v4908 = vadd.f32 0.0, %v4907
        %v4909 = vpop.f32.mrb[0].mxu0
        %4910 = vmatprep.mubr.f32.mxu0 0.0
        %4911 = vmatmul.mubr.f32.gmra.mrb[0].mxu0 %v4733
        %v4912 = vpop.f32.mrb[0].mxu0
        %v4913 = vadd.f32 0.0, %v4912
        %v4914 = vpop.f32.mrb[0].mxu0
        %4915 = vmatprep.mubr.f32.mxu0 0.0
        %4916 = vmatmul.mubr.f32.gmra.mrb[0].mxu0 %v4736
        %v4917 = vpop.f32.mrb[0].mxu0
        %v4918 = vadd.f32 0.0, %v4917
        %v4919 = vpop.f32.mrb[0].mxu0
        %4920 = vmatprep.mubr.f32.mxu0 0.0
        %4921 = vmatmul.mubr.f32.gmra.mrb[0].mxu0 %v4739
        %v4922 = vpop.f32.mrb[0].mxu0
        %v4923 = vadd.f32 0.0, %v4922
        %v4924 = vpop.f32.mrb[0].mxu0
        %4925 = vmatprep.mubr.f32.mxu0 0.0
        %4926 = vmatmul.mubr.f32.gmra.mrb[0].mxu0 %v4742
        %v4927 = vpop.f32.mrb[0].mxu0
        %v4928 = vadd.f32 0.0, %v4927
        %v4929 = vpop.f32.mrb[0].mxu0
        %4930 = vmatprep.mubr.f32.mxu0 0.0
        %4931 = vmatmul.mubr.f32.gmra.mrb[0].mxu0 %v4745
        %v4932 = vpop.f32.mrb[0].mxu0
        %v4933 = vadd.f32 0.0, %v4932
        %v4934 = vpop.f32.mrb[0].mxu0
        %4935 = vmatprep.mubr.f32.mxu0 0.0
        %4936 = vmatmul.mubr.f32.gmra.mrb[0].mxu0 %v4748
        %v4937 = vpop.f32.mrb[0].mxu0
        %v4938 = vadd.f32 0.0, %v4937
        %v4939 = vpop.f32.mrb[0].mxu0
        %4940 = vmatprep.mubr.f32.mxu0 0.0
        %4941 = vmatmul.mubr.f32.gmra.mrb[0].mxu0 %v4751
        %v4942 = vpop.f32.mrb[0].mxu0
        %v4943 = vadd.f32 0.0, %v4942
        %v4944 = vpop.f32.mrb[0].mxu0
        %4945 = vmatprep.mubr.f32.mxu0 0.0
        %4946 = vmatmul.mubr.f32.gmra.mrb[0].mxu0 %v4754
        %v4947 = vpop.f32.mrb[0].mxu0
        %v4948 = vadd.f32 0.0, %v4947
        %v4949 = vpop.f32.mrb[0].mxu0
        %4950 = vmatprep.mubr.f32.mxu0 0.0
        %4951 = vmatmul.mubr.f32.gmra.mrb[0].mxu0 %v4757
        %v4952 = vpop.f32.mrb[0].mxu0
        %v4953 = vadd.f32 0.0, %v4952
        %v4954 = vpop.f32.mrb[0].mxu0
        %4955 = vmatprep.mubr.f32.mxu0 0.0
        %4956 = vmatmul.mubr.f32.gmra.mrb[0].mxu0 %v4760
        %v4957 = vpop.f32.mrb[0].mxu0
        %v4958 = vadd.f32 0.0, %v4957
        %v4959 = vpop.f32.mrb[0].mxu0
        %4960 = vmatprep.mubr.f32.mxu0 0.0
        %4961 = vmatmul.mubr.f32.gmra.mrb[0].mxu0 %v4763
        %v4962 = vpop.f32.mrb[0].mxu0
        %v4963 = vadd.f32 0.0, %v4962
        %v4964 = vpop.f32.mrb[0].mxu0
        %4965 = vmatprep.mubr.f32.mxu0 0.0
        %4966 = vmatmul.mubr.f32.gmra.mrb[0].mxu0 %v4766
        %v4967 = vpop.f32.mrb[0].mxu0
        %v4968 = vadd.f32 0.0, %v4967
        %v4969 = vpop.f32.mrb[0].mxu0
        %4970 = vmatprep.mubr.f32.mxu0 0.0
        %4971 = vmatmul.mubr.f32.gmra.mrb[0].mxu0 %v4769
        %v4972 = vpop.f32.mrb[0].mxu0
        %v4973 = vadd.f32 0.0, %v4972
        %v4974 = vpop.f32.mrb[0].mxu0
        %4975 = vmatprep.mubr.f32.mxu0 0.0
        %4976 = vmatmul.mubr.f32.gmra.mrb[0].mxu0 %v4772
        %v4977 = vpop.f32.mrb[0].mxu0
        %v4978 = vadd.f32 0.0, %v4977
        %v4979 = vpop.f32.mrb[0].mxu0
        %4980 = vmatprep.mubr.f32.mxu0 0.0
        %4981 = vmatmul.mubr.f32.gmra.mrb[0].mxu0 %v4775
        %v4982 = vpop.f32.mrb[0].mxu0
        %v4983 = vadd.f32 0.0, %v4982
        %v4984 = vpop.f32.mrb[0].mxu0
        %4985 = vmatprep.mubr.f32.mxu0 0.0
        %4986 = vmatmul.mubr.f32.gmra.mrb[0].mxu0 %v4778
        %v4987 = vpop.f32.mrb[0].mxu0
        %v4988 = vadd.f32 0.0, %v4987
        %v4989 = vpop.f32.mrb[0].mxu0
        %4990 = vmatprep.mubr.f32.mxu0 0.0
        %4991 = vmatmul.mubr.f32.gmra.mrb[0].mxu0 %v4781
        %v4992 = vpop.f32.mrb[0].mxu0
        %v4993 = vadd.f32 0.0, %v4992
        %v4994 = vpop.f32.mrb[0].mxu0
        %4995 = vmatprep.mubr.f32.mxu0 0.0
        %4996 = vmatmul.mubr.f32.gmra.mrb[0].mxu0 %v4784
        %v4997 = vpop.f32.mrb[0].mxu0
        %v4998 = vadd.f32 0.0, %v4997
        %v4999 = vpop.f32.mrb[0].mxu0
        %5000 = vmatprep.mubr.f32.mxu0 0.0
        %5001 = vmatmul.mubr.f32.gmra.mrb[0].mxu0 %v4787
        %v5002 = vpop.f32.mrb[0].mxu0
        %v5003 = vadd.f32 0.0, %v5002
        %v5004 = vpop.f32.mrb[0].mxu0
        %5005 = vmatprep.mubr.f32.mxu0 0.0
        %5006 = vmatmul.mubr.f32.gmra.mrb[0].mxu0 %v4790
        %v5007 = vpop.f32.mrb[0].mxu0
        %v5008 = vadd.f32 0.0, %v5007
        %v5009 = vpop.f32.mrb[0].mxu0
        %5010 = vmatprep.mubr.f32.mxu0 0.0
        %5011 = vmatmul.mubr.f32.gmra.mrb[0].mxu0 %v4793
        %v5012 = vpop.f32.mrb[0].mxu0
        %v5013 = vadd.f32 0.0, %v5012
        %v5014 = vpop.f32.mrb[0].mxu0
        %5015 = vmatprep.mubr.f32.mxu0 0.0
        %5016 = vmatmul.mubr.f32.gmra.mrb[0].mxu0 %v4796
        %v5017 = vpop.f32.mrb[0].mxu0
        %v5018 = vadd.f32 0.0, %v5017
        %v5019 = vpop.f32.mrb[0].mxu0
        %5020 = vmatprep.mubr.f32.mxu0 0.0
        %5021 = vmatmul.mubr.f32.gmra.mrb[0].mxu0 %v4799
        %v5022 = vpop.f32.mrb[0].mxu0
        %v5023 = vadd.f32 0.0, %v5022
        %v5024 = vpop.f32.mrb[0].mxu0
        %5025 = vdwg.mxu0
        %v5026 = vadd.f32 %v4117, %v4868
        %v5027 = vadd.f32 %v4122, %v4873
        %v5028 = vadd.f32 %v4127, %v4878
        %v5029 = vadd.f32 %v4132, %v4883
        %v5030 = vadd.f32 %v4137, %v4888
        %v5031 = vadd.f32 %v4142, %v4893
        %v5032 = vadd.f32 %v4147, %v4898
        %v5033 = vadd.f32 %v4152, %v4903
        %v5034 = vadd.f32 %v4157, %v4908
        %v5035 = vadd.f32 %v4162, %v4913
        %v5036 = vadd.f32 %v4167, %v4918
        %v5037 = vadd.f32 %v4172, %v4923
        %v5038 = vadd.f32 %v4177, %v4928
        %v5039 = vadd.f32 %v4182, %v4933
        %v5040 = vadd.f32 %v4187, %v4938
        %v5041 = vadd.f32 %v4192, %v4943
        %v5042 = vadd.f32 %v4197, %v4948
        %v5043 = vadd.f32 %v4202, %v4953
        %v5044 = vadd.f32 %v4207, %v4958
        %v5045 = vadd.f32 %v4212, %v4963
        %v5046 = vadd.f32 %v4217, %v4968
        %v5047 = vadd.f32 %v4222, %v4973
        %v5048 = vadd.f32 %v4227, %v4978
        %v5049 = vadd.f32 %v4232, %v4983
        %v5050 = vadd.f32 %v4237, %v4988
        %v5051 = vadd.f32 %v4242, %v4993
        %v5052 = vadd.f32 %v4247, %v4998
        %v5053 = vadd.f32 %v4252, %v5003
        %v5054 = vadd.f32 %v4257, %v5008
        %v5055 = vadd.f32 %v4262, %v5013
        %v5056 = vadd.f32 %v4267, %v5018
        %v5057 = vadd.f32 %v4272, %v5023
        %v5058 = vld [vmem:[%s4] sm:$0x1]
        %v5060 = vlaneseq
        %v5061 = vshrl.u32 %v5060, 7
        %v5062 = vsub.s32 0, %v5061
        %v5063 = vrot.slane %v5058, %v5062
        %v5065 = vadd.f32 %v5026, %v5063
        %v5066 = vadd.f32 %v5027, %v5063
        %v5067 = vadd.f32 %v5028, %v5063
        %v5068 = vadd.f32 %v5029, %v5063
        %v5069 = vadd.f32 %v5030, %v5063
        %v5070 = vadd.f32 %v5031, %v5063
        %v5071 = vadd.f32 %v5032, %v5063
        %v5072 = vadd.f32 %v5033, %v5063
        %v5073 = vadd.f32 %v5034, %v5063
        %v5074 = vadd.f32 %v5035, %v5063
        %v5075 = vadd.f32 %v5036, %v5063
        %v5076 = vadd.f32 %v5037, %v5063
        %v5077 = vadd.f32 %v5038, %v5063
        %v5078 = vadd.f32 %v5039, %v5063
        %v5079 = vadd.f32 %v5040, %v5063
        %v5080 = vadd.f32 %v5041, %v5063
        %v5081 = vadd.f32 %v5042, %v5063
        %v5082 = vadd.f32 %v5043, %v5063
        %v5083 = vadd.f32 %v5044, %v5063
        %v5084 = vadd.f32 %v5045, %v5063
        %v5085 = vadd.f32 %v5046, %v5063
        %v5086 = vadd.f32 %v5047, %v5063
        %v5087 = vadd.f32 %v5048, %v5063
        %v5088 = vadd.f32 %v5049, %v5063
        %v5089 = vadd.f32 %v5050, %v5063
        %v5090 = vadd.f32 %v5051, %v5063
        %v5091 = vadd.f32 %v5052, %v5063
        %v5092 = vadd.f32 %v5053, %v5063
        %v5093 = vadd.f32 %v5054, %v5063
        %v5094 = vadd.f32 %v5055, %v5063
        %v5095 = vadd.f32 %v5056, %v5063
        %v5096 = vadd.f32 %v5057, %v5063
        %v5097 = vsel %vm683, %v5065, 0.0
        %v5098 = vsel %vm683, %v5066, 0.0
        %v5099 = vadd.f32 %v5097, %v5098
        %v5100 = vsel %vm683, %v5067, 0.0
        %v5101 = vadd.f32 %v5099, %v5100
        %v5102 = vsel %vm683, %v5068, 0.0
        %v5103 = vadd.f32 %v5101, %v5102
        %v5104 = vsel %vm683, %v5069, 0.0
        %v5105 = vadd.f32 %v5103, %v5104
        %v5106 = vsel %vm683, %v5070, 0.0
        %v5107 = vadd.f32 %v5105, %v5106
        %v5108 = vsel %vm683, %v5071, 0.0
        %v5109 = vadd.f32 %v5107, %v5108
        %v5110 = vsel %vm683, %v5072, 0.0
        %v5111 = vadd.f32 %v5109, %v5110
        %v5112 = vsel %vm683, %v5073, 0.0
        %v5113 = vadd.f32 %v5111, %v5112
        %v5114 = vsel %vm683, %v5074, 0.0
        %v5115 = vadd.f32 %v5113, %v5114
        %v5116 = vsel %vm683, %v5075, 0.0
        %v5117 = vadd.f32 %v5115, %v5116
        %v5118 = vsel %vm683, %v5076, 0.0
        %v5119 = vadd.f32 %v5117, %v5118
        %v5120 = vsel %vm683, %v5077, 0.0
        %v5121 = vadd.f32 %v5119, %v5120
        %v5122 = vsel %vm683, %v5078, 0.0
        %v5123 = vadd.f32 %v5121, %v5122
        %v5124 = vsel %vm683, %v5079, 0.0
        %v5125 = vadd.f32 %v5123, %v5124
        %v5126 = vsel %vm683, %v5080, 0.0
        %v5127 = vadd.f32 %v5125, %v5126
        %v5128 = vsel %vm683, %v5081, 0.0
        %v5129 = vadd.f32 %v5127, %v5128
        %v5130 = vsel %vm683, %v5082, 0.0
        %v5131 = vadd.f32 %v5129, %v5130
        %v5132 = vsel %vm683, %v5083, 0.0
        %v5133 = vadd.f32 %v5131, %v5132
        %v5134 = vsel %vm683, %v5084, 0.0
        %v5135 = vadd.f32 %v5133, %v5134
        %v5136 = vsel %vm683, %v5085, 0.0
        %v5137 = vadd.f32 %v5135, %v5136
        %v5138 = vsel %vm683, %v5086, 0.0
        %v5139 = vadd.f32 %v5137, %v5138
        %v5140 = vsel %vm683, %v5087, 0.0
        %v5141 = vadd.f32 %v5139, %v5140
        %v5142 = vsel %vm683, %v5088, 0.0
        %v5143 = vadd.f32 %v5141, %v5142
        %v5144 = vsel %vm683, %v5089, 0.0
        %v5145 = vadd.f32 %v5143, %v5144
        %v5146 = vsel %vm683, %v5090, 0.0
        %v5147 = vadd.f32 %v5145, %v5146
        %v5148 = vsel %vm683, %v5091, 0.0
        %v5149 = vadd.f32 %v5147, %v5148
        %v5150 = vsel %vm683, %v5092, 0.0
        %v5151 = vadd.f32 %v5149, %v5150
        %v5152 = vsel %vm683, %v5093, 0.0
        %v5153 = vadd.f32 %v5151, %v5152
        %v5154 = vsel %vm683, %v5094, 0.0
        %v5155 = vadd.f32 %v5153, %v5154
        %v5156 = vsel %vm683, %v5095, 0.0
        %v5157 = vadd.f32 %v5155, %v5156
        %v5158 = vsel %vm683, %v5096, 0.0
        %v5159 = vadd.f32 %v5157, %v5158
        %v5160 = vrot.slane %v5159, 4
        %v5161 = vadd.f32 %v5159, %v5160
        %v5162 = vrot.slane %v5161, 2
        %v5163 = vadd.f32 %v5161, %v5162
        %v5164 = vrot.slane %v5163, 1
        %v5165 = vadd.f32 %v5163, %v5164
        %v5166 = vrcp.pop 256.0
        %v5167 = vmul.f32 %v5165, %v5166
        %v5168 = vld [vmem:[%s5] sm:$0xf]
        %v5169 = vmul.f32 %v5168, %v5167
        %vm5170 = vcmask 257024
        %v5171 = vsel %vm5170, %v5169, 0.0
        %5172 = vadd.xlane.f32.xlu0 %v5171
        %v5173 = vpop.xlane.xlu0 %5172
        %v5174 = vld [vmem:[%s6] sm:$0xf]
        %v5175 = vadd.f32 %v5173, %v5174
        %v5176 = vmax.f32 %v5175, 0.0
        %v5177 = vld [vmem:[%s7] sm:$0xf]
        %5179 = vset.pattern.permute.xlu0 0
        %5180 = vperm.xlu0 %5179, %v5176
        %v5181 = vpop.permute.xlu0 %5180
        %v5183 = vmul.f32 %v5177, %v5181
        %v5184 = vsel %vm5170, %v5183, 0.0
        %v5185 = vrot.slane %v5184, 4
        %v5186 = vadd.f32 %v5184, %v5185
        %v5187 = vrot.slane %v5186, 2
        %v5188 = vadd.f32 %v5186, %v5187
        %v5189 = vrot.slane %v5188, 1
        %v5190 = vadd.f32 %v5188, %v5189
        %v5191 = vld [vmem:[%s8] sm:$0x1]
        %v5192 = vadd.f32 %v5190, %v5191
        %v5193 = vsub.f32 0.0, %v5192
        %v5194 = vmul.f32 %v5193, 1.442695
        %v5195 = vpow.pop %v5194
        %v5196 = vadd.f32 %v5195, 1.0
        %v5197 = vrcp.pop %v5196
        %v5198 = vmul.f32 1.0, %v5197
        %v5199 = vld [vmem:[%s761 + $0x1] sm:$0xff]
        %v5200 = vld [vmem:[%s761 + $0x9] sm:$0xff]
        %v5201 = vld [vmem:[%s761 + $0x19] sm:$0xff]
        %v5202 = vld [vmem:[%s761 + $0x21] sm:$0xff]
        %v5203 = vld [vmem:[%s761 + $0x31] sm:$0xff]
        %v5204 = vld [vmem:[%s761 + $0x39] sm:$0xff]
        %v5205 = vld [vmem:[%s761 + $0x49] sm:$0xff]
        %v5206 = vld [vmem:[%s761 + $0x51] sm:$0xff]
        %v5207 = vld [vmem:[%s761 + $0x61] sm:$0xff]
        %v5208 = vld [vmem:[%s761 + $0x69] sm:$0xff]
        %v5209 = vld [vmem:[%s761 + $0x79] sm:$0xff]
        %v5210 = vld [vmem:[%s761 + $0x81] sm:$0xff]
        %v5211 = vld [vmem:[%s761 + $0x91] sm:$0xff]
        %v5212 = vld [vmem:[%s761 + $0x99] sm:$0xff]
        %v5213 = vld [vmem:[%s761 + $0xa9] sm:$0xff]
        %v5214 = vld [vmem:[%s761 + $0xb1] sm:$0xff]
        %v5215 = vld [vmem:[%s761 + $0xc1] sm:$0xff]
        %v5216 = vld [vmem:[%s761 + $0xc9] sm:$0xff]
        %v5217 = vld [vmem:[%s761 + $0xd9] sm:$0xff]
        %v5218 = vld [vmem:[%s761 + $0xe1] sm:$0xff]
        %v5219 = vld [vmem:[%s761 + $0xf1] sm:$0xff]
        %v5220 = vld [vmem:[%s761 + $0xf9] sm:$0xff]
        %v5221 = vld [vmem:[%s761 + $0x109] sm:$0xff]
        %v5222 = vld [vmem:[%s761 + $0x111] sm:$0xff]
        %v5223 = vld [vmem:[%s761 + $0x121] sm:$0xff]
        %v5224 = vld [vmem:[%s761 + $0x129] sm:$0xff]
        %v5225 = vld [vmem:[%s761 + $0x139] sm:$0xff]
        %v5226 = vld [vmem:[%s761 + $0x141] sm:$0xff]
        %v5227 = vld [vmem:[%s761 + $0x151] sm:$0xff]
        %v5228 = vld [vmem:[%s761 + $0x159] sm:$0xff]
        %v5229 = vld [vmem:[%s761 + $0x169] sm:$0xff]
        %v5230 = vld [vmem:[%s761 + $0x171] sm:$0xff]
        %v5231 = vlaneseq
        %v5232 = vshrl.u32 %v5231, 7
        %v5233 = vsub.s32 0, %v5232
        %v5234 = vrot.slane %v5198, %v5233
        %v5235 = vmul.f32 %v5065, %v5234
        %v5236 = vmul.f32 %v5066, %v5234
        %v5237 = vmul.f32 %v5067, %v5234
        %v5238 = vmul.f32 %v5068, %v5234
        %v5239 = vmul.f32 %v5069, %v5234
        %v5240 = vmul.f32 %v5070, %v5234
        %v5241 = vmul.f32 %v5071, %v5234
        %v5242 = vmul.f32 %v5072, %v5234
        %v5243 = vmul.f32 %v5073, %v5234
        %v5244 = vmul.f32 %v5074, %v5234
        %v5245 = vmul.f32 %v5075, %v5234
        %v5246 = vmul.f32 %v5076, %v5234
        %v5247 = vmul.f32 %v5077, %v5234
        %v5248 = vmul.f32 %v5078, %v5234
        %v5249 = vmul.f32 %v5079, %v5234
        %v5250 = vmul.f32 %v5080, %v5234
        %v5251 = vmul.f32 %v5081, %v5234
        %v5252 = vmul.f32 %v5082, %v5234
        %v5253 = vmul.f32 %v5083, %v5234
        %v5254 = vmul.f32 %v5084, %v5234
        %v5255 = vmul.f32 %v5085, %v5234
        %v5256 = vmul.f32 %v5086, %v5234
        %v5257 = vmul.f32 %v5087, %v5234
        %v5258 = vmul.f32 %v5088, %v5234
        %v5259 = vmul.f32 %v5089, %v5234
        %v5260 = vmul.f32 %v5090, %v5234
        %v5261 = vmul.f32 %v5091, %v5234
        %v5262 = vmul.f32 %v5092, %v5234
        %v5263 = vmul.f32 %v5093, %v5234
        %v5264 = vmul.f32 %v5094, %v5234
        %v5265 = vmul.f32 %v5095, %v5234
        %v5266 = vmul.f32 %v5096, %v5234
        %v5267 = vadd.f32 %v5199, %v5235
        %v5268 = vadd.f32 %v5200, %v5236
        %v5269 = vadd.f32 %v5201, %v5237
        %v5270 = vadd.f32 %v5202, %v5238
        %v5271 = vadd.f32 %v5203, %v5239
        %v5272 = vadd.f32 %v5204, %v5240
        %v5273 = vadd.f32 %v5205, %v5241
        %v5274 = vadd.f32 %v5206, %v5242
        %v5275 = vadd.f32 %v5207, %v5243
        %v5276 = vadd.f32 %v5208, %v5244
        %v5277 = vadd.f32 %v5209, %v5245
        %v5278 = vadd.f32 %v5210, %v5246
        %v5279 = vadd.f32 %v5211, %v5247
        %v5280 = vadd.f32 %v5212, %v5248
        %v5281 = vadd.f32 %v5213, %v5249
        %v5282 = vadd.f32 %v5214, %v5250
        %v5283 = vadd.f32 %v5215, %v5251
        %v5284 = vadd.f32 %v5216, %v5252
        %v5285 = vadd.f32 %v5217, %v5253
        %v5286 = vadd.f32 %v5218, %v5254
        %v5287 = vadd.f32 %v5219, %v5255
        %v5288 = vadd.f32 %v5220, %v5256
        %v5289 = vadd.f32 %v5221, %v5257
        %v5290 = vadd.f32 %v5222, %v5258
        %v5291 = vadd.f32 %v5223, %v5259
        %v5292 = vadd.f32 %v5224, %v5260
        %v5293 = vadd.f32 %v5225, %v5261
        %v5294 = vadd.f32 %v5226, %v5262
        %v5295 = vadd.f32 %v5227, %v5263
        %v5296 = vadd.f32 %v5228, %v5264
        %v5297 = vadd.f32 %v5229, %v5265
        %v5298 = vadd.f32 %v5230, %v5266
        %5299 = vst.msk [vmem:[%s325] sm:$0xff] %vm683, %v5267
        %5300 = vst.msk [vmem:[%s325 + $0x8] sm:$0xff] %vm683, %v5268
        %5301 = vst.msk [vmem:[%s325 + $0x10] sm:$0xff] %vm683, %v5269
        %5302 = vst.msk [vmem:[%s325 + $0x18] sm:$0xff] %vm683, %v5270
        %5303 = vst.msk [vmem:[%s325 + $0x20] sm:$0xff] %vm683, %v5271
        %5304 = vst.msk [vmem:[%s325 + $0x28] sm:$0xff] %vm683, %v5272
        %5305 = vst.msk [vmem:[%s325 + $0x30] sm:$0xff] %vm683, %v5273
        %5306 = vst.msk [vmem:[%s325 + $0x38] sm:$0xff] %vm683, %v5274
        %5307 = vst.msk [vmem:[%s325 + $0x40] sm:$0xff] %vm683, %v5275
        %5308 = vst.msk [vmem:[%s325 + $0x48] sm:$0xff] %vm683, %v5276
        %5309 = vst.msk [vmem:[%s325 + $0x50] sm:$0xff] %vm683, %v5277
        %5310 = vst.msk [vmem:[%s325 + $0x58] sm:$0xff] %vm683, %v5278
        %5311 = vst.msk [vmem:[%s325 + $0x60] sm:$0xff] %vm683, %v5279
        %5312 = vst.msk [vmem:[%s325 + $0x68] sm:$0xff] %vm683, %v5280
        %5313 = vst.msk [vmem:[%s325 + $0x70] sm:$0xff] %vm683, %v5281
        %5314 = vst.msk [vmem:[%s325 + $0x78] sm:$0xff] %vm683, %v5282
        %5315 = vst.msk [vmem:[%s325 + $0x80] sm:$0xff] %vm683, %v5283
        %5316 = vst.msk [vmem:[%s325 + $0x88] sm:$0xff] %vm683, %v5284
        %5317 = vst.msk [vmem:[%s325 + $0x90] sm:$0xff] %vm683, %v5285
        %5318 = vst.msk [vmem:[%s325 + $0x98] sm:$0xff] %vm683, %v5286
        %5319 = vst.msk [vmem:[%s325 + $0xa0] sm:$0xff] %vm683, %v5287
        %5320 = vst.msk [vmem:[%s325 + $0xa8] sm:$0xff] %vm683, %v5288
        %5321 = vst.msk [vmem:[%s325 + $0xb0] sm:$0xff] %vm683, %v5289
        %5322 = vst.msk [vmem:[%s325 + $0xb8] sm:$0xff] %vm683, %v5290
        %5323 = vst.msk [vmem:[%s325 + $0xc0] sm:$0xff] %vm683, %v5291
        %5324 = vst.msk [vmem:[%s325 + $0xc8] sm:$0xff] %vm683, %v5292
        %5325 = vst.msk [vmem:[%s325 + $0xd0] sm:$0xff] %vm683, %v5293
        %5326 = vst.msk [vmem:[%s325 + $0xd8] sm:$0xff] %vm683, %v5294
        %5327 = vst.msk [vmem:[%s325 + $0xe0] sm:$0xff] %vm683, %v5295
        %5328 = vst.msk [vmem:[%s325 + $0xe8] sm:$0xff] %vm683, %v5296
        %5329 = vst.msk [vmem:[%s325 + $0xf0] sm:$0xff] %vm683, %v5297
        %5330 = vst.msk [vmem:[%s325 + $0xf8] sm:$0xff] %vm683, %v5298
        %s5331 = sand.u32 %s225, 1
        %s5332 = scalar_lea.sflag [#allocation4], %s5331
        %s5333 = sand.u32 %s225, 1
        %s5334 = smul.addr %s5333, 256
        %s5335 = scalar_lea.vmem [#allocation3], %s5334
        // Predicated region
        $region57: #{residual_block_pallas.1} parent=55 // pred_check
          %p5336 = pneg %p235
        $region58: #{residual_block_pallas.1} parent=55 // pred_check_branch
          %5338 = sbr.rel (%p5336) target = $region60
        $region59: #{residual_block_pallas.1} parent=55 // pred_region
          %s5340 = ssub.s32 4096, 4096
          %5341 = vsyncadd %s5332, %s5340
          %s5342 = smul.addr %s23, 32
          %s5343 = smul.addr %s5342, 128
          %s5344 = scalar_lea.hbm %s9, %s5343
          %s5345 = sshll.u32 %s5335, 4
          %s5346 = int_to_ptr.vmem [resolvable:$true] %s5345
          %5351 = dma.vmem_to_hbm [thread:$0]  %s5346, 4096, %s5344, %s5332, 128, 128, 8
        $region60: #{residual_block_pallas.1} parent=55 // pred_fallthru
          _
      $region56: #{residual_block_pallas.1} parent=5 // pred_fallthru
        _
      %p5352 = scmp.le.s32.totalorder 2, %s18
      // Predicated region
      $region61: #{residual_block_pallas.1} parent=5 // pred_check
        %p5353 = pneg %p5352
      $region62: #{residual_block_pallas.1} parent=5 // pred_check_branch
        %5355 = sbr.rel (%p5353) target = $region64
      $region63: #{residual_block_pallas.1} parent=5 // pred_region
        %s5356 = ssub.s32 %s18, 2
        // Predicated region
        $region65: #{residual_block_pallas.1} parent=63 // pred_check
          %p5357 = pneg %p241
        $region66: #{residual_block_pallas.1} parent=63 // pred_check_branch
          %5359 = sbr.rel (%p5357) target = $region68
        $region67: #{residual_block_pallas.1} parent=63 // pred_region
          %s5360 = sand.u32 %s226, 1
          %s5361 = scalar_lea.sflag [#allocation4], %s5360
          %s5362 = sand.u32 %s226, 1
          %s5363 = smul.addr %s5362, 256
          %s5364 = scalar_lea.vmem [#allocation3], %s5363
          %5365 = dma.done %s5361, 4096
        $region68: #{residual_block_pallas.1} parent=63 // pred_fallthru
          _
      $region64: #{residual_block_pallas.1} parent=5 // pred_fallthru
        _
    $region6: #{residual_block_pallas.1} parent=1 // loop_footer
      %s22 = sadd.s32 1, %s18
    $region7: #{residual_block_pallas.1} parent=1 // loop_footer_branch
      %17 = sbr.rel target = $region3
    $region8: #{residual_block_pallas.1} parent=1 // loop_exit
      _
    %5366 = vsyncpa [#allocation4], 1
    %s5367 = scalar_lea.sflag [#allocation4], 1
    %5368 = vsyncpa %s5367, 1

</llo_original>
